<compile_context>
chip_gen: v5e
topology: v5e:2x2
jax: 0.10.0
libtpu: 0.0.40
codegen_flags: <defaults>
</compile_context>

<pallas_src>
import sys

import jax
import jax.numpy as jnp
import numpy as np
from jax.experimental import pallas as pl
from jax.experimental.pallas import tpu as pltpu

B = 2
BOTTLENECK = 32        # bottleneck_size (real default 2500)
RES = 32               # res_size (real default 256)
N_POINTS = 1024        # points per batch element
TILE_N = 512           # requested point-tile width (lane dim), multiple of 128
OUT_FACTOR = 200.0
BN_EPS = 1e-5

TOP_PAD = 8            # coords padded to a full 8-sublane region
CONTRACT_ALIGN = 128   # conv1 contraction padding (MXU edge; use 256 on v6e/v7x)
C_FEAT = BOTTLENECK - 3
# +1 ones row carries the folded conv1 bias through the fused feature matmul.
C_FEAT_PAD = -(-(C_FEAT + 1) // CONTRACT_ALIGN) * CONTRACT_ALIGN


# ----------------------------- Pallas kernel ------------------------------- #
def _point_gen_kernel(xtop_ref, xfeat_ref, w1f_ref, w1t_ref, w2_ref, b2_ref,
                      w3_ref, b3_ref, out_ref):
    """One point tile: coords (8,T) f32 + features (C_FEAT_PAD,T) bf16 -> (3,T) f32."""
    # conv1 feature half for ALL 3 decoder blocks in one fused MXU matmul.
    # bf16 operands straight from VMEM (no in-kernel cast of the big tile),
    # f32 accumulation.  The folded conv1 bias rides along via the ones row
    # baked into xfeat, so there is no separate b1 add.
    feat_h = jnp.dot(w1f_ref[...], xfeat_ref[...],
                     preferred_element_type=jnp.float32)          # (3*RES, T) f32

    coords = xtop_ref[0:3, :]                                     # (3, T) f32

    def top_contrib(i, top):
        # conv1 "top" half: 3-row rank-3 update on the VPU, kept entirely in
        # f32 so the residual chain never passes through bf16.
        w = w1t_ref[i]                                            # (RES, 3) f32
        return (w[:, 0:1] * top[0:1, :]
                + w[:, 1:2] * top[1:2, :]
                + w[:, 2:3] * top[2:3, :])                        # (RES, T) f32

    def decoder_block(i, top, residual):
        # conv1 (BN1 + bias folded) = fused feature matmul slice + top update.
        h = feat_h[i * RES:(i + 1) * RES, :] + top_contrib(i, top)
        h = jnp.maximum(h, 0.0)
        # conv2 (BN2 folded) + ReLU; only the small (RES, T) activation is cast.
        h = jnp.dot(w2_ref[i], h.astype(jnp.bfloat16),
                    preferred_element_type=jnp.float32) + b2_ref[i]
        h = jnp.maximum(h, 0.0)
        # conv3 -> 3 output channels
        y = jnp.dot(w3_ref[i], h.astype(jnp.bfloat16),
                    preferred_element_type=jnp.float32) + b3_ref[i]
        return y + top if residual else y                         # out_factor=1

    y1 = decoder_block(0, coords, True)      # residual1
    y2 = decoder_block(1, y1, True)          # residual2 (top = previous output)
    y3 = decoder_block(2, y2, False)         # residual3 (no residual)
    out_ref[...] = (OUT_FACTOR * y3).astype(out_ref.dtype)


# ------------------------------ glue / wrapper ------------------------------ #
def _weight_spec(a, single_buffer):
    idx = lambda t, _nd=a.ndim: (0,) * _nd        # grid-invariant operand
    if single_buffer:
        # One VMEM buffer instead of the default two for constant operands
        # (~4.3 MB saved at real sizes; matters on v7x's 64 MiB VMEM).
        return pl.BlockSpec(a.shape, idx, pipeline_mode=pl.Buffered(1))
    return pl.BlockSpec(a.shape, idx)


def _choose_tile_n(total, requested):
    """Lane-dense tile width; keep an even number of >= 4 grid steps so both
    v7x TensorCores get at least two pipelined steps each."""
    tile = max(128, min(requested, total) - (min(requested, total) % 128))
    while tile > 128 and (total % tile != 0 or (total // tile) < 4
                          or (total // tile) % 2 != 0):
        tile -= 128
    assert tile >= 128 and total % tile == 0, (total, tile)
    return tile


def _vmem_bytes(shape, dtype):
    """Approx VMEM footprint of one buffer incl. (sublane, lane) tile padding."""
    itemsize = jnp.dtype(dtype).itemsize
    sub = 8 * (4 // itemsize)                       # 8 rows f32, 16 rows bf16
    lanes = -(-shape[-1] // 128) * 128
    subl = -(-shape[-2] // sub) * sub
    lead = int(np.prod(shape[:-2])) if len(shape) > 2 else 1
    return lead * subl * lanes * itemsize


def point_gen_con_residual(x, params, tile_n=TILE_N, single_buffer_weights=True):
    """x: (B, BOTTLENECK, N) float32 -> (B, 3, N) float32."""
    w1f, w1t, w2, b2, w3, b3 = params
    Bn, C, N = x.shape
    assert C == BOTTLENECK, (C, BOTTLENECK)
    total = Bn * N
    tile_n = _choose_tile_n(total, tile_n)
    n_tiles = total // tile_n

    # Collapse batch into the point/lane dimension (layout plumbing only).
    x2d = jnp.transpose(x, (1, 0, 2)).reshape(C, total)

    # Top region: coords in f32, padded to 8 aligned sublanes (rows 3:8 unused)
    # so the residual chain and the conv1 top update stay in f32.  Tiny DMA.
    xtop = jnp.concatenate(
        [x2d[:3], jnp.zeros((TOP_PAD - 3, total), x.dtype)], axis=0)
    # Feature region: cast to bf16 ONCE in glue (halves HBM->VMEM traffic),
    # append a ones row carrying the folded conv1 bias, zero-pad the
    # contraction dim to the MXU edge.
    xfeat = jnp.concatenate(
        [x2d[3:], jnp.ones((1, total), x.dtype),
         jnp.zeros((C_FEAT_PAD - C_FEAT - 1, total), x.dtype)],
        axis=0).astype(jnp.bfloat16)

    # Explicit VMEM budget: 2x (double-buffered) IO tiles + weights.
    weights = (w1f, w1t, w2, b2, w3, b3)
    wmul = 1 if single_buffer_weights else 2
    est = (2 * (_vmem_bytes((TOP_PAD, tile_n), jnp.float32)
                + _vmem_bytes((C_FEAT_PAD, tile_n), jnp.bfloat16)
                + _vmem_bytes((3, tile_n), jnp.float32))
           + wmul * sum(_vmem_bytes(w.shape, w.dtype) for w in weights))
    vmem_limit = int(max(32 << 20, 2 * est))   # generous headroom at demo sizes

    out2d = pl.pallas_call(
        _point_gen_kernel,
        out_shape=jax.ShapeDtypeStruct((3, total), x.dtype),
        grid=(n_tiles,),
        in_specs=[
            pl.BlockSpec((TOP_PAD, tile_n), lambda t: (0, t)),
            pl.BlockSpec((C_FEAT_PAD, tile_n), lambda t: (0, t)),
            _weight_spec(w1f, single_buffer_weights),
            _weight_spec(w1t, single_buffer_weights),
            _weight_spec(w2, single_buffer_weights),
            _weight_spec(b2, single_buffer_weights),
            _weight_spec(w3, single_buffer_weights),
            _weight_spec(b3, single_buffer_weights),
        ],
        out_specs=pl.BlockSpec((3, tile_n), lambda t: (0, t)),
        compiler_params=pltpu.CompilerParams(
            dimension_semantics=("parallel",),
            vmem_limit_bytes=vmem_limit),
    )(xtop, xfeat, w1f, w1t, w2, b2, w3, b3)

    return jnp.transpose(out2d.reshape(3, Bn, N), (1, 0, 2))


# --------------------------- parameter setup (glue) ------------------------ #
def init_params(key):
    """Deterministic synthetic weights for the 3 DecoderBlocks."""
    keys = iter(jax.random.split(key, 48))
    blocks = []
    for _ in range(3):
        p = dict(
            w1=jax.random.normal(next(keys), (RES, BOTTLENECK), jnp.float32) * 0.1,
            b1=jax.random.normal(next(keys), (RES,), jnp.float32) * 0.1,
            bn1=(1.0 + 0.1 * jax.random.normal(next(keys), (RES,), jnp.float32),   # gamma
                 0.1 * jax.random.normal(next(keys), (RES,), jnp.float32),         # beta
                 0.1 * jax.random.normal(next(keys), (RES,), jnp.float32),         # running_mean
                 jax.random.uniform(next(keys), (RES,), jnp.float32, 0.5, 1.5)),   # running_var
            w2=jax.random.normal(next(keys), (RES, RES), jnp.float32) * 0.1,
            b2=jax.random.normal(next(keys), (RES,), jnp.float32) * 0.1,
            bn2=(1.0 + 0.1 * jax.random.normal(next(keys), (RES,), jnp.float32),
                 0.1 * jax.random.normal(next(keys), (RES,), jnp.float32),
                 0.1 * jax.random.normal(next(keys), (RES,), jnp.float32),
                 jax.random.uniform(next(keys), (RES,), jnp.float32, 0.5, 1.5)),
            w3=jax.random.normal(next(keys), (3, RES), jnp.float32) * 0.1,
            b3=jax.random.normal(next(keys), (3,), jnp.float32) * 0.1,
        )
        blocks.append(p)
    return blocks


def fold_bn(w, b, bn):
    gamma, beta, mean, var = bn
    scale = gamma / jnp.sqrt(var + BN_EPS)
    return w * scale[:, None], scale * (b - mean) + beta


def pack_kernel_params(blocks):
    """Fold BN (eval mode) into the convs and repack for the kernel.

    w1f: feature half of conv1 for all 3 blocks stacked row-wise, plus the
         folded conv1 bias as an extra column (consumed by the ones row in
         xfeat), zero-padded to C_FEAT_PAD.  bf16 MXU operand.
    w1t: coords half of conv1, f32 (3, RES, 3) for the VPU rank-3 update.
    w2/w3: bf16 MXU operands.  b2/b3 stay f32 (blk, Co, 1); at real sizes the
    128-lane padding of these small arrays is ~1% of w1f — b1 was the one
    worth folding.
    """
    w1f_rows, w1t_rows, w2s, b2s, w3s, b3s = [], [], [], [], [], []
    for p in blocks:
        w1, b1 = fold_bn(p["w1"], p["b1"], p["bn1"])
        w2, b2 = fold_bn(p["w2"], p["b2"], p["bn2"])
        w1f_rows.append(jnp.concatenate([w1[:, 3:], b1[:, None]], axis=1))
        w1t_rows.append(w1[:, :3])
        w2s.append(w2); b2s.append(b2)
        w3s.append(p["w3"]); b3s.append(p["b3"])
    w1f = jnp.concatenate(w1f_rows, axis=0)                        # (3*RES, C_FEAT+1)
    w1f = jnp.pad(w1f, ((0, 0), (0, C_FEAT_PAD - w1f.shape[1]))).astype(jnp.bfloat16)
    w1t = jnp.stack(w1t_rows).astype(jnp.float32)                  # (3, RES, 3)
    w2 = jnp.stack(w2s).astype(jnp.bfloat16)                       # (3, RES, RES)
    b2 = jnp.stack(b2s)[..., None].astype(jnp.float32)             # (3, RES, 1)
    w3 = jnp.stack(w3s).astype(jnp.bfloat16)                       # (3, 3, RES)
    b3 = jnp.stack(b3s)[..., None].astype(jnp.float32)             # (3, 3, 1)
    return (w1f, w1t, w2, b2, w3, b3)


# ------------------------- pure-JAX reference (check) ---------------------- #
def reference_forward(x, blocks):
    def bn(h, params):
        gamma, beta, mean, var = params
        return (gamma[None, :, None] * (h - mean[None, :, None])
                / jnp.sqrt(var[None, :, None] + BN_EPS) + beta[None, :, None])

    def conv1x1(h, w, b):
        return jnp.einsum("oc,bcn->bon", w, h) + b[None, :, None]

    def block(inp, p, residual):
        coords = inp[:, :3]
        h = jax.nn.relu(bn(conv1x1(inp, p["w1"], p["b1"]), p["bn1"]))
        h = jax.nn.relu(bn(conv1x1(h, p["w2"], p["b2"]), p["bn2"]))
        y = conv1x1(h, p["w3"], p["b3"])
        if residual:
            y = y + coords * 1.0
        return y

    features = x[:, 3:]
    x1 = block(x, blocks[0], True)
    x2 = block(jnp.concatenate([x1, features], axis=1), blocks[1], True)
    x3 = block(jnp.concatenate([x2, features], axis=1), blocks[2], False)
    return OUT_FACTOR * x3


# ----------------------------------- main ----------------------------------- #
if __name__ == "__main__":
    key = jax.random.PRNGKey(0)
    k_param, k_x = jax.random.split(key)

    blocks = init_params(k_param)
    kernel_params = pack_kernel_params(blocks)

    x = jax.random.normal(k_x, (B, BOTTLENECK, N_POINTS), jnp.float32)

    weights_single_buffered = True
    try:
        out = jax.block_until_ready(
            point_gen_con_residual(x, kernel_params, single_buffer_weights=True))
    except Exception as e:  # noqa: BLE001 - log which weight-buffering path ran
        weights_single_buffered = False
        sys.stderr.write(
            "point_gen_con_residual: pl.Buffered(1) weight path rejected "
            f"({type(e).__name__}); falling back to double-buffered weights.\n")
        out = jax.block_until_ready(
            point_gen_con_residual(x, kernel_params, single_buffer_weights=False))

    ref = jax.block_until_ready(reference_forward(x, blocks))

    assert out.shape == (B, 3, N_POINTS), out.shape
    # bf16 weights/features/activations + the x200 output scaling amplify
    # rounding vs the pure-f32 reference (the residual/coords chain itself now
    # stays in f32), hence the relaxed tolerance.
    np.testing.assert_allclose(np.asarray(out), np.asarray(ref),
                               rtol=2e-2, atol=2.0)
    print("KERNEL_OK")
</pallas_src>

<mosaic_0001>
module attributes {stable_mosaic.version = 11 : i64} {
  func.func @_point_gen_kernel(%arg0: i32, %arg1: memref<8x512xf32, #tpu.memory_space<vmem>>, %arg2: memref<128x512xbf16, #tpu.memory_space<vmem>>, %arg3: memref<96x128xbf16, #tpu.memory_space<vmem>>, %arg4: memref<3x32x3xf32, #tpu.memory_space<vmem>>, %arg5: memref<3x32x32xbf16, #tpu.memory_space<vmem>>, %arg6: memref<3x32x1xf32, #tpu.memory_space<vmem>>, %arg7: memref<3x3x32xbf16, #tpu.memory_space<vmem>>, %arg8: memref<3x3x1xf32, #tpu.memory_space<vmem>>, %arg9: memref<3x512xf32, #tpu.memory_space<vmem>>) attributes {dimension_semantics = [#tpu.dimension_semantics<parallel>], iteration_bounds = array<i64: 4>, scalar_prefetch = 0 : i64, scratch_operands = 0 : i64, tpu.core_type = #tpu.core_type<tc>, window_params = [{transform_indices = @transform_0, window_bounds = array<i64: 8, 512>}, {transform_indices = @transform_1, window_bounds = array<i64: 128, 512>}, {pipeline_mode = #tpu.pipeline_mode<synchronous>, transform_indices = @transform_2, window_bounds = array<i64: 96, 128>}, {pipeline_mode = #tpu.pipeline_mode<synchronous>, transform_indices = @transform_3, window_bounds = array<i64: 3, 32, 3>}, {pipeline_mode = #tpu.pipeline_mode<synchronous>, transform_indices = @transform_4, window_bounds = array<i64: 3, 32, 32>}, {pipeline_mode = #tpu.pipeline_mode<synchronous>, transform_indices = @transform_5, window_bounds = array<i64: 3, 32, 1>}, {pipeline_mode = #tpu.pipeline_mode<synchronous>, transform_indices = @transform_6, window_bounds = array<i64: 3, 3, 32>}, {pipeline_mode = #tpu.pipeline_mode<synchronous>, transform_indices = @transform_7, window_bounds = array<i64: 3, 3, 1>}, {transform_indices = @transform_8, window_bounds = array<i64: 3, 512>}]} {
    %c0 = arith.constant 0 : index
    %c0_0 = arith.constant 0 : index
    %0 = vector.load %arg3[%c0, %c0_0] : memref<96x128xbf16, #tpu.memory_space<vmem>>, vector<96x128xbf16>
    %c0_1 = arith.constant 0 : index
    %c0_2 = arith.constant 0 : index
    %1 = vector.load %arg2[%c0_1, %c0_2] : memref<128x512xbf16, #tpu.memory_space<vmem>>, vector<128x512xbf16>
    %cst = arith.constant dense<0.000000e+00> : vector<96x512xf32>
    %2 = tpu.matmul %0, %1, %cst {dimension_numbers = #tpu.dot_dimension_numbers<[1], [0], [0], [1], [0, 0, 1, 1], [], []>} : vector<96x128xbf16>, vector<128x512xbf16>, vector<96x512xf32> -> vector<96x512xf32>
    %c0_3 = arith.constant 0 : index
    %c0_4 = arith.constant 0 : index
    %3 = vector.load %arg1[%c0_3, %c0_4] : memref<8x512xf32, #tpu.memory_space<vmem>>, vector<3x512xf32>
    %4 = vector.extract_strided_slice %2 {offsets = [0, 0], sizes = [32, 512], strides = [1, 1]} : vector<96x512xf32> to vector<32x512xf32>
    %c0_5 = arith.constant 0 : index
    %c0_6 = arith.constant 0 : index
    %c0_7 = arith.constant 0 : index
    %5 = vector.load %arg4[%c0_5, %c0_6, %c0_7] : memref<3x32x3xf32, #tpu.memory_space<vmem>>, vector<1x32x3xf32>
    %6 = vector.shape_cast %5 : vector<1x32x3xf32> to vector<32x3xf32>
    %7 = vector.extract_strided_slice %6 {offsets = [0, 0], sizes = [32, 1], strides = [1, 1]} : vector<32x3xf32> to vector<32x1xf32>
    %8 = vector.extract_strided_slice %3 {offsets = [0, 0], sizes = [1, 512], strides = [1, 1]} : vector<3x512xf32> to vector<1x512xf32>
    %9 = vector.broadcast %7 : vector<32x1xf32> to vector<32x512xf32>
    %10 = vector.broadcast %8 : vector<1x512xf32> to vector<32x512xf32>
    %11 = arith.mulf %9, %10 : vector<32x512xf32>
    %12 = vector.extract_strided_slice %6 {offsets = [0, 1], sizes = [32, 1], strides = [1, 1]} : vector<32x3xf32> to vector<32x1xf32>
    %13 = vector.extract_strided_slice %3 {offsets = [1, 0], sizes = [1, 512], strides = [1, 1]} : vector<3x512xf32> to vector<1x512xf32>
    %14 = vector.broadcast %12 : vector<32x1xf32> to vector<32x512xf32>
    %15 = vector.broadcast %13 : vector<1x512xf32> to vector<32x512xf32>
    %16 = arith.mulf %14, %15 : vector<32x512xf32>
    %17 = arith.addf %11, %16 : vector<32x512xf32>
    %18 = vector.extract_strided_slice %6 {offsets = [0, 2], sizes = [32, 1], strides = [1, 1]} : vector<32x3xf32> to vector<32x1xf32>
    %19 = vector.extract_strided_slice %3 {offsets = [2, 0], sizes = [1, 512], strides = [1, 1]} : vector<3x512xf32> to vector<1x512xf32>
    %20 = vector.broadcast %18 : vector<32x1xf32> to vector<32x512xf32>
    %21 = vector.broadcast %19 : vector<1x512xf32> to vector<32x512xf32>
    %22 = arith.mulf %20, %21 : vector<32x512xf32>
    %23 = arith.addf %17, %22 : vector<32x512xf32>
    %24 = arith.addf %4, %23 : vector<32x512xf32>
    %cst_8 = arith.constant 0.000000e+00 : f32
    %25 = vector.broadcast %cst_8 : f32 to vector<32x512xf32>
    %26 = arith.maximumf %24, %25 : vector<32x512xf32>
    %c0_9 = arith.constant 0 : index
    %c0_10 = arith.constant 0 : index
    %c0_11 = arith.constant 0 : index
    %27 = vector.load %arg5[%c0_9, %c0_10, %c0_11] : memref<3x32x32xbf16, #tpu.memory_space<vmem>>, vector<1x32x32xbf16>
    %28 = vector.shape_cast %27 : vector<1x32x32xbf16> to vector<32x32xbf16>
    %29 = arith.truncf %26 : vector<32x512xf32> to vector<32x512xbf16>
    %cst_12 = arith.constant dense<0.000000e+00> : vector<32x512xf32>
    %30 = tpu.matmul %28, %29, %cst_12 {dimension_numbers = #tpu.dot_dimension_numbers<[1], [0], [0], [1], [0, 0, 1, 1], [], []>} : vector<32x32xbf16>, vector<32x512xbf16>, vector<32x512xf32> -> vector<32x512xf32>
    %c0_13 = arith.constant 0 : index
    %c0_14 = arith.constant 0 : index
    %c0_15 = arith.constant 0 : index
    %31 = vector.load %arg6[%c0_13, %c0_14, %c0_15] : memref<3x32x1xf32, #tpu.memory_space<vmem>>, vector<1x32x1xf32>
    %32 = vector.shape_cast %31 : vector<1x32x1xf32> to vector<32x1xf32>
    %33 = vector.broadcast %32 : vector<32x1xf32> to vector<32x512xf32>
    %34 = arith.addf %30, %33 : vector<32x512xf32>
    %cst_16 = arith.constant 0.000000e+00 : f32
    %35 = vector.broadcast %cst_16 : f32 to vector<32x512xf32>
    %36 = arith.maximumf %34, %35 : vector<32x512xf32>
    %c0_17 = arith.constant 0 : index
    %c0_18 = arith.constant 0 : index
    %c0_19 = arith.constant 0 : index
    %37 = vector.load %arg7[%c0_17, %c0_18, %c0_19] : memref<3x3x32xbf16, #tpu.memory_space<vmem>>, vector<1x3x32xbf16>
    %38 = vector.shape_cast %37 : vector<1x3x32xbf16> to vector<3x32xbf16>
    %39 = arith.truncf %36 : vector<32x512xf32> to vector<32x512xbf16>
    %cst_20 = arith.constant dense<0.000000e+00> : vector<3x512xf32>
    %40 = tpu.matmul %38, %39, %cst_20 {dimension_numbers = #tpu.dot_dimension_numbers<[1], [0], [0], [1], [0, 0, 1, 1], [], []>} : vector<3x32xbf16>, vector<32x512xbf16>, vector<3x512xf32> -> vector<3x512xf32>
    %c0_21 = arith.constant 0 : index
    %c0_22 = arith.constant 0 : index
    %c0_23 = arith.constant 0 : index
    %41 = vector.load %arg8[%c0_21, %c0_22, %c0_23] : memref<3x3x1xf32, #tpu.memory_space<vmem>>, vector<1x3x1xf32>
    %42 = vector.shape_cast %41 : vector<1x3x1xf32> to vector<3x1xf32>
    %43 = vector.broadcast %42 : vector<3x1xf32> to vector<3x512xf32>
    %44 = arith.addf %40, %43 : vector<3x512xf32>
    %45 = arith.addf %44, %3 : vector<3x512xf32>
    %46 = vector.extract_strided_slice %2 {offsets = [32, 0], sizes = [32, 512], strides = [1, 1]} : vector<96x512xf32> to vector<32x512xf32>
    %c1 = arith.constant 1 : index
    %c0_24 = arith.constant 0 : index
    %c0_25 = arith.constant 0 : index
    %47 = vector.load %arg4[%c1, %c0_24, %c0_25] : memref<3x32x3xf32, #tpu.memory_space<vmem>>, vector<1x32x3xf32>
    %48 = vector.shape_cast %47 : vector<1x32x3xf32> to vector<32x3xf32>
    %49 = vector.extract_strided_slice %48 {offsets = [0, 0], sizes = [32, 1], strides = [1, 1]} : vector<32x3xf32> to vector<32x1xf32>
    %50 = vector.extract_strided_slice %45 {offsets = [0, 0], sizes = [1, 512], strides = [1, 1]} : vector<3x512xf32> to vector<1x512xf32>
    %51 = vector.broadcast %49 : vector<32x1xf32> to vector<32x512xf32>
    %52 = vector.broadcast %50 : vector<1x512xf32> to vector<32x512xf32>
    %53 = arith.mulf %51, %52 : vector<32x512xf32>
    %54 = vector.extract_strided_slice %48 {offsets = [0, 1], sizes = [32, 1], strides = [1, 1]} : vector<32x3xf32> to vector<32x1xf32>
    %55 = vector.extract_strided_slice %45 {offsets = [1, 0], sizes = [1, 512], strides = [1, 1]} : vector<3x512xf32> to vector<1x512xf32>
    %56 = vector.broadcast %54 : vector<32x1xf32> to vector<32x512xf32>
    %57 = vector.broadcast %55 : vector<1x512xf32> to vector<32x512xf32>
    %58 = arith.mulf %56, %57 : vector<32x512xf32>
    %59 = arith.addf %53, %58 : vector<32x512xf32>
    %60 = vector.extract_strided_slice %48 {offsets = [0, 2], sizes = [32, 1], strides = [1, 1]} : vector<32x3xf32> to vector<32x1xf32>
    %61 = vector.extract_strided_slice %45 {offsets = [2, 0], sizes = [1, 512], strides = [1, 1]} : vector<3x512xf32> to vector<1x512xf32>
    %62 = vector.broadcast %60 : vector<32x1xf32> to vector<32x512xf32>
    %63 = vector.broadcast %61 : vector<1x512xf32> to vector<32x512xf32>
    %64 = arith.mulf %62, %63 : vector<32x512xf32>
    %65 = arith.addf %59, %64 : vector<32x512xf32>
    %66 = arith.addf %46, %65 : vector<32x512xf32>
    %cst_26 = arith.constant 0.000000e+00 : f32
    %67 = vector.broadcast %cst_26 : f32 to vector<32x512xf32>
    %68 = arith.maximumf %66, %67 : vector<32x512xf32>
    %c1_27 = arith.constant 1 : index
    %c0_28 = arith.constant 0 : index
    %c0_29 = arith.constant 0 : index
    %69 = vector.load %arg5[%c1_27, %c0_28, %c0_29] : memref<3x32x32xbf16, #tpu.memory_space<vmem>>, vector<1x32x32xbf16>
    %70 = vector.shape_cast %69 : vector<1x32x32xbf16> to vector<32x32xbf16>
    %71 = arith.truncf %68 : vector<32x512xf32> to vector<32x512xbf16>
    %cst_30 = arith.constant dense<0.000000e+00> : vector<32x512xf32>
    %72 = tpu.matmul %70, %71, %cst_30 {dimension_numbers = #tpu.dot_dimension_numbers<[1], [0], [0], [1], [0, 0, 1, 1], [], []>} : vector<32x32xbf16>, vector<32x512xbf16>, vector<32x512xf32> -> vector<32x512xf32>
    %c1_31 = arith.constant 1 : index
    %c0_32 = arith.constant 0 : index
    %c0_33 = arith.constant 0 : index
    %73 = vector.load %arg6[%c1_31, %c0_32, %c0_33] : memref<3x32x1xf32, #tpu.memory_space<vmem>>, vector<1x32x1xf32>
    %74 = vector.shape_cast %73 : vector<1x32x1xf32> to vector<32x1xf32>
    %75 = vector.broadcast %74 : vector<32x1xf32> to vector<32x512xf32>
    %76 = arith.addf %72, %75 : vector<32x512xf32>
    %cst_34 = arith.constant 0.000000e+00 : f32
    %77 = vector.broadcast %cst_34 : f32 to vector<32x512xf32>
    %78 = arith.maximumf %76, %77 : vector<32x512xf32>
    %c1_35 = arith.constant 1 : index
    %c0_36 = arith.constant 0 : index
    %c0_37 = arith.constant 0 : index
    %79 = vector.load %arg7[%c1_35, %c0_36, %c0_37] : memref<3x3x32xbf16, #tpu.memory_space<vmem>>, vector<1x3x32xbf16>
    %80 = vector.shape_cast %79 : vector<1x3x32xbf16> to vector<3x32xbf16>
    %81 = arith.truncf %78 : vector<32x512xf32> to vector<32x512xbf16>
    %cst_38 = arith.constant dense<0.000000e+00> : vector<3x512xf32>
    %82 = tpu.matmul %80, %81, %cst_38 {dimension_numbers = #tpu.dot_dimension_numbers<[1], [0], [0], [1], [0, 0, 1, 1], [], []>} : vector<3x32xbf16>, vector<32x512xbf16>, vector<3x512xf32> -> vector<3x512xf32>
    %c1_39 = arith.constant 1 : index
    %c0_40 = arith.constant 0 : index
    %c0_41 = arith.constant 0 : index
    %83 = vector.load %arg8[%c1_39, %c0_40, %c0_41] : memref<3x3x1xf32, #tpu.memory_space<vmem>>, vector<1x3x1xf32>
    %84 = vector.shape_cast %83 : vector<1x3x1xf32> to vector<3x1xf32>
    %85 = vector.broadcast %84 : vector<3x1xf32> to vector<3x512xf32>
    %86 = arith.addf %82, %85 : vector<3x512xf32>
    %87 = arith.addf %86, %45 : vector<3x512xf32>
    %88 = vector.extract_strided_slice %2 {offsets = [64, 0], sizes = [32, 512], strides = [1, 1]} : vector<96x512xf32> to vector<32x512xf32>
    %c2 = arith.constant 2 : index
    %c0_42 = arith.constant 0 : index
    %c0_43 = arith.constant 0 : index
    %89 = vector.load %arg4[%c2, %c0_42, %c0_43] : memref<3x32x3xf32, #tpu.memory_space<vmem>>, vector<1x32x3xf32>
    %90 = vector.shape_cast %89 : vector<1x32x3xf32> to vector<32x3xf32>
    %91 = vector.extract_strided_slice %90 {offsets = [0, 0], sizes = [32, 1], strides = [1, 1]} : vector<32x3xf32> to vector<32x1xf32>
    %92 = vector.extract_strided_slice %87 {offsets = [0, 0], sizes = [1, 512], strides = [1, 1]} : vector<3x512xf32> to vector<1x512xf32>
    %93 = vector.broadcast %91 : vector<32x1xf32> to vector<32x512xf32>
    %94 = vector.broadcast %92 : vector<1x512xf32> to vector<32x512xf32>
    %95 = arith.mulf %93, %94 : vector<32x512xf32>
    %96 = vector.extract_strided_slice %90 {offsets = [0, 1], sizes = [32, 1], strides = [1, 1]} : vector<32x3xf32> to vector<32x1xf32>
    %97 = vector.extract_strided_slice %87 {offsets = [1, 0], sizes = [1, 512], strides = [1, 1]} : vector<3x512xf32> to vector<1x512xf32>
    %98 = vector.broadcast %96 : vector<32x1xf32> to vector<32x512xf32>
    %99 = vector.broadcast %97 : vector<1x512xf32> to vector<32x512xf32>
    %100 = arith.mulf %98, %99 : vector<32x512xf32>
    %101 = arith.addf %95, %100 : vector<32x512xf32>
    %102 = vector.extract_strided_slice %90 {offsets = [0, 2], sizes = [32, 1], strides = [1, 1]} : vector<32x3xf32> to vector<32x1xf32>
    %103 = vector.extract_strided_slice %87 {offsets = [2, 0], sizes = [1, 512], strides = [1, 1]} : vector<3x512xf32> to vector<1x512xf32>
    %104 = vector.broadcast %102 : vector<32x1xf32> to vector<32x512xf32>
    %105 = vector.broadcast %103 : vector<1x512xf32> to vector<32x512xf32>
    %106 = arith.mulf %104, %105 : vector<32x512xf32>
    %107 = arith.addf %101, %106 : vector<32x512xf32>
    %108 = arith.addf %88, %107 : vector<32x512xf32>
    %cst_44 = arith.constant 0.000000e+00 : f32
    %109 = vector.broadcast %cst_44 : f32 to vector<32x512xf32>
    %110 = arith.maximumf %108, %109 : vector<32x512xf32>
    %c2_45 = arith.constant 2 : index
    %c0_46 = arith.constant 0 : index
    %c0_47 = arith.constant 0 : index
    %111 = vector.load %arg5[%c2_45, %c0_46, %c0_47] : memref<3x32x32xbf16, #tpu.memory_space<vmem>>, vector<1x32x32xbf16>
    %112 = vector.shape_cast %111 : vector<1x32x32xbf16> to vector<32x32xbf16>
    %113 = arith.truncf %110 : vector<32x512xf32> to vector<32x512xbf16>
    %cst_48 = arith.constant dense<0.000000e+00> : vector<32x512xf32>
    %114 = tpu.matmul %112, %113, %cst_48 {dimension_numbers = #tpu.dot_dimension_numbers<[1], [0], [0], [1], [0, 0, 1, 1], [], []>} : vector<32x32xbf16>, vector<32x512xbf16>, vector<32x512xf32> -> vector<32x512xf32>
    %c2_49 = arith.constant 2 : index
    %c0_50 = arith.constant 0 : index
    %c0_51 = arith.constant 0 : index
    %115 = vector.load %arg6[%c2_49, %c0_50, %c0_51] : memref<3x32x1xf32, #tpu.memory_space<vmem>>, vector<1x32x1xf32>
    %116 = vector.shape_cast %115 : vector<1x32x1xf32> to vector<32x1xf32>
    %117 = vector.broadcast %116 : vector<32x1xf32> to vector<32x512xf32>
    %118 = arith.addf %114, %117 : vector<32x512xf32>
    %cst_52 = arith.constant 0.000000e+00 : f32
    %119 = vector.broadcast %cst_52 : f32 to vector<32x512xf32>
    %120 = arith.maximumf %118, %119 : vector<32x512xf32>
    %c2_53 = arith.constant 2 : index
    %c0_54 = arith.constant 0 : index
    %c0_55 = arith.constant 0 : index
    %121 = vector.load %arg7[%c2_53, %c0_54, %c0_55] : memref<3x3x32xbf16, #tpu.memory_space<vmem>>, vector<1x3x32xbf16>
    %122 = vector.shape_cast %121 : vector<1x3x32xbf16> to vector<3x32xbf16>
    %123 = arith.truncf %120 : vector<32x512xf32> to vector<32x512xbf16>
    %cst_56 = arith.constant dense<0.000000e+00> : vector<3x512xf32>
    %124 = tpu.matmul %122, %123, %cst_56 {dimension_numbers = #tpu.dot_dimension_numbers<[1], [0], [0], [1], [0, 0, 1, 1], [], []>} : vector<3x32xbf16>, vector<32x512xbf16>, vector<3x512xf32> -> vector<3x512xf32>
    %c2_57 = arith.constant 2 : index
    %c0_58 = arith.constant 0 : index
    %c0_59 = arith.constant 0 : index
    %125 = vector.load %arg8[%c2_57, %c0_58, %c0_59] : memref<3x3x1xf32, #tpu.memory_space<vmem>>, vector<1x3x1xf32>
    %126 = vector.shape_cast %125 : vector<1x3x1xf32> to vector<3x1xf32>
    %127 = vector.broadcast %126 : vector<3x1xf32> to vector<3x512xf32>
    %128 = arith.addf %124, %127 : vector<3x512xf32>
    %cst_60 = arith.constant 2.000000e+02 : f32
    %129 = vector.broadcast %cst_60 : f32 to vector<3x512xf32>
    %130 = arith.mulf %129, %128 : vector<3x512xf32>
    %c0_61 = arith.constant 0 : index
    %c0_62 = arith.constant 0 : index
    %131 = vector.load %arg9[%c0_61, %c0_62] : memref<3x512xf32, #tpu.memory_space<vmem>>, vector<3x512xf32>
    tpu.vector_store %arg9[%c0_61, %c0_62], %130 {strides = array<i32>} : memref<3x512xf32, #tpu.memory_space<vmem>>, vector<3x512xf32>,
    return
  }
  func.func @transform_0(%arg0: i32) -> (i32, i32) {
    %c0_i32 = arith.constant 0 : i32
    %c0_i32_0 = arith.constant 0 : i32
    return %c0_i32, %arg0 : i32, i32
  }
  func.func @transform_1(%arg0: i32) -> (i32, i32) {
    %c0_i32 = arith.constant 0 : i32
    %c0_i32_0 = arith.constant 0 : i32
    return %c0_i32, %arg0 : i32, i32
  }
  func.func @transform_2(%arg0: i32) -> (i32, i32) {
    %c0_i32 = arith.constant 0 : i32
    %c0_i32_0 = arith.constant 0 : i32
    %c0_i32_1 = arith.constant 0 : i32
    return %c0_i32, %c0_i32_0 : i32, i32
  }
  func.func @transform_3(%arg0: i32) -> (i32, i32, i32) {
    %c0_i32 = arith.constant 0 : i32
    %c0_i32_0 = arith.constant 0 : i32
    %c0_i32_1 = arith.constant 0 : i32
    %c0_i32_2 = arith.constant 0 : i32
    return %c0_i32, %c0_i32_0, %c0_i32_1 : i32, i32, i32
  }
  func.func @transform_4(%arg0: i32) -> (i32, i32, i32) {
    %c0_i32 = arith.constant 0 : i32
    %c0_i32_0 = arith.constant 0 : i32
    %c0_i32_1 = arith.constant 0 : i32
    %c0_i32_2 = arith.constant 0 : i32
    return %c0_i32, %c0_i32_0, %c0_i32_1 : i32, i32, i32
  }
  func.func @transform_5(%arg0: i32) -> (i32, i32, i32) {
    %c0_i32 = arith.constant 0 : i32
    %c0_i32_0 = arith.constant 0 : i32
    %c0_i32_1 = arith.constant 0 : i32
    %c0_i32_2 = arith.constant 0 : i32
    return %c0_i32, %c0_i32_0, %c0_i32_1 : i32, i32, i32
  }
  func.func @transform_6(%arg0: i32) -> (i32, i32, i32) {
    %c0_i32 = arith.constant 0 : i32
    %c0_i32_0 = arith.constant 0 : i32
    %c0_i32_1 = arith.constant 0 : i32
    %c0_i32_2 = arith.constant 0 : i32
    return %c0_i32, %c0_i32_0, %c0_i32_1 : i32, i32, i32
  }
  func.func @transform_7(%arg0: i32) -> (i32, i32, i32) {
    %c0_i32 = arith.constant 0 : i32
    %c0_i32_0 = arith.constant 0 : i32
    %c0_i32_1 = arith.constant 0 : i32
    %c0_i32_2 = arith.constant 0 : i32
    return %c0_i32, %c0_i32_0, %c0_i32_1 : i32, i32, i32
  }
  func.func @transform_8(%arg0: i32) -> (i32, i32) {
    %c0_i32 = arith.constant 0 : i32
    %c0_i32_0 = arith.constant 0 : i32
    return %c0_i32, %arg0 : i32, i32
  }
}

module attributes {stable_mosaic.version = 11 : i64} {
  func.func @_point_gen_kernel(%arg0: i32, %arg1: memref<8x512xf32, #tpu.memory_space<vmem>>, %arg2: memref<128x512xbf16, #tpu.memory_space<vmem>>, %arg3: memref<96x128xbf16, #tpu.memory_space<vmem>>, %arg4: memref<3x32x3xf32, #tpu.memory_space<vmem>>, %arg5: memref<3x32x32xbf16, #tpu.memory_space<vmem>>, %arg6: memref<3x32x1xf32, #tpu.memory_space<vmem>>, %arg7: memref<3x3x32xbf16, #tpu.memory_space<vmem>>, %arg8: memref<3x3x1xf32, #tpu.memory_space<vmem>>, %arg9: memref<3x512xf32, #tpu.memory_space<vmem>>) attributes {dimension_semantics = [#tpu.dimension_semantics<parallel>], iteration_bounds = array<i64: 4>, scalar_prefetch = 0 : i64, scratch_operands = 0 : i64, tpu.core_type = #tpu.core_type<tc>, window_params = [{transform_indices = @transform_0, window_bounds = array<i64: 8, 512>}, {transform_indices = @transform_1, window_bounds = array<i64: 128, 512>}, {pipeline_mode = #tpu.pipeline_mode<synchronous>, transform_indices = @transform_2, window_bounds = array<i64: 96, 128>}, {pipeline_mode = #tpu.pipeline_mode<synchronous>, transform_indices = @transform_3, window_bounds = array<i64: 3, 32, 3>}, {pipeline_mode = #tpu.pipeline_mode<synchronous>, transform_indices = @transform_4, window_bounds = array<i64: 3, 32, 32>}, {pipeline_mode = #tpu.pipeline_mode<synchronous>, transform_indices = @transform_5, window_bounds = array<i64: 3, 32, 1>}, {pipeline_mode = #tpu.pipeline_mode<synchronous>, transform_indices = @transform_6, window_bounds = array<i64: 3, 3, 32>}, {pipeline_mode = #tpu.pipeline_mode<synchronous>, transform_indices = @transform_7, window_bounds = array<i64: 3, 3, 1>}, {transform_indices = @transform_8, window_bounds = array<i64: 3, 512>}]} {
    %c0 = arith.constant 0 : index
    %c0_0 = arith.constant 0 : index
    %0 = vector.load %arg3[%c0, %c0_0] : memref<96x128xbf16, #tpu.memory_space<vmem>>, vector<96x128xbf16>
    %c0_1 = arith.constant 0 : index
    %c0_2 = arith.constant 0 : index
    %1 = vector.load %arg2[%c0_1, %c0_2] : memref<128x512xbf16, #tpu.memory_space<vmem>>, vector<128x512xbf16>
    %cst = arith.constant dense<0.000000e+00> : vector<96x512xf32>
    %2 = tpu.matmul %0, %1, %cst {dimension_numbers = #tpu.dot_dimension_numbers<[1], [0], [0], [1], [0, 0, 1, 1], [], []>} : vector<96x128xbf16>, vector<128x512xbf16>, vector<96x512xf32> -> vector<96x512xf32>
    %c0_3 = arith.constant 0 : index
    %c0_4 = arith.constant 0 : index
    %3 = vector.load %arg1[%c0_3, %c0_4] : memref<8x512xf32, #tpu.memory_space<vmem>>, vector<3x512xf32>
    %4 = vector.extract_strided_slice %2 {offsets = [0, 0], sizes = [32, 512], strides = [1, 1]} : vector<96x512xf32> to vector<32x512xf32>
    %c0_5 = arith.constant 0 : index
    %c0_6 = arith.constant 0 : index
    %c0_7 = arith.constant 0 : index
    %5 = vector.load %arg4[%c0_5, %c0_6, %c0_7] : memref<3x32x3xf32, #tpu.memory_space<vmem>>, vector<1x32x3xf32>
    %6 = vector.shape_cast %5 : vector<1x32x3xf32> to vector<32x3xf32>
    %7 = vector.extract_strided_slice %6 {offsets = [0, 0], sizes = [32, 1], strides = [1, 1]} : vector<32x3xf32> to vector<32x1xf32>
    %8 = vector.extract_strided_slice %3 {offsets = [0, 0], sizes = [1, 512], strides = [1, 1]} : vector<3x512xf32> to vector<1x512xf32>
    %9 = vector.broadcast %7 : vector<32x1xf32> to vector<32x512xf32>
    %10 = vector.broadcast %8 : vector<1x512xf32> to vector<32x512xf32>
    %11 = arith.mulf %9, %10 : vector<32x512xf32>
    %12 = vector.extract_strided_slice %6 {offsets = [0, 1], sizes = [32, 1], strides = [1, 1]} : vector<32x3xf32> to vector<32x1xf32>
    %13 = vector.extract_strided_slice %3 {offsets = [1, 0], sizes = [1, 512], strides = [1, 1]} : vector<3x512xf32> to vector<1x512xf32>
    %14 = vector.broadcast %12 : vector<32x1xf32> to vector<32x512xf32>
    %15 = vector.broadcast %13 : vector<1x512xf32> to vector<32x512xf32>
    %16 = arith.mulf %14, %15 : vector<32x512xf32>
    %17 = arith.addf %11, %16 : vector<32x512xf32>
    %18 = vector.extract_strided_slice %6 {offsets = [0, 2], sizes = [32, 1], strides = [1, 1]} : vector<32x3xf32> to vector<32x1xf32>
    %19 = vector.extract_strided_slice %3 {offsets = [2, 0], sizes = [1, 512], strides = [1, 1]} : vector<3x512xf32> to vector<1x512xf32>
    %20 = vector.broadcast %18 : vector<32x1xf32> to vector<32x512xf32>
    %21 = vector.broadcast %19 : vector<1x512xf32> to vector<32x512xf32>
    %22 = arith.mulf %20, %21 : vector<32x512xf32>
    %23 = arith.addf %17, %22 : vector<32x512xf32>
    %24 = arith.addf %4, %23 : vector<32x512xf32>
    %cst_8 = arith.constant 0.000000e+00 : f32
    %25 = vector.broadcast %cst_8 : f32 to vector<32x512xf32>
    %26 = arith.maximumf %24, %25 : vector<32x512xf32>
    %c0_9 = arith.constant 0 : index
    %c0_10 = arith.constant 0 : index
    %c0_11 = arith.constant 0 : index
    %27 = vector.load %arg5[%c0_9, %c0_10, %c0_11] : memref<3x32x32xbf16, #tpu.memory_space<vmem>>, vector<1x32x32xbf16>
    %28 = vector.shape_cast %27 : vector<1x32x32xbf16> to vector<32x32xbf16>
    %29 = arith.truncf %26 : vector<32x512xf32> to vector<32x512xbf16>
    %cst_12 = arith.constant dense<0.000000e+00> : vector<32x512xf32>
    %30 = tpu.matmul %28, %29, %cst_12 {dimension_numbers = #tpu.dot_dimension_numbers<[1], [0], [0], [1], [0, 0, 1, 1], [], []>} : vector<32x32xbf16>, vector<32x512xbf16>, vector<32x512xf32> -> vector<32x512xf32>
    %c0_13 = arith.constant 0 : index
    %c0_14 = arith.constant 0 : index
    %c0_15 = arith.constant 0 : index
    %31 = vector.load %arg6[%c0_13, %c0_14, %c0_15] : memref<3x32x1xf32, #tpu.memory_space<vmem>>, vector<1x32x1xf32>
    %32 = vector.shape_cast %31 : vector<1x32x1xf32> to vector<32x1xf32>
    %33 = vector.broadcast %32 : vector<32x1xf32> to vector<32x512xf32>
    %34 = arith.addf %30, %33 : vector<32x512xf32>
    %cst_16 = arith.constant 0.000000e+00 : f32
    %35 = vector.broadcast %cst_16 : f32 to vector<32x512xf32>
    %36 = arith.maximumf %34, %35 : vector<32x512xf32>
    %c0_17 = arith.constant 0 : index
    %c0_18 = arith.constant 0 : index
    %c0_19 = arith.constant 0 : index
    %37 = vector.load %arg7[%c0_17, %c0_18, %c0_19] : memref<3x3x32xbf16, #tpu.memory_space<vmem>>, vector<1x3x32xbf16>
    %38 = vector.shape_cast %37 : vector<1x3x32xbf16> to vector<3x32xbf16>
    %39 = arith.truncf %36 : vector<32x512xf32> to vector<32x512xbf16>
    %cst_20 = arith.constant dense<0.000000e+00> : vector<3x512xf32>
    %40 = tpu.matmul %38, %39, %cst_20 {dimension_numbers = #tpu.dot_dimension_numbers<[1], [0], [0], [1], [0, 0, 1, 1], [], []>} : vector<3x32xbf16>, vector<32x512xbf16>, vector<3x512xf32> -> vector<3x512xf32>
    %c0_21 = arith.constant 0 : index
    %c0_22 = arith.constant 0 : index
    %c0_23 = arith.constant 0 : index
    %41 = vector.load %arg8[%c0_21, %c0_22, %c0_23] : memref<3x3x1xf32, #tpu.memory_space<vmem>>, vector<1x3x1xf32>
    %42 = vector.shape_cast %41 : vector<1x3x1xf32> to vector<3x1xf32>
    %43 = vector.broadcast %42 : vector<3x1xf32> to vector<3x512xf32>
    %44 = arith.addf %40, %43 : vector<3x512xf32>
    %45 = arith.addf %44, %3 : vector<3x512xf32>
    %46 = vector.extract_strided_slice %2 {offsets = [32, 0], sizes = [32, 512], strides = [1, 1]} : vector<96x512xf32> to vector<32x512xf32>
    %c1 = arith.constant 1 : index
    %c0_24 = arith.constant 0 : index
    %c0_25 = arith.constant 0 : index
    %47 = vector.load %arg4[%c1, %c0_24, %c0_25] : memref<3x32x3xf32, #tpu.memory_space<vmem>>, vector<1x32x3xf32>
    %48 = vector.shape_cast %47 : vector<1x32x3xf32> to vector<32x3xf32>
    %49 = vector.extract_strided_slice %48 {offsets = [0, 0], sizes = [32, 1], strides = [1, 1]} : vector<32x3xf32> to vector<32x1xf32>
    %50 = vector.extract_strided_slice %45 {offsets = [0, 0], sizes = [1, 512], strides = [1, 1]} : vector<3x512xf32> to vector<1x512xf32>
    %51 = vector.broadcast %49 : vector<32x1xf32> to vector<32x512xf32>
    %52 = vector.broadcast %50 : vector<1x512xf32> to vector<32x512xf32>
    %53 = arith.mulf %51, %52 : vector<32x512xf32>
    %54 = vector.extract_strided_slice %48 {offsets = [0, 1], sizes = [32, 1], strides = [1, 1]} : vector<32x3xf32> to vector<32x1xf32>
    %55 = vector.extract_strided_slice %45 {offsets = [1, 0], sizes = [1, 512], strides = [1, 1]} : vector<3x512xf32> to vector<1x512xf32>
    %56 = vector.broadcast %54 : vector<32x1xf32> to vector<32x512xf32>
    %57 = vector.broadcast %55 : vector<1x512xf32> to vector<32x512xf32>
    %58 = arith.mulf %56, %57 : vector<32x512xf32>
    %59 = arith.addf %53, %58 : vector<32x512xf32>
    %60 = vector.extract_strided_slice %48 {offsets = [0, 2], sizes = [32, 1], strides = [1, 1]} : vector<32x3xf32> to vector<32x1xf32>
    %61 = vector.extract_strided_slice %45 {offsets = [2, 0], sizes = [1, 512], strides = [1, 1]} : vector<3x512xf32> to vector<1x512xf32>
    %62 = vector.broadcast %60 : vector<32x1xf32> to vector<32x512xf32>
    %63 = vector.broadcast %61 : vector<1x512xf32> to vector<32x512xf32>
    %64 = arith.mulf %62, %63 : vector<32x512xf32>
    %65 = arith.addf %59, %64 : vector<32x512xf32>
    %66 = arith.addf %46, %65 : vector<32x512xf32>
    %cst_26 = arith.constant 0.000000e+00 : f32
    %67 = vector.broadcast %cst_26 : f32 to vector<32x512xf32>
    %68 = arith.maximumf %66, %67 : vector<32x512xf32>
    %c1_27 = arith.constant 1 : index
    %c0_28 = arith.constant 0 : index
    %c0_29 = arith.constant 0 : index
    %69 = vector.load %arg5[%c1_27, %c0_28, %c0_29] : memref<3x32x32xbf16, #tpu.memory_space<vmem>>, vector<1x32x32xbf16>
    %70 = vector.shape_cast %69 : vector<1x32x32xbf16> to vector<32x32xbf16>
    %71 = arith.truncf %68 : vector<32x512xf32> to vector<32x512xbf16>
    %cst_30 = arith.constant dense<0.000000e+00> : vector<32x512xf32>
    %72 = tpu.matmul %70, %71, %cst_30 {dimension_numbers = #tpu.dot_dimension_numbers<[1], [0], [0], [1], [0, 0, 1, 1], [], []>} : vector<32x32xbf16>, vector<32x512xbf16>, vector<32x512xf32> -> vector<32x512xf32>
    %c1_31 = arith.constant 1 : index
    %c0_32 = arith.constant 0 : index
    %c0_33 = arith.constant 0 : index
    %73 = vector.load %arg6[%c1_31, %c0_32, %c0_33] : memref<3x32x1xf32, #tpu.memory_space<vmem>>, vector<1x32x1xf32>
    %74 = vector.shape_cast %73 : vector<1x32x1xf32> to vector<32x1xf32>
    %75 = vector.broadcast %74 : vector<32x1xf32> to vector<32x512xf32>
    %76 = arith.addf %72, %75 : vector<32x512xf32>
    %cst_34 = arith.constant 0.000000e+00 : f32
    %77 = vector.broadcast %cst_34 : f32 to vector<32x512xf32>
    %78 = arith.maximumf %76, %77 : vector<32x512xf32>
    %c1_35 = arith.constant 1 : index
    %c0_36 = arith.constant 0 : index
    %c0_37 = arith.constant 0 : index
    %79 = vector.load %arg7[%c1_35, %c0_36, %c0_37] : memref<3x3x32xbf16, #tpu.memory_space<vmem>>, vector<1x3x32xbf16>
    %80 = vector.shape_cast %79 : vector<1x3x32xbf16> to vector<3x32xbf16>
    %81 = arith.truncf %78 : vector<32x512xf32> to vector<32x512xbf16>
    %cst_38 = arith.constant dense<0.000000e+00> : vector<3x512xf32>
    %82 = tpu.matmul %80, %81, %cst_38 {dimension_numbers = #tpu.dot_dimension_numbers<[1], [0], [0], [1], [0, 0, 1, 1], [], []>} : vector<3x32xbf16>, vector<32x512xbf16>, vector<3x512xf32> -> vector<3x512xf32>
    %c1_39 = arith.constant 1 : index
    %c0_40 = arith.constant 0 : index
    %c0_41 = arith.constant 0 : index
    %83 = vector.load %arg8[%c1_39, %c0_40, %c0_41] : memref<3x3x1xf32, #tpu.memory_space<vmem>>, vector<1x3x1xf32>
    %84 = vector.shape_cast %83 : vector<1x3x1xf32> to vector<3x1xf32>
    %85 = vector.broadcast %84 : vector<3x1xf32> to vector<3x512xf32>
    %86 = arith.addf %82, %85 : vector<3x512xf32>
    %87 = arith.addf %86, %45 : vector<3x512xf32>
    %88 = vector.extract_strided_slice %2 {offsets = [64, 0], sizes = [32, 512], strides = [1, 1]} : vector<96x512xf32> to vector<32x512xf32>
    %c2 = arith.constant 2 : index
    %c0_42 = arith.constant 0 : index
    %c0_43 = arith.constant 0 : index
    %89 = vector.load %arg4[%c2, %c0_42, %c0_43] : memref<3x32x3xf32, #tpu.memory_space<vmem>>, vector<1x32x3xf32>
    %90 = vector.shape_cast %89 : vector<1x32x3xf32> to vector<32x3xf32>
    %91 = vector.extract_strided_slice %90 {offsets = [0, 0], sizes = [32, 1], strides = [1, 1]} : vector<32x3xf32> to vector<32x1xf32>
    %92 = vector.extract_strided_slice %87 {offsets = [0, 0], sizes = [1, 512], strides = [1, 1]} : vector<3x512xf32> to vector<1x512xf32>
    %93 = vector.broadcast %91 : vector<32x1xf32> to vector<32x512xf32>
    %94 = vector.broadcast %92 : vector<1x512xf32> to vector<32x512xf32>
    %95 = arith.mulf %93, %94 : vector<32x512xf32>
    %96 = vector.extract_strided_slice %90 {offsets = [0, 1], sizes = [32, 1], strides = [1, 1]} : vector<32x3xf32> to vector<32x1xf32>
    %97 = vector.extract_strided_slice %87 {offsets = [1, 0], sizes = [1, 512], strides = [1, 1]} : vector<3x512xf32> to vector<1x512xf32>
    %98 = vector.broadcast %96 : vector<32x1xf32> to vector<32x512xf32>
    %99 = vector.broadcast %97 : vector<1x512xf32> to vector<32x512xf32>
    %100 = arith.mulf %98, %99 : vector<32x512xf32>
    %101 = arith.addf %95, %100 : vector<32x512xf32>
    %102 = vector.extract_strided_slice %90 {offsets = [0, 2], sizes = [32, 1], strides = [1, 1]} : vector<32x3xf32> to vector<32x1xf32>
    %103 = vector.extract_strided_slice %87 {offsets = [2, 0], sizes = [1, 512], strides = [1, 1]} : vector<3x512xf32> to vector<1x512xf32>
    %104 = vector.broadcast %102 : vector<32x1xf32> to vector<32x512xf32>
    %105 = vector.broadcast %103 : vector<1x512xf32> to vector<32x512xf32>
    %106 = arith.mulf %104, %105 : vector<32x512xf32>
    %107 = arith.addf %101, %106 : vector<32x512xf32>
    %108 = arith.addf %88, %107 : vector<32x512xf32>
    %cst_44 = arith.constant 0.000000e+00 : f32
    %109 = vector.broadcast %cst_44 : f32 to vector<32x512xf32>
    %110 = arith.maximumf %108, %109 : vector<32x512xf32>
    %c2_45 = arith.constant 2 : index
    %c0_46 = arith.constant 0 : index
    %c0_47 = arith.constant 0 : index
    %111 = vector.load %arg5[%c2_45, %c0_46, %c0_47] : memref<3x32x32xbf16, #tpu.memory_space<vmem>>, vector<1x32x32xbf16>
    %112 = vector.shape_cast %111 : vector<1x32x32xbf16> to vector<32x32xbf16>
    %113 = arith.truncf %110 : vector<32x512xf32> to vector<32x512xbf16>
    %cst_48 = arith.constant dense<0.000000e+00> : vector<32x512xf32>
    %114 = tpu.matmul %112, %113, %cst_48 {dimension_numbers = #tpu.dot_dimension_numbers<[1], [0], [0], [1], [0, 0, 1, 1], [], []>} : vector<32x32xbf16>, vector<32x512xbf16>, vector<32x512xf32> -> vector<32x512xf32>
    %c2_49 = arith.constant 2 : index
    %c0_50 = arith.constant 0 : index
    %c0_51 = arith.constant 0 : index
    %115 = vector.load %arg6[%c2_49, %c0_50, %c0_51] : memref<3x32x1xf32, #tpu.memory_space<vmem>>, vector<1x32x1xf32>
    %116 = vector.shape_cast %115 : vector<1x32x1xf32> to vector<32x1xf32>
    %117 = vector.broadcast %116 : vector<32x1xf32> to vector<32x512xf32>
    %118 = arith.addf %114, %117 : vector<32x512xf32>
    %cst_52 = arith.constant 0.000000e+00 : f32
    %119 = vector.broadcast %cst_52 : f32 to vector<32x512xf32>
    %120 = arith.maximumf %118, %119 : vector<32x512xf32>
    %c2_53 = arith.constant 2 : index
    %c0_54 = arith.constant 0 : index
    %c0_55 = arith.constant 0 : index
    %121 = vector.load %arg7[%c2_53, %c0_54, %c0_55] : memref<3x3x32xbf16, #tpu.memory_space<vmem>>, vector<1x3x32xbf16>
    %122 = vector.shape_cast %121 : vector<1x3x32xbf16> to vector<3x32xbf16>
    %123 = arith.truncf %120 : vector<32x512xf32> to vector<32x512xbf16>
    %cst_56 = arith.constant dense<0.000000e+00> : vector<3x512xf32>
    %124 = tpu.matmul %122, %123, %cst_56 {dimension_numbers = #tpu.dot_dimension_numbers<[1], [0], [0], [1], [0, 0, 1, 1], [], []>} : vector<3x32xbf16>, vector<32x512xbf16>, vector<3x512xf32> -> vector<3x512xf32>
    %c2_57 = arith.constant 2 : index
    %c0_58 = arith.constant 0 : index
    %c0_59 = arith.constant 0 : index
    %125 = vector.load %arg8[%c2_57, %c0_58, %c0_59] : memref<3x3x1xf32, #tpu.memory_space<vmem>>, vector<1x3x1xf32>
    %126 = vector.shape_cast %125 : vector<1x3x1xf32> to vector<3x1xf32>
    %127 = vector.broadcast %126 : vector<3x1xf32> to vector<3x512xf32>
    %128 = arith.addf %124, %127 : vector<3x512xf32>
    %cst_60 = arith.constant 2.000000e+02 : f32
    %129 = vector.broadcast %cst_60 : f32 to vector<3x512xf32>
    %130 = arith.mulf %129, %128 : vector<3x512xf32>
    %c0_61 = arith.constant 0 : index
    %c0_62 = arith.constant 0 : index
    %131 = vector.load %arg9[%c0_61, %c0_62] : memref<3x512xf32, #tpu.memory_space<vmem>>, vector<3x512xf32>
    tpu.vector_store %arg9[%c0_61, %c0_62], %130 {strides = array<i32>} : memref<3x512xf32, #tpu.memory_space<vmem>>, vector<3x512xf32>,
    return
  }
  func.func @transform_0(%arg0: i32) -> (i32, i32) {
    %c0_i32 = arith.constant 0 : i32
    %c0_i32_0 = arith.constant 0 : i32
    return %c0_i32, %arg0 : i32, i32
  }
  func.func @transform_1(%arg0: i32) -> (i32, i32) {
    %c0_i32 = arith.constant 0 : i32
    %c0_i32_0 = arith.constant 0 : i32
    return %c0_i32, %arg0 : i32, i32
  }
  func.func @transform_2(%arg0: i32) -> (i32, i32) {
    %c0_i32 = arith.constant 0 : i32
    %c0_i32_0 = arith.constant 0 : i32
    %c0_i32_1 = arith.constant 0 : i32
    return %c0_i32, %c0_i32_0 : i32, i32
  }
  func.func @transform_3(%arg0: i32) -> (i32, i32, i32) {
    %c0_i32 = arith.constant 0 : i32
    %c0_i32_0 = arith.constant 0 : i32
    %c0_i32_1 = arith.constant 0 : i32
    %c0_i32_2 = arith.constant 0 : i32
    return %c0_i32, %c0_i32_0, %c0_i32_1 : i32, i32, i32
  }
  func.func @transform_4(%arg0: i32) -> (i32, i32, i32) {
    %c0_i32 = arith.constant 0 : i32
    %c0_i32_0 = arith.constant 0 : i32
    %c0_i32_1 = arith.constant 0 : i32
    %c0_i32_2 = arith.constant 0 : i32
    return %c0_i32, %c0_i32_0, %c0_i32_1 : i32, i32, i32
  }
  func.func @transform_5(%arg0: i32) -> (i32, i32, i32) {
    %c0_i32 = arith.constant 0 : i32
    %c0_i32_0 = arith.constant 0 : i32
    %c0_i32_1 = arith.constant 0 : i32
    %c0_i32_2 = arith.constant 0 : i32
    return %c0_i32, %c0_i32_0, %c0_i32_1 : i32, i32, i32
  }
  func.func @transform_6(%arg0: i32) -> (i32, i32, i32) {
    %c0_i32 = arith.constant 0 : i32
    %c0_i32_0 = arith.constant 0 : i32
    %c0_i32_1 = arith.constant 0 : i32
    %c0_i32_2 = arith.constant 0 : i32
    return %c0_i32, %c0_i32_0, %c0_i32_1 : i32, i32, i32
  }
  func.func @transform_7(%arg0: i32) -> (i32, i32, i32) {
    %c0_i32 = arith.constant 0 : i32
    %c0_i32_0 = arith.constant 0 : i32
    %c0_i32_1 = arith.constant 0 : i32
    %c0_i32_2 = arith.constant 0 : i32
    return %c0_i32, %c0_i32_0, %c0_i32_1 : i32, i32, i32
  }
  func.func @transform_8(%arg0: i32) -> (i32, i32) {
    %c0_i32 = arith.constant 0 : i32
    %c0_i32_0 = arith.constant 0 : i32
    return %c0_i32, %arg0 : i32, i32
  }
}

</mosaic_0001>

<llo_original>
// kernel: tpu_custom_call.1
$region0: #{tpu_custom_call.1}
  #allocation0 [shape = 'u32[]', space=smem, size = 0x4, offset = 0x4, fixed_abs, tag = 'smem constant byte address 0x4 - core index']
  #allocation1 [shape = 'u32[72,128]{1,0:T(1,128)}', space=vmem, size = 0x9000, scoped, tag = 'internal scratch']
  %s0 = inlined_call_operand.vmem [shape: f32[8,2048], index: 0, kind: input, shape index: {}]
  %s1 = inlined_call_operand.hbm [shape: bf16[128,2048], index: 1, kind: input, shape index: {}]
  %s2 = inlined_call_operand.vmem [shape: bf16[96,128], index: 2, kind: input, shape index: {}]
  %s3 = inlined_call_operand.vmem [shape: f32[3,32,3], index: 3, kind: input, shape index: {}]
  %s4 = inlined_call_operand.hbm [shape: bf16[3,32,32], index: 4, kind: input, shape index: {}]
  %s5 = inlined_call_operand.vmem [shape: f32[3,32,1], index: 5, kind: input, shape index: {}]
  %s6 = inlined_call_operand.vmem [shape: bf16[3,3,32], index: 6, kind: input, shape index: {}]
  %s7 = inlined_call_operand.vmem [shape: f32[3,3,1], index: 7, kind: input, shape index: {}]
  %s8 = inlined_call_operand.hbm [shape: f32[3,2048], index: 8, kind: output, shape index: {}]
  %s9 = sld [smem:[#allocation0]]
  $region73: #{tpu_custom_call.1} parent=0
    _
  %s11 = ssub.s32 1, %s9
  %s12 = scalar_select 0, %s11, %s9
  $region1: #{tpu_custom_call.1} parent=0
    #allocation2 [shape = 'u8[262144]{0}', space=vmem, size = 0x40000, scoped, tag = 'input window, operand 1']
    #allocation3 [shape = 's32[2]{0}', space=sflag, size = 0x8, scoped, tag = 'scoped memory for tpu_custom_call.1']
    #allocation4 [shape = 's32[2]{0}', space=sflag, size = 0x8, scoped, tag = 'scoped memory for tpu_custom_call.1']
    #allocation5 [shape = 'u8[24576]{0}', space=vmem, size = 0x6000, scoped, tag = 'input window, operand 4, single buffered']
    #allocation6 [shape = 's32[1]{0}', space=sflag, size = 0x4, scoped, tag = 'scoped memory for tpu_custom_call.1']
    #allocation7 [shape = 'u8[16384]{0}', space=vmem, size = 0x4000, scoped, tag = 'output window, operand 0']
    %13 = vsyncpa [#allocation3], 0
    %s14 = scalar_lea.sflag [#allocation3], 1
    %15 = vsyncpa %s14, 0
    %16 = vsyncpa [#allocation6], 0
    %17 = vsyncpa [#allocation4], 0
    %s18 = scalar_lea.sflag [#allocation4], 1
    %19 = vsyncpa %s18, 0
    loop: start=0, step=1, limit=6
    $region2: #{tpu_custom_call.1} parent=1 // loop_pre_header
      _
    $region3: #{tpu_custom_call.1} parent=1 // loop_header
      %s21 = sphi 0, %s25
      %p22 = scmp.ge.s32.totalorder %s21, 6
      %s31 = sphi 0, %s33
      %s34 = sphi 0, %s31
      %s35 = sphi 0, %s34
      %s51 = sphi 0, %s35
      %s57 = sphi 0, %s59
      %s60 = sphi 0, %s57
      %s61 = sphi 0, %s60
      %s77 = sphi 0, %s61
      %s81 = sphi 0, %s81
      %s83 = sphi 0, %s81
      %s84 = sphi 0, %s83
      %s98 = sphi 0, %s84
      %s102 = sphi 0, %s102
      %s104 = sphi 0, %s102
      %s105 = sphi 0, %s104
      %s119 = sphi 0, %s105
      %s123 = sphi 0, %s123
      %s125 = sphi 0, %s123
      %s126 = sphi 0, %s125
      %s140 = sphi 0, %s126
      %s144 = sphi 0, %s144
      %s146 = sphi 0, %s144
      %s147 = sphi 0, %s146
      %s161 = sphi 0, %s147
      %s165 = sphi 0, %s165
      %s167 = sphi 0, %s165
      %s168 = sphi 0, %s167
      %s182 = sphi 0, %s168
      %s186 = sphi 0, %s186
      %s188 = sphi 0, %s186
      %s189 = sphi 0, %s188
      %s203 = sphi 0, %s189
      %s209 = sphi 0, %s211
      %s212 = sphi 0, %s209
      %s213 = sphi 0, %s212
      %s229 = sphi 0, %s213
    $region4: #{tpu_custom_call.1} parent=1 // loop_header_branch
      %24 = sbr.rel (%p22) target = $region8
    $region5: #{tpu_custom_call.1} parent=1 // loop_body
      %s26 = ssub.s32 %s21, 1
      %s27 = ssub.s32 %s21, 2
      %s28 = sadd.s32 %s21, 1
      %s29 = ssub.s32 %s21, %s28
      %p30 = scmp.eq.s32.totalorder %s29, 0
      %s32 = sadd.s32 %s31, 1
      %s33 = scalar_select %p30, %s31, %s32
      %p36 = pneg %p30
      %p37 = scmp.eq.s32.totalorder %s21, 3
      %p38 = por %p36, %p37
      %p39 = scmp.ne.s32.totalorder %s31, %s34
      %p40 = scmp.eq.s32.totalorder %s21, 0
      %p41 = por %p39, %p40
      %p42 = scmp.ne.s32.totalorder %s31, %s34
      %p43 = scmp.eq.s32.totalorder %s26, 3
      %p44 = por %p42, %p43
      %p45 = scmp.ne.s32.totalorder %s34, %s35
      %p46 = scmp.eq.s32.totalorder %s26, 0
      %p47 = por %p45, %p46
      %p48 = scmp.ne.s32.totalorder %s34, %s35
      %p49 = scmp.eq.s32.totalorder %s27, 3
      %p50 = por %p48, %p49
      %p52 = scmp.ne.s32.totalorder %s35, %s51
      %p53 = scmp.eq.s32.totalorder %s27, 0
      %p54 = por %p52, %p53
      %s55 = ssub.s32 %s21, %s28
      %p56 = scmp.eq.s32.totalorder %s55, 0
      %s58 = sadd.s32 %s57, 1
      %s59 = scalar_select %p56, %s57, %s58
      %p62 = pneg %p56
      %p63 = scmp.eq.s32.totalorder %s21, 3
      %p64 = por %p62, %p63
      %p65 = scmp.ne.s32.totalorder %s57, %s60
      %p66 = scmp.eq.s32.totalorder %s21, 0
      %p67 = por %p65, %p66
      %p68 = scmp.ne.s32.totalorder %s57, %s60
      %p69 = scmp.eq.s32.totalorder %s26, 3
      %p70 = por %p68, %p69
      %p71 = scmp.ne.s32.totalorder %s60, %s61
      %p72 = scmp.eq.s32.totalorder %s26, 0
      %p73 = por %p71, %p72
      %p74 = scmp.ne.s32.totalorder %s60, %s61
      %p75 = scmp.eq.s32.totalorder %s27, 3
      %p76 = por %p74, %p75
      %p78 = scmp.ne.s32.totalorder %s61, %s77
      %p79 = scmp.eq.s32.totalorder %s27, 0
      %p80 = por %p78, %p79
      %s82 = sadd.s32 %s81, 1
      %p85 = scmp.eq.s32.totalorder %s21, 3
      %p86 = scmp.ne.s32.totalorder %s81, %s83
      %p87 = scmp.eq.s32.totalorder %s21, 0
      %p88 = por %p86, %p87
      %p89 = scmp.ne.s32.totalorder %s81, %s83
      %p90 = scmp.eq.s32.totalorder %s26, 3
      %p91 = por %p89, %p90
      %p92 = scmp.ne.s32.totalorder %s83, %s84
      %p93 = scmp.eq.s32.totalorder %s26, 0
      %p94 = por %p92, %p93
      %p95 = scmp.ne.s32.totalorder %s83, %s84
      %p96 = scmp.eq.s32.totalorder %s27, 3
      %p97 = por %p95, %p96
      %p99 = scmp.ne.s32.totalorder %s84, %s98
      %p100 = scmp.eq.s32.totalorder %s27, 0
      %p101 = por %p99, %p100
      %s103 = sadd.s32 %s102, 1
      %p106 = scmp.eq.s32.totalorder %s21, 3
      %p107 = scmp.ne.s32.totalorder %s102, %s104
      %p108 = scmp.eq.s32.totalorder %s21, 0
      %p109 = por %p107, %p108
      %p110 = scmp.ne.s32.totalorder %s102, %s104
      %p111 = scmp.eq.s32.totalorder %s26, 3
      %p112 = por %p110, %p111
      %p113 = scmp.ne.s32.totalorder %s104, %s105
      %p114 = scmp.eq.s32.totalorder %s26, 0
      %p115 = por %p113, %p114
      %p116 = scmp.ne.s32.totalorder %s104, %s105
      %p117 = scmp.eq.s32.totalorder %s27, 3
      %p118 = por %p116, %p117
      %p120 = scmp.ne.s32.totalorder %s105, %s119
      %p121 = scmp.eq.s32.totalorder %s27, 0
      %p122 = por %p120, %p121
      %s124 = sadd.s32 %s123, 1
      %p127 = scmp.eq.s32.totalorder %s21, 3
      %p128 = scmp.ne.s32.totalorder %s123, %s125
      %p129 = scmp.eq.s32.totalorder %s21, 0
      %p130 = por %p128, %p129
      %p131 = scmp.ne.s32.totalorder %s123, %s125
      %p132 = scmp.eq.s32.totalorder %s26, 3
      %p133 = por %p131, %p132
      %p134 = scmp.ne.s32.totalorder %s125, %s126
      %p135 = scmp.eq.s32.totalorder %s26, 0
      %p136 = por %p134, %p135
      %p137 = scmp.ne.s32.totalorder %s125, %s126
      %p138 = scmp.eq.s32.totalorder %s27, 3
      %p139 = por %p137, %p138
      %p141 = scmp.ne.s32.totalorder %s126, %s140
      %p142 = scmp.eq.s32.totalorder %s27, 0
      %p143 = por %p141, %p142
      %s145 = sadd.s32 %s144, 1
      %p148 = scmp.eq.s32.totalorder %s21, 3
      %p149 = scmp.ne.s32.totalorder %s144, %s146
      %p150 = scmp.eq.s32.totalorder %s21, 0
      %p151 = por %p149, %p150
      %p152 = scmp.ne.s32.totalorder %s144, %s146
      %p153 = scmp.eq.s32.totalorder %s26, 3
      %p154 = por %p152, %p153
      %p155 = scmp.ne.s32.totalorder %s146, %s147
      %p156 = scmp.eq.s32.totalorder %s26, 0
      %p157 = por %p155, %p156
      %p158 = scmp.ne.s32.totalorder %s146, %s147
      %p159 = scmp.eq.s32.totalorder %s27, 3
      %p160 = por %p158, %p159
      %p162 = scmp.ne.s32.totalorder %s147, %s161
      %p163 = scmp.eq.s32.totalorder %s27, 0
      %p164 = por %p162, %p163
      %s166 = sadd.s32 %s165, 1
      %p169 = scmp.eq.s32.totalorder %s21, 3
      %p170 = scmp.ne.s32.totalorder %s165, %s167
      %p171 = scmp.eq.s32.totalorder %s21, 0
      %p172 = por %p170, %p171
      %p173 = scmp.ne.s32.totalorder %s165, %s167
      %p174 = scmp.eq.s32.totalorder %s26, 3
      %p175 = por %p173, %p174
      %p176 = scmp.ne.s32.totalorder %s167, %s168
      %p177 = scmp.eq.s32.totalorder %s26, 0
      %p178 = por %p176, %p177
      %p179 = scmp.ne.s32.totalorder %s167, %s168
      %p180 = scmp.eq.s32.totalorder %s27, 3
      %p181 = por %p179, %p180
      %p183 = scmp.ne.s32.totalorder %s168, %s182
      %p184 = scmp.eq.s32.totalorder %s27, 0
      %p185 = por %p183, %p184
      %s187 = sadd.s32 %s186, 1
      %p190 = scmp.eq.s32.totalorder %s21, 3
      %p191 = scmp.ne.s32.totalorder %s186, %s188
      %p192 = scmp.eq.s32.totalorder %s21, 0
      %p193 = por %p191, %p192
      %p194 = scmp.ne.s32.totalorder %s186, %s188
      %p195 = scmp.eq.s32.totalorder %s26, 3
      %p196 = por %p194, %p195
      %p197 = scmp.ne.s32.totalorder %s188, %s189
      %p198 = scmp.eq.s32.totalorder %s26, 0
      %p199 = por %p197, %p198
      %p200 = scmp.ne.s32.totalorder %s188, %s189
      %p201 = scmp.eq.s32.totalorder %s27, 3
      %p202 = por %p200, %p201
      %p204 = scmp.ne.s32.totalorder %s189, %s203
      %p205 = scmp.eq.s32.totalorder %s27, 0
      %p206 = por %p204, %p205
      %s207 = ssub.s32 %s21, %s28
      %p208 = scmp.eq.s32.totalorder %s207, 0
      %s210 = sadd.s32 %s209, 1
      %s211 = scalar_select %p208, %s209, %s210
      %p214 = pneg %p208
      %p215 = scmp.eq.s32.totalorder %s21, 3
      %p216 = por %p214, %p215
      %p217 = scmp.ne.s32.totalorder %s209, %s212
      %p218 = scmp.eq.s32.totalorder %s21, 0
      %p219 = por %p217, %p218
      %p220 = scmp.ne.s32.totalorder %s209, %s212
      %p221 = scmp.eq.s32.totalorder %s26, 3
      %p222 = por %p220, %p221
      %p223 = scmp.ne.s32.totalorder %s212, %s213
      %p224 = scmp.eq.s32.totalorder %s26, 0
      %p225 = por %p223, %p224
      %p226 = scmp.ne.s32.totalorder %s212, %s213
      %p227 = scmp.eq.s32.totalorder %s27, 3
      %p228 = por %p226, %p227
      %p230 = scmp.ne.s32.totalorder %s213, %s229
      %p231 = scmp.eq.s32.totalorder %s27, 0
      %p232 = por %p230, %p231
      %p233 = scmp.le.s32.totalorder 1, %s21
      %p234 = scmp.lt.s32.totalorder %s21, 5
      %p235 = pnand %p233, %p234
      %p236 = pneg %p235
      // Predicated region
      $region9: #{tpu_custom_call.1} parent=5 // pred_check
        _
      $region10: #{tpu_custom_call.1} parent=5 // pred_check_branch
        %238 = sbr.rel (%p235) target = $region12
      $region11: #{tpu_custom_call.1} parent=5 // pred_region
        %s239 = ssub.s32 %s21, 1
        // Predicated region
        $region13: #{tpu_custom_call.1} parent=11 // pred_check
          %p240 = pneg %p94
        $region14: #{tpu_custom_call.1} parent=11 // pred_check_branch
          %242 = sbr.rel (%p240) target = $region16
        $region15: #{tpu_custom_call.1} parent=11 // pred_region
          _
        $region16: #{tpu_custom_call.1} parent=11 // pred_fallthru
          _
        // Predicated region
        $region17: #{tpu_custom_call.1} parent=11 // pred_check
          %p243 = pneg %p115
        $region18: #{tpu_custom_call.1} parent=11 // pred_check_branch
          %245 = sbr.rel (%p243) target = $region20
        $region19: #{tpu_custom_call.1} parent=11 // pred_region
          _
        $region20: #{tpu_custom_call.1} parent=11 // pred_fallthru
          _
        // Predicated region
        $region21: #{tpu_custom_call.1} parent=11 // pred_check
          %p246 = pneg %p136
        $region22: #{tpu_custom_call.1} parent=11 // pred_check_branch
          %248 = sbr.rel (%p246) target = $region24
        $region23: #{tpu_custom_call.1} parent=11 // pred_region
          %250 = vsyncadd [#allocation6], 0
          %s251 = sshll.u32 %s4, 4
          %s252 = int_to_ptr.hbm [resolvable:$true] %s251
          %s253 = sshll.u32 [#allocation5], 4
          %s254 = int_to_ptr.vmem [resolvable:$true] %s253
          %259 = dma.hbm_to_vmem [thread:$0]  %s252, 768, %s254, [#allocation6], 64, 64, 4
        $region24: #{tpu_custom_call.1} parent=11 // pred_fallthru
          _
        // Predicated region
        $region25: #{tpu_custom_call.1} parent=11 // pred_check
          %p260 = pneg %p157
        $region26: #{tpu_custom_call.1} parent=11 // pred_check_branch
          %262 = sbr.rel (%p260) target = $region28
        $region27: #{tpu_custom_call.1} parent=11 // pred_region
          _
        $region28: #{tpu_custom_call.1} parent=11 // pred_fallthru
          _
        // Predicated region
        $region29: #{tpu_custom_call.1} parent=11 // pred_check
          %p263 = pneg %p178
        $region30: #{tpu_custom_call.1} parent=11 // pred_check_branch
          %265 = sbr.rel (%p263) target = $region32
        $region31: #{tpu_custom_call.1} parent=11 // pred_region
          _
        $region32: #{tpu_custom_call.1} parent=11 // pred_fallthru
          _
        // Predicated region
        $region33: #{tpu_custom_call.1} parent=11 // pred_check
          %p266 = pneg %p199
        $region34: #{tpu_custom_call.1} parent=11 // pred_check_branch
          %268 = sbr.rel (%p266) target = $region36
        $region35: #{tpu_custom_call.1} parent=11 // pred_region
          _
        $region36: #{tpu_custom_call.1} parent=11 // pred_fallthru
          _
      $region12: #{tpu_custom_call.1} parent=5 // pred_fallthru
        _
      %p269 = scmp.lt.s32.totalorder %s21, 4
      // Predicated region
      $region37: #{tpu_custom_call.1} parent=5 // pred_check
        %p270 = pneg %p269
      $region38: #{tpu_custom_call.1} parent=5 // pred_check_branch
        %272 = sbr.rel (%p270) target = $region40
      $region39: #{tpu_custom_call.1} parent=5 // pred_region
        // Predicated region
        $region41: #{tpu_custom_call.1} parent=39 // pred_check
          %p273 = pneg %p41
        $region42: #{tpu_custom_call.1} parent=39 // pred_check_branch
          %275 = sbr.rel (%p273) target = $region44
        $region43: #{tpu_custom_call.1} parent=39 // pred_region
          %s276 = smul.u32 4, %s21
          %p277 = scmp.lt.s32.totalorder %s276, 15
          %s278 = scalar_select %p277, %s276, 15
          %s279 = smul.addr %s278, 8
          %s280 = scalar_lea.vmem %s0, %s279
          %s281 = smul.u32 4, %s21
        $region44: #{tpu_custom_call.1} parent=39 // pred_fallthru
          _
        // Predicated region
        $region45: #{tpu_custom_call.1} parent=39 // pred_check
          %p282 = pneg %p67
        $region46: #{tpu_custom_call.1} parent=39 // pred_check_branch
          %284 = sbr.rel (%p282) target = $region48
        $region47: #{tpu_custom_call.1} parent=39 // pred_region
          %s285 = sand.u32 %s57, 1
          %s286 = scalar_lea.sflag [#allocation3], %s285
          %s287 = sand.u32 %s57, 1
          %s288 = smul.addr %s287, 256
          %s289 = scalar_lea.vmem [#allocation2], %s288
          %s290 = smul.u32 4, %s21
          %292 = vsyncadd %s286, 0
          %s293 = smul.addr %s290, 4
          %s294 = scalar_lea.hbm %s1, %s293
          %s295 = sshll.u32 %s294, 4
          %s296 = int_to_ptr.hbm [resolvable:$true] %s295
          %s297 = sshll.u32 %s289, 4
          %s298 = int_to_ptr.vmem [resolvable:$true] %s297
          %303 = dma.hbm_to_vmem [thread:$0]  %s296, 4096, %s298, %s286, 1024, 256, 16
        $region48: #{tpu_custom_call.1} parent=39 // pred_fallthru
          _
      $region40: #{tpu_custom_call.1} parent=5 // pred_fallthru
        _
      %p304 = scmp.le.s32.totalorder 1, %s21
      %p305 = scmp.lt.s32.totalorder %s21, 5
      %p306 = pnand %p304, %p305
      %p307 = pneg %p306
      // Predicated region
      $region49: #{tpu_custom_call.1} parent=5 // pred_check
        _
      $region50: #{tpu_custom_call.1} parent=5 // pred_check_branch
        %309 = sbr.rel (%p306) target = $region52
      $region51: #{tpu_custom_call.1} parent=5 // pred_region
        %s310 = ssub.s32 %s21, 1
        %s311 = sand.u32 %s60, 1
        %s312 = scalar_lea.sflag [#allocation3], %s311
        %s313 = sand.u32 %s60, 1
        %s314 = smul.addr %s313, 256
        %s315 = scalar_lea.vmem [#allocation2], %s314
        // Predicated region
        $region53: #{tpu_custom_call.1} parent=51 // pred_check
          %p316 = pneg %p73
        $region54: #{tpu_custom_call.1} parent=51 // pred_check_branch
          %318 = sbr.rel (%p316) target = $region56
        $region55: #{tpu_custom_call.1} parent=51 // pred_region
          %320 = dma.done %s312, 4096
        $region56: #{tpu_custom_call.1} parent=51 // pred_fallthru
          _
        // Predicated region
        $region57: #{tpu_custom_call.1} parent=51 // pred_check
          %p321 = pneg %p136
        $region58: #{tpu_custom_call.1} parent=51 // pred_check_branch
          %323 = sbr.rel (%p321) target = $region60
        $region59: #{tpu_custom_call.1} parent=51 // pred_region
          %325 = dma.done [#allocation6], 768
        $region60: #{tpu_custom_call.1} parent=51 // pred_fallthru
          _
        %s326 = smul.u32 4, %s26
        %p327 = scmp.lt.s32.totalorder %s326, 15
        %s328 = scalar_select %p327, %s326, 15
        %s329 = smul.addr %s328, 8
        %s330 = scalar_lea.vmem %s0, %s329
        %p331 = pneg %p47
        %p332 = pneg %p44
        %s333 = sand.u32 %s60, 1
        %s334 = scalar_lea.sflag [#allocation3], %s333
        %s335 = sand.u32 %s60, 1
        %s336 = smul.addr %s335, 256
        %s337 = scalar_lea.vmem [#allocation2], %s336
        %p338 = pneg %p73
        %p339 = pneg %p70
        %p340 = pneg %p94
        %p341 = pneg %p91
        %p342 = pneg %p115
        %p343 = pneg %p112
        %p344 = pneg %p136
        %p345 = pneg %p133
        %p346 = pneg %p157
        %p347 = pneg %p154
        %p348 = pneg %p178
        %p349 = pneg %p175
        %p350 = pneg %p199
        %p351 = pneg %p196
        %p352 = pneg %p225
        %p353 = pneg %p222
        %s354 = sand.u32 %s212, 1
        %s355 = scalar_lea.sflag [#allocation4], %s354
        %s356 = sand.u32 %s212, 1
        %s357 = smul.addr %s356, 16
        %s358 = scalar_lea.vmem [#allocation7], %s357
        %s359 = smul.u32 4, %s26
        %p360 = scmp.lt.s32.totalorder %s359, 15
        %s361 = scalar_select %p360, %s359, 15
        %s362 = smul.addr %s361, 8
        %s363 = scalar_lea.vmem %s0, %s362
        %s364 = smul.u32 4, %s26
        %s365 = smul.u32 4, %s26
        %s366 = smul.u32 4, %s26
        %v368 = vld [vmem:[%s2] sm:$0xf]
        %v369 = vld [vmem:[%s2 + $0x4] sm:$0xf]
        %v370 = vld [vmem:[%s2 + $0x8] sm:$0xf]
        %v371 = vld [vmem:[%s2 + $0xc] sm:$0xf]
        %v372 = vld [vmem:[%s2 + $0x10] sm:$0xf]
        %v373 = vld [vmem:[%s2 + $0x14] sm:$0xf]
        %v374 = vld [vmem:[%s2 + $0x18] sm:$0xf]
        %v375 = vld [vmem:[%s2 + $0x1c] sm:$0xf]
        %v376 = vld [vmem:[%s2 + $0x20] sm:$0xf]
        %v377 = vld [vmem:[%s2 + $0x24] sm:$0xf]
        %v378 = vld [vmem:[%s2 + $0x28] sm:$0xf]
        %v379 = vld [vmem:[%s2 + $0x2c] sm:$0xf]
        %v380 = vld [vmem:[%s315] sm:$0xff]
        %v381 = vld [vmem:[%s315 + $0x8] sm:$0xff]
        %v382 = vld [vmem:[%s315 + $0x10] sm:$0xff]
        %v383 = vld [vmem:[%s315 + $0x18] sm:$0xff]
        %v384 = vld [vmem:[%s315 + $0x20] sm:$0xff]
        %v385 = vld [vmem:[%s315 + $0x28] sm:$0xff]
        %v386 = vld [vmem:[%s315 + $0x30] sm:$0xff]
        %v387 = vld [vmem:[%s315 + $0x38] sm:$0xff]
        %v388 = vld [vmem:[%s315 + $0x40] sm:$0xff]
        %v389 = vld [vmem:[%s315 + $0x48] sm:$0xff]
        %v390 = vld [vmem:[%s315 + $0x50] sm:$0xff]
        %v391 = vld [vmem:[%s315 + $0x58] sm:$0xff]
        %v392 = vld [vmem:[%s315 + $0x60] sm:$0xff]
        %v393 = vld [vmem:[%s315 + $0x68] sm:$0xff]
        %v394 = vld [vmem:[%s315 + $0x70] sm:$0xff]
        %v395 = vld [vmem:[%s315 + $0x78] sm:$0xff]
        %v396 = vld [vmem:[%s315 + $0x80] sm:$0xff]
        %v397 = vld [vmem:[%s315 + $0x88] sm:$0xff]
        %v398 = vld [vmem:[%s315 + $0x90] sm:$0xff]
        %v399 = vld [vmem:[%s315 + $0x98] sm:$0xff]
        %v400 = vld [vmem:[%s315 + $0xa0] sm:$0xff]
        %v401 = vld [vmem:[%s315 + $0xa8] sm:$0xff]
        %v402 = vld [vmem:[%s315 + $0xb0] sm:$0xff]
        %v403 = vld [vmem:[%s315 + $0xb8] sm:$0xff]
        %v404 = vld [vmem:[%s315 + $0xc0] sm:$0xff]
        %v405 = vld [vmem:[%s315 + $0xc8] sm:$0xff]
        %v406 = vld [vmem:[%s315 + $0xd0] sm:$0xff]
        %v407 = vld [vmem:[%s315 + $0xd8] sm:$0xff]
        %v408 = vld [vmem:[%s315 + $0xe0] sm:$0xff]
        %v409 = vld [vmem:[%s315 + $0xe8] sm:$0xff]
        %v410 = vld [vmem:[%s315 + $0xf0] sm:$0xff]
        %v411 = vld [vmem:[%s315 + $0xf8] sm:$0xff]
        %v424 = vunpack.c.l.b16 %v368
        %v425 = vunpack.c.l.b16 %v369
        %v426 = vunpack.c.l.b16 %v370
        %v427 = vunpack.c.l.b16 %v371
        %v428 = vunpack.c.l.b16 %v372
        %v429 = vunpack.c.l.b16 %v373
        %v430 = vunpack.c.l.b16 %v374
        %v431 = vunpack.c.l.b16 %v375
        %v432 = vunpack.c.l.b16 %v376
        %v433 = vunpack.c.l.b16 %v377
        %v434 = vunpack.c.l.b16 %v378
        %v435 = vunpack.c.l.b16 %v379
        %v436 = vpack.c.b16 %v425, %v424
        %v437 = vpack.c.b16 %v427, %v426
        %v438 = vpack.c.b16 %v429, %v428
        %v439 = vpack.c.b16 %v431, %v430
        %v440 = vpack.c.b16 %v433, %v432
        %v441 = vpack.c.b16 %v435, %v434
        %v480 = vunpack.c.l.b16 %v380
        %v481 = vunpack.c.h.b16 %v380
        %v482 = vunpack.c.l.b16 %v381
        %v483 = vunpack.c.h.b16 %v381
        %v484 = vunpack.c.l.b16 %v382
        %v485 = vunpack.c.h.b16 %v382
        %v486 = vunpack.c.l.b16 %v383
        %v487 = vunpack.c.h.b16 %v383
        %v488 = vunpack.c.l.b16 %v384
        %v489 = vunpack.c.h.b16 %v384
        %v490 = vunpack.c.l.b16 %v385
        %v491 = vunpack.c.h.b16 %v385
        %v492 = vunpack.c.l.b16 %v386
        %v493 = vunpack.c.h.b16 %v386
        %v494 = vunpack.c.l.b16 %v387
        %v495 = vunpack.c.h.b16 %v387
        %v496 = vunpack.c.l.b16 %v388
        %v497 = vunpack.c.h.b16 %v388
        %v498 = vunpack.c.l.b16 %v389
        %v499 = vunpack.c.h.b16 %v389
        %v500 = vunpack.c.l.b16 %v390
        %v501 = vunpack.c.h.b16 %v390
        %v502 = vunpack.c.l.b16 %v391
        %v503 = vunpack.c.h.b16 %v391
        %v504 = vunpack.c.l.b16 %v392
        %v505 = vunpack.c.h.b16 %v392
        %v506 = vunpack.c.l.b16 %v393
        %v507 = vunpack.c.h.b16 %v393
        %v508 = vunpack.c.l.b16 %v394
        %v509 = vunpack.c.h.b16 %v394
        %v510 = vunpack.c.l.b16 %v395
        %v511 = vunpack.c.h.b16 %v395
        %v512 = vunpack.c.l.b16 %v396
        %v513 = vunpack.c.h.b16 %v396
        %v514 = vunpack.c.l.b16 %v397
        %v515 = vunpack.c.h.b16 %v397
        %v516 = vunpack.c.l.b16 %v398
        %v517 = vunpack.c.h.b16 %v398
        %v518 = vunpack.c.l.b16 %v399
        %v519 = vunpack.c.h.b16 %v399
        %v520 = vunpack.c.l.b16 %v400
        %v521 = vunpack.c.h.b16 %v400
        %v522 = vunpack.c.l.b16 %v401
        %v523 = vunpack.c.h.b16 %v401
        %v524 = vunpack.c.l.b16 %v402
        %v525 = vunpack.c.h.b16 %v402
        %v526 = vunpack.c.l.b16 %v403
        %v527 = vunpack.c.h.b16 %v403
        %v528 = vunpack.c.l.b16 %v404
        %v529 = vunpack.c.h.b16 %v404
        %v530 = vunpack.c.l.b16 %v405
        %v531 = vunpack.c.h.b16 %v405
        %v532 = vunpack.c.l.b16 %v406
        %v533 = vunpack.c.h.b16 %v406
        %v534 = vunpack.c.l.b16 %v407
        %v535 = vunpack.c.h.b16 %v407
        %v536 = vunpack.c.l.b16 %v408
        %v537 = vunpack.c.h.b16 %v408
        %v538 = vunpack.c.l.b16 %v409
        %v539 = vunpack.c.h.b16 %v409
        %v540 = vunpack.c.l.b16 %v410
        %v541 = vunpack.c.h.b16 %v410
        %v542 = vunpack.c.l.b16 %v411
        %v543 = vunpack.c.h.b16 %v411
        %v544 = vpack.c.b16 %v484, %v480
        %v545 = vpack.c.b16 %v485, %v481
        %v546 = vpack.c.b16 %v486, %v482
        %v547 = vpack.c.b16 %v487, %v483
        %v548 = vpack.c.b16 %v492, %v488
        %v549 = vpack.c.b16 %v493, %v489
        %v550 = vpack.c.b16 %v494, %v490
        %v551 = vpack.c.b16 %v495, %v491
        %v552 = vpack.c.b16 %v500, %v496
        %v553 = vpack.c.b16 %v501, %v497
        %v554 = vpack.c.b16 %v502, %v498
        %v555 = vpack.c.b16 %v503, %v499
        %v556 = vpack.c.b16 %v508, %v504
        %v557 = vpack.c.b16 %v509, %v505
        %v558 = vpack.c.b16 %v510, %v506
        %v559 = vpack.c.b16 %v511, %v507
        %v560 = vpack.c.b16 %v516, %v512
        %v561 = vpack.c.b16 %v517, %v513
        %v562 = vpack.c.b16 %v518, %v514
        %v563 = vpack.c.b16 %v519, %v515
        %v564 = vpack.c.b16 %v524, %v520
        %v565 = vpack.c.b16 %v525, %v521
        %v566 = vpack.c.b16 %v526, %v522
        %v567 = vpack.c.b16 %v527, %v523
        %v568 = vpack.c.b16 %v532, %v528
        %v569 = vpack.c.b16 %v533, %v529
        %v570 = vpack.c.b16 %v534, %v530
        %v571 = vpack.c.b16 %v535, %v531
        %v572 = vpack.c.b16 %v540, %v536
        %v573 = vpack.c.b16 %v541, %v537
        %v574 = vpack.c.b16 %v542, %v538
        %v575 = vpack.c.b16 %v543, %v539
        %608 = vmatpush.bf16.msra.mxu0 %v572
        %609 = vmatpush.bf16.msra.mxu0 %v568
        %610 = vmatpush.bf16.msra.mxu0 %v564
        %611 = vmatpush.bf16.msra.mxu0 %v560
        %612 = vmatpush.bf16.msra.mxu0 %v556
        %613 = vmatpush.bf16.msra.mxu0 %v552
        %614 = vmatpush.bf16.msra.mxu0 %v548
        %615 = vmatpush.bf16.msra.mxu0 %v544
        %616 = vmatmul.bf16.gmra.mxu0 %v436
        %v617 = vpop.f32.mrf.mxu0
        %v618 = vadd.f32 0.0, %v617
        %v619 = vpop.f32.mrf.mxu0
        %v620 = vadd.f32 0.0, %v619
        %621 = vmatmul.bf16.gmra.mxu0 %v437
        %v622 = vpop.f32.mrf.mxu0
        %v623 = vadd.f32 0.0, %v622
        %v624 = vpop.f32.mrf.mxu0
        %v625 = vadd.f32 0.0, %v624
        %626 = vmatmul.bf16.gmra.mxu0 %v438
        %v627 = vpop.f32.mrf.mxu0
        %v628 = vadd.f32 0.0, %v627
        %v629 = vpop.f32.mrf.mxu0
        %v630 = vadd.f32 0.0, %v629
        %631 = vmatmul.bf16.gmra.mxu0 %v439
        %v632 = vpop.f32.mrf.mxu0
        %v633 = vadd.f32 0.0, %v632
        %v634 = vpop.f32.mrf.mxu0
        %v635 = vadd.f32 0.0, %v634
        %636 = vmatmul.bf16.gmra.mxu0 %v440
        %v637 = vpop.f32.mrf.mxu0
        %v638 = vadd.f32 0.0, %v637
        %v639 = vpop.f32.mrf.mxu0
        %v640 = vadd.f32 0.0, %v639
        %641 = vmatmul.bf16.gmra.mxu0 %v441
        %v642 = vpop.f32.mrf.mxu0
        %v643 = vadd.f32 0.0, %v642
        %v644 = vpop.f32.mrf.mxu0
        %v645 = vadd.f32 0.0, %v644
        %646 = vdwg.mxu0
        %647 = vmatpush.bf16.msra.mxu0 %v573
        %648 = vmatpush.bf16.msra.mxu0 %v569
        %649 = vmatpush.bf16.msra.mxu0 %v565
        %650 = vmatpush.bf16.msra.mxu0 %v561
        %651 = vmatpush.bf16.msra.mxu0 %v557
        %652 = vmatpush.bf16.msra.mxu0 %v553
        %653 = vmatpush.bf16.msra.mxu0 %v549
        %654 = vmatpush.bf16.msra.mxu0 %v545
        %655 = vmatmul.bf16.gmra.mxu0 %v436
        %v656 = vpop.f32.mrf.mxu0
        %v657 = vadd.f32 0.0, %v656
        %v658 = vpop.f32.mrf.mxu0
        %v659 = vadd.f32 0.0, %v658
        %660 = vmatmul.bf16.gmra.mxu0 %v437
        %v661 = vpop.f32.mrf.mxu0
        %v662 = vadd.f32 0.0, %v661
        %v663 = vpop.f32.mrf.mxu0
        %v664 = vadd.f32 0.0, %v663
        %665 = vmatmul.bf16.gmra.mxu0 %v438
        %v666 = vpop.f32.mrf.mxu0
        %v667 = vadd.f32 0.0, %v666
        %v668 = vpop.f32.mrf.mxu0
        %v669 = vadd.f32 0.0, %v668
        %670 = vmatmul.bf16.gmra.mxu0 %v439
        %v671 = vpop.f32.mrf.mxu0
        %v672 = vadd.f32 0.0, %v671
        %v673 = vpop.f32.mrf.mxu0
        %v674 = vadd.f32 0.0, %v673
        %675 = vmatmul.bf16.gmra.mxu0 %v440
        %v676 = vpop.f32.mrf.mxu0
        %v677 = vadd.f32 0.0, %v676
        %v678 = vpop.f32.mrf.mxu0
        %v679 = vadd.f32 0.0, %v678
        %680 = vmatmul.bf16.gmra.mxu0 %v441
        %v681 = vpop.f32.mrf.mxu0
        %v682 = vadd.f32 0.0, %v681
        %v683 = vpop.f32.mrf.mxu0
        %v684 = vadd.f32 0.0, %v683
        %685 = vdwg.mxu0
        %686 = vmatpush.bf16.msra.mxu0 %v574
        %687 = vmatpush.bf16.msra.mxu0 %v570
        %688 = vmatpush.bf16.msra.mxu0 %v566
        %689 = vmatpush.bf16.msra.mxu0 %v562
        %690 = vmatpush.bf16.msra.mxu0 %v558
        %691 = vmatpush.bf16.msra.mxu0 %v554
        %692 = vmatpush.bf16.msra.mxu0 %v550
        %693 = vmatpush.bf16.msra.mxu0 %v546
        %694 = vmatmul.bf16.gmra.mxu0 %v436
        %v695 = vpop.f32.mrf.mxu0
        %v696 = vadd.f32 0.0, %v695
        %v697 = vpop.f32.mrf.mxu0
        %v698 = vadd.f32 0.0, %v697
        %699 = vmatmul.bf16.gmra.mxu0 %v437
        %v700 = vpop.f32.mrf.mxu0
        %v701 = vadd.f32 0.0, %v700
        %v702 = vpop.f32.mrf.mxu0
        %v703 = vadd.f32 0.0, %v702
        %704 = vmatmul.bf16.gmra.mxu0 %v438
        %v705 = vpop.f32.mrf.mxu0
        %v706 = vadd.f32 0.0, %v705
        %v707 = vpop.f32.mrf.mxu0
        %v708 = vadd.f32 0.0, %v707
        %709 = vmatmul.bf16.gmra.mxu0 %v439
        %v710 = vpop.f32.mrf.mxu0
        %v711 = vadd.f32 0.0, %v710
        %v712 = vpop.f32.mrf.mxu0
        %v713 = vadd.f32 0.0, %v712
        %714 = vmatmul.bf16.gmra.mxu0 %v440
        %v715 = vpop.f32.mrf.mxu0
        %v716 = vadd.f32 0.0, %v715
        %v717 = vpop.f32.mrf.mxu0
        %v718 = vadd.f32 0.0, %v717
        %719 = vmatmul.bf16.gmra.mxu0 %v441
        %v720 = vpop.f32.mrf.mxu0
        %v721 = vadd.f32 0.0, %v720
        %v722 = vpop.f32.mrf.mxu0
        %v723 = vadd.f32 0.0, %v722
        %724 = vdwg.mxu0
        %725 = vmatpush.bf16.msra.mxu0 %v575
        %726 = vmatpush.bf16.msra.mxu0 %v571
        %727 = vmatpush.bf16.msra.mxu0 %v567
        %728 = vmatpush.bf16.msra.mxu0 %v563
        %729 = vmatpush.bf16.msra.mxu0 %v559
        %730 = vmatpush.bf16.msra.mxu0 %v555
        %731 = vmatpush.bf16.msra.mxu0 %v551
        %732 = vmatpush.bf16.msra.mxu0 %v547
        %733 = vmatmul.bf16.gmra.mxu0 %v436
        %v734 = vpop.f32.mrf.mxu0
        %v735 = vadd.f32 0.0, %v734
        %v736 = vpop.f32.mrf.mxu0
        %v737 = vadd.f32 0.0, %v736
        %738 = vmatmul.bf16.gmra.mxu0 %v437
        %v739 = vpop.f32.mrf.mxu0
        %v740 = vadd.f32 0.0, %v739
        %v741 = vpop.f32.mrf.mxu0
        %v742 = vadd.f32 0.0, %v741
        %743 = vmatmul.bf16.gmra.mxu0 %v438
        %v744 = vpop.f32.mrf.mxu0
        %v745 = vadd.f32 0.0, %v744
        %v746 = vpop.f32.mrf.mxu0
        %v747 = vadd.f32 0.0, %v746
        %748 = vmatmul.bf16.gmra.mxu0 %v439
        %v749 = vpop.f32.mrf.mxu0
        %v750 = vadd.f32 0.0, %v749
        %v751 = vpop.f32.mrf.mxu0
        %v752 = vadd.f32 0.0, %v751
        %753 = vmatmul.bf16.gmra.mxu0 %v440
        %v754 = vpop.f32.mrf.mxu0
        %v755 = vadd.f32 0.0, %v754
        %v756 = vpop.f32.mrf.mxu0
        %v757 = vadd.f32 0.0, %v756
        %758 = vmatmul.bf16.gmra.mxu0 %v441
        %v759 = vpop.f32.mrf.mxu0
        %v760 = vadd.f32 0.0, %v759
        %v761 = vpop.f32.mrf.mxu0
        %v762 = vadd.f32 0.0, %v761
        %763 = vdwg.mxu0
        %v764 = vld [vmem:[%s363] sm:$0x7]
        %v765 = vld [vmem:[%s363 + $0x8] sm:$0x7]
        %v766 = vld [vmem:[%s363 + $0x10] sm:$0x7]
        %v767 = vld [vmem:[%s363 + $0x18] sm:$0x7]
        %v768 = vld [vmem:[%s3] sm:$0xff]
        %v769 = vld [vmem:[%s3 + $0x8] sm:$0xff]
        %v770 = vld [vmem:[%s3 + $0x10] sm:$0xff]
        %v771 = vld [vmem:[%s3 + $0x18] sm:$0xff]
        %773 = vset.pattern.permute.xlu0 0
        %774 = vperm.xlu0 %773, %v768
        %v775 = vpop.permute.xlu0 %774
        %778 = vset.pattern.permute.xlu0 0
        %779 = vperm.xlu0 %778, %v769
        %v780 = vpop.permute.xlu0 %779
        %783 = vset.pattern.permute.xlu0 0
        %784 = vperm.xlu0 %783, %v770
        %v785 = vpop.permute.xlu0 %784
        %788 = vset.pattern.permute.xlu0 0
        %789 = vperm.xlu0 %788, %v771
        %v790 = vpop.permute.xlu0 %789
        %v792 = vperm.slane %v764, 0
        %v793 = vperm.slane %v765, 0
        %v794 = vperm.slane %v766, 0
        %v795 = vperm.slane %v767, 0
        %v796 = vmul.f32 %v775, %v792
        %v797 = vmul.f32 %v775, %v793
        %v798 = vmul.f32 %v775, %v794
        %v799 = vmul.f32 %v775, %v795
        %v800 = vmul.f32 %v780, %v792
        %v801 = vmul.f32 %v780, %v793
        %v802 = vmul.f32 %v780, %v794
        %v803 = vmul.f32 %v780, %v795
        %v804 = vmul.f32 %v785, %v792
        %v805 = vmul.f32 %v785, %v793
        %v806 = vmul.f32 %v785, %v794
        %v807 = vmul.f32 %v785, %v795
        %v808 = vmul.f32 %v790, %v792
        %v809 = vmul.f32 %v790, %v793
        %v810 = vmul.f32 %v790, %v794
        %v811 = vmul.f32 %v790, %v795
        %812 = vset.pattern.permute.xlu0 1
        %813 = vperm.xlu0 %812, %v768
        %v814 = vpop.permute.xlu0 %813
        %816 = vset.pattern.permute.xlu0 1
        %817 = vperm.xlu0 %816, %v769
        %v818 = vpop.permute.xlu0 %817
        %820 = vset.pattern.permute.xlu0 1
        %821 = vperm.xlu0 %820, %v770
        %v822 = vpop.permute.xlu0 %821
        %824 = vset.pattern.permute.xlu0 1
        %825 = vperm.xlu0 %824, %v771
        %v826 = vpop.permute.xlu0 %825
        %v828 = vperm.slane %v764, 1
        %v829 = vperm.slane %v765, 1
        %v830 = vperm.slane %v766, 1
        %v831 = vperm.slane %v767, 1
        %v832 = vmul.f32 %v814, %v828
        %v833 = vmul.f32 %v814, %v829
        %v834 = vmul.f32 %v814, %v830
        %v835 = vmul.f32 %v814, %v831
        %v836 = vmul.f32 %v818, %v828
        %v837 = vmul.f32 %v818, %v829
        %v838 = vmul.f32 %v818, %v830
        %v839 = vmul.f32 %v818, %v831
        %v840 = vmul.f32 %v822, %v828
        %v841 = vmul.f32 %v822, %v829
        %v842 = vmul.f32 %v822, %v830
        %v843 = vmul.f32 %v822, %v831
        %v844 = vmul.f32 %v826, %v828
        %v845 = vmul.f32 %v826, %v829
        %v846 = vmul.f32 %v826, %v830
        %v847 = vmul.f32 %v826, %v831
        %v848 = vadd.f32 %v796, %v832
        %v849 = vadd.f32 %v797, %v833
        %v850 = vadd.f32 %v798, %v834
        %v851 = vadd.f32 %v799, %v835
        %v852 = vadd.f32 %v800, %v836
        %v853 = vadd.f32 %v801, %v837
        %v854 = vadd.f32 %v802, %v838
        %v855 = vadd.f32 %v803, %v839
        %v856 = vadd.f32 %v804, %v840
        %v857 = vadd.f32 %v805, %v841
        %v858 = vadd.f32 %v806, %v842
        %v859 = vadd.f32 %v807, %v843
        %v860 = vadd.f32 %v808, %v844
        %v861 = vadd.f32 %v809, %v845
        %v862 = vadd.f32 %v810, %v846
        %v863 = vadd.f32 %v811, %v847
        %864 = vset.pattern.permute.xlu0 2
        %865 = vperm.xlu0 %864, %v768
        %v866 = vpop.permute.xlu0 %865
        %868 = vset.pattern.permute.xlu0 2
        %869 = vperm.xlu0 %868, %v769
        %v870 = vpop.permute.xlu0 %869
        %872 = vset.pattern.permute.xlu0 2
        %873 = vperm.xlu0 %872, %v770
        %v874 = vpop.permute.xlu0 %873
        %876 = vset.pattern.permute.xlu0 2
        %877 = vperm.xlu0 %876, %v771
        %v878 = vpop.permute.xlu0 %877
        %v880 = vperm.slane %v764, 2
        %v881 = vperm.slane %v765, 2
        %v882 = vperm.slane %v766, 2
        %v883 = vperm.slane %v767, 2
        %v884 = vmul.f32 %v866, %v880
        %v885 = vmul.f32 %v866, %v881
        %v886 = vmul.f32 %v866, %v882
        %v887 = vmul.f32 %v866, %v883
        %v888 = vmul.f32 %v870, %v880
        %v889 = vmul.f32 %v870, %v881
        %v890 = vmul.f32 %v870, %v882
        %v891 = vmul.f32 %v870, %v883
        %v892 = vmul.f32 %v874, %v880
        %v893 = vmul.f32 %v874, %v881
        %v894 = vmul.f32 %v874, %v882
        %v895 = vmul.f32 %v874, %v883
        %v896 = vmul.f32 %v878, %v880
        %v897 = vmul.f32 %v878, %v881
        %v898 = vmul.f32 %v878, %v882
        %v899 = vmul.f32 %v878, %v883
        %v900 = vadd.f32 %v848, %v884
        %v901 = vadd.f32 %v849, %v885
        %v902 = vadd.f32 %v850, %v886
        %v903 = vadd.f32 %v851, %v887
        %v904 = vadd.f32 %v852, %v888
        %v905 = vadd.f32 %v853, %v889
        %v906 = vadd.f32 %v854, %v890
        %v907 = vadd.f32 %v855, %v891
        %v908 = vadd.f32 %v856, %v892
        %v909 = vadd.f32 %v857, %v893
        %v910 = vadd.f32 %v858, %v894
        %v911 = vadd.f32 %v859, %v895
        %v912 = vadd.f32 %v860, %v896
        %v913 = vadd.f32 %v861, %v897
        %v914 = vadd.f32 %v862, %v898
        %v915 = vadd.f32 %v863, %v899
        %v916 = vadd.f32 %v618, %v900
        %v917 = vadd.f32 %v657, %v901
        %v918 = vadd.f32 %v696, %v902
        %v919 = vadd.f32 %v735, %v903
        %v920 = vadd.f32 %v620, %v904
        %v921 = vadd.f32 %v659, %v905
        %v922 = vadd.f32 %v698, %v906
        %v923 = vadd.f32 %v737, %v907
        %v924 = vadd.f32 %v623, %v908
        %v925 = vadd.f32 %v662, %v909
        %v926 = vadd.f32 %v701, %v910
        %v927 = vadd.f32 %v740, %v911
        %v928 = vadd.f32 %v625, %v912
        %v929 = vadd.f32 %v664, %v913
        %v930 = vadd.f32 %v703, %v914
        %v931 = vadd.f32 %v742, %v915
        %v932 = vmax.f32 %v916, 0.0
        %v933 = vmax.f32 %v917, 0.0
        %v934 = vmax.f32 %v918, 0.0
        %v935 = vmax.f32 %v919, 0.0
        %v936 = vmax.f32 %v920, 0.0
        %v937 = vmax.f32 %v921, 0.0
        %v938 = vmax.f32 %v922, 0.0
        %v939 = vmax.f32 %v923, 0.0
        %v940 = vmax.f32 %v924, 0.0
        %v941 = vmax.f32 %v925, 0.0
        %v942 = vmax.f32 %v926, 0.0
        %v943 = vmax.f32 %v927, 0.0
        %v944 = vmax.f32 %v928, 0.0
        %v945 = vmax.f32 %v929, 0.0
        %v946 = vmax.f32 %v930, 0.0
        %v947 = vmax.f32 %v931, 0.0
        %v948 = vld [vmem:[#allocation5] sm:$0xf]
        %v949 = vld [vmem:[#allocation5 + $0x4] sm:$0xf]
        %v950 = vld [vmem:[#allocation5 + $0x8] sm:$0xf]
        %v951 = vld [vmem:[#allocation5 + $0xc] sm:$0xf]
        %v952 = vpack.c.bf16 %v936, %v932
        %v953 = vpack.c.bf16 %v937, %v933
        %v954 = vpack.c.bf16 %v938, %v934
        %v955 = vpack.c.bf16 %v939, %v935
        %v956 = vpack.c.bf16 %v944, %v940
        %v957 = vpack.c.bf16 %v945, %v941
        %v958 = vpack.c.bf16 %v946, %v942
        %v959 = vpack.c.bf16 %v947, %v943
        %v960 = vld [vmem:[%s5] sm:$0xff]
        %v961 = vld [vmem:[%s5 + $0x8] sm:$0xff]
        %v962 = vld [vmem:[%s5 + $0x10] sm:$0xff]
        %v963 = vld [vmem:[%s5 + $0x18] sm:$0xff]
        %965 = vset.pattern.permute.xlu0 0
        %966 = vperm.xlu0 %965, %v960
        %v967 = vpop.permute.xlu0 %966
        %970 = vset.pattern.permute.xlu0 0
        %971 = vperm.xlu0 %970, %v961
        %v972 = vpop.permute.xlu0 %971
        %975 = vset.pattern.permute.xlu0 0
        %976 = vperm.xlu0 %975, %v962
        %v977 = vpop.permute.xlu0 %976
        %980 = vset.pattern.permute.xlu0 0
        %981 = vperm.xlu0 %980, %v963
        %v982 = vpop.permute.xlu0 %981
        %v988 = vunpack.c.l.b16 %v948
        %v989 = vunpack.c.l.b16 %v949
        %v990 = vunpack.c.l.b16 %v950
        %v991 = vunpack.c.l.b16 %v951
        %v992 = vpack.c.b16 %v989, %v988
        %v993 = vpack.c.b16 %v991, %v990
        %vm994 = vcmask 261120
        %v996 = vsel %vm994, %v992, 0
        %v999 = vsel %vm994, %v993, 0
        %1001 = vmatpush.bf16.msra.mxu0 0
        %1002 = vmatpush.bf16.msra.mxu0 0
        %1003 = vmatpush.bf16.msra.mxu0 0
        %1004 = vmatpush.bf16.msra.mxu0 0
        %1005 = vmatpush.bf16.msra.mxu0 0
        %1006 = vmatpush.bf16.msra.mxu0 0
        %1007 = vmatpush.bf16.msra.mxu0 %v956
        %1008 = vmatpush.bf16.msra.mxu0 %v952
        %1009 = vmatmul.bf16.gmra.mxu0 %v996
        %v1010 = vpop.f32.mrf.mxu0
        %v1011 = vadd.f32 %v967, %v1010
        %v1012 = vpop.f32.mrf.mxu0
        %v1013 = vadd.f32 %v972, %v1012
        %1014 = vmatmul.bf16.gmra.mxu0 %v999
        %v1015 = vpop.f32.mrf.mxu0
        %v1016 = vadd.f32 %v977, %v1015
        %v1017 = vpop.f32.mrf.mxu0
        %v1018 = vadd.f32 %v982, %v1017
        %1019 = vdwg.mxu0
        %1020 = vmatpush.bf16.msra.mxu0 0
        %1021 = vmatpush.bf16.msra.mxu0 0
        %1022 = vmatpush.bf16.msra.mxu0 0
        %1023 = vmatpush.bf16.msra.mxu0 0
        %1024 = vmatpush.bf16.msra.mxu0 0
        %1025 = vmatpush.bf16.msra.mxu0 0
        %1026 = vmatpush.bf16.msra.mxu0 %v957
        %1027 = vmatpush.bf16.msra.mxu0 %v953
        %1028 = vmatmul.bf16.gmra.mxu0 %v996
        %v1029 = vpop.f32.mrf.mxu0
        %v1030 = vadd.f32 %v967, %v1029
        %v1031 = vpop.f32.mrf.mxu0
        %v1032 = vadd.f32 %v972, %v1031
        %1033 = vmatmul.bf16.gmra.mxu0 %v999
        %v1034 = vpop.f32.mrf.mxu0
        %v1035 = vadd.f32 %v977, %v1034
        %v1036 = vpop.f32.mrf.mxu0
        %v1037 = vadd.f32 %v982, %v1036
        %1038 = vdwg.mxu0
        %1039 = vmatpush.bf16.msra.mxu0 0
        %1040 = vmatpush.bf16.msra.mxu0 0
        %1041 = vmatpush.bf16.msra.mxu0 0
        %1042 = vmatpush.bf16.msra.mxu0 0
        %1043 = vmatpush.bf16.msra.mxu0 0
        %1044 = vmatpush.bf16.msra.mxu0 0
        %1045 = vmatpush.bf16.msra.mxu0 %v958
        %1046 = vmatpush.bf16.msra.mxu0 %v954
        %1047 = vmatmul.bf16.gmra.mxu0 %v996
        %v1048 = vpop.f32.mrf.mxu0
        %v1049 = vadd.f32 %v967, %v1048
        %v1050 = vpop.f32.mrf.mxu0
        %v1051 = vadd.f32 %v972, %v1050
        %1052 = vmatmul.bf16.gmra.mxu0 %v999
        %v1053 = vpop.f32.mrf.mxu0
        %v1054 = vadd.f32 %v977, %v1053
        %v1055 = vpop.f32.mrf.mxu0
        %v1056 = vadd.f32 %v982, %v1055
        %1057 = vdwg.mxu0
        %1058 = vmatpush.bf16.msra.mxu0 0
        %1059 = vmatpush.bf16.msra.mxu0 0
        %1060 = vmatpush.bf16.msra.mxu0 0
        %1061 = vmatpush.bf16.msra.mxu0 0
        %1062 = vmatpush.bf16.msra.mxu0 0
        %1063 = vmatpush.bf16.msra.mxu0 0
        %1064 = vmatpush.bf16.msra.mxu0 %v959
        %1065 = vmatpush.bf16.msra.mxu0 %v955
        %1066 = vmatmul.bf16.gmra.mxu0 %v996
        %v1067 = vpop.f32.mrf.mxu0
        %v1068 = vadd.f32 %v967, %v1067
        %v1069 = vpop.f32.mrf.mxu0
        %v1070 = vadd.f32 %v972, %v1069
        %1071 = vmatmul.bf16.gmra.mxu0 %v999
        %v1072 = vpop.f32.mrf.mxu0
        %v1073 = vadd.f32 %v977, %v1072
        %v1074 = vpop.f32.mrf.mxu0
        %v1075 = vadd.f32 %v982, %v1074
        %1076 = vdwg.mxu0
        %v1077 = vmax.f32 %v1011, 0.0
        %v1078 = vmax.f32 %v1030, 0.0
        %v1079 = vmax.f32 %v1049, 0.0
        %v1080 = vmax.f32 %v1068, 0.0
        %v1081 = vmax.f32 %v1013, 0.0
        %v1082 = vmax.f32 %v1032, 0.0
        %v1083 = vmax.f32 %v1051, 0.0
        %v1084 = vmax.f32 %v1070, 0.0
        %v1085 = vmax.f32 %v1016, 0.0
        %v1086 = vmax.f32 %v1035, 0.0
        %v1087 = vmax.f32 %v1054, 0.0
        %v1088 = vmax.f32 %v1073, 0.0
        %v1089 = vmax.f32 %v1018, 0.0
        %v1090 = vmax.f32 %v1037, 0.0
        %v1091 = vmax.f32 %v1056, 0.0
        %v1092 = vmax.f32 %v1075, 0.0
        %v1093 = vld [vmem:[%s6] sm:$0x3]
        %v1094 = vpack.c.bf16 %v1081, %v1077
        %v1095 = vpack.c.bf16 %v1082, %v1078
        %v1096 = vpack.c.bf16 %v1083, %v1079
        %v1097 = vpack.c.bf16 %v1084, %v1080
        %v1098 = vpack.c.bf16 %v1089, %v1085
        %v1099 = vpack.c.bf16 %v1090, %v1086
        %v1100 = vpack.c.bf16 %v1091, %v1087
        %v1101 = vpack.c.bf16 %v1092, %v1088
        %v1102 = vld [vmem:[%s7] sm:$0x7]
        %1104 = vset.pattern.permute.xlu0 0
        %1105 = vperm.xlu0 %1104, %v1102
        %v1106 = vpop.permute.xlu0 %1105
        %v1109 = vsel %vm994, %v1093, 0
        %1111 = vmatpush.bf16.msra.mxu0 0
        %1112 = vmatpush.bf16.msra.mxu0 0
        %1113 = vmatpush.bf16.msra.mxu0 0
        %1114 = vmatpush.bf16.msra.mxu0 0
        %1115 = vmatpush.bf16.msra.mxu0 0
        %1116 = vmatpush.bf16.msra.mxu0 0
        %1117 = vmatpush.bf16.msra.mxu0 %v1098
        %1118 = vmatpush.bf16.msra.mxu0 %v1094
        %1119 = vmatmul.bf16.gmra.mxu0 %v1109
        %v1120 = vpop.f32.mrf.mxu0
        %v1121 = vadd.f32 %v1106, %v1120
        %v1122 = vpop.f32.mrf.mxu0
        %1123 = vdwg.mxu0
        %1124 = vmatpush.bf16.msra.mxu0 0
        %1125 = vmatpush.bf16.msra.mxu0 0
        %1126 = vmatpush.bf16.msra.mxu0 0
        %1127 = vmatpush.bf16.msra.mxu0 0
        %1128 = vmatpush.bf16.msra.mxu0 0
        %1129 = vmatpush.bf16.msra.mxu0 0
        %1130 = vmatpush.bf16.msra.mxu0 %v1099
        %1131 = vmatpush.bf16.msra.mxu0 %v1095
        %1132 = vmatmul.bf16.gmra.mxu0 %v1109
        %v1133 = vpop.f32.mrf.mxu0
        %v1134 = vadd.f32 %v1106, %v1133
        %v1135 = vpop.f32.mrf.mxu0
        %1136 = vdwg.mxu0
        %1137 = vmatpush.bf16.msra.mxu0 0
        %1138 = vmatpush.bf16.msra.mxu0 0
        %1139 = vmatpush.bf16.msra.mxu0 0
        %1140 = vmatpush.bf16.msra.mxu0 0
        %1141 = vmatpush.bf16.msra.mxu0 0
        %1142 = vmatpush.bf16.msra.mxu0 0
        %1143 = vmatpush.bf16.msra.mxu0 %v1100
        %1144 = vmatpush.bf16.msra.mxu0 %v1096
        %1145 = vmatmul.bf16.gmra.mxu0 %v1109
        %v1146 = vpop.f32.mrf.mxu0
        %v1147 = vadd.f32 %v1106, %v1146
        %v1148 = vpop.f32.mrf.mxu0
        %1149 = vdwg.mxu0
        %1150 = vmatpush.bf16.msra.mxu0 0
        %1151 = vmatpush.bf16.msra.mxu0 0
        %1152 = vmatpush.bf16.msra.mxu0 0
        %1153 = vmatpush.bf16.msra.mxu0 0
        %1154 = vmatpush.bf16.msra.mxu0 0
        %1155 = vmatpush.bf16.msra.mxu0 0
        %1156 = vmatpush.bf16.msra.mxu0 %v1101
        %1157 = vmatpush.bf16.msra.mxu0 %v1097
        %1158 = vmatmul.bf16.gmra.mxu0 %v1109
        %v1159 = vpop.f32.mrf.mxu0
        %v1160 = vadd.f32 %v1106, %v1159
        %v1161 = vpop.f32.mrf.mxu0
        %1162 = vdwg.mxu0
        %v1163 = vadd.f32 %v1121, %v764
        %v1164 = vadd.f32 %v1134, %v765
        %v1165 = vadd.f32 %v1147, %v766
        %v1166 = vadd.f32 %v1160, %v767
        %s1167 = scalar_lea.vmem %s3, 32
        %v1168 = vld [vmem:[%s1167] sm:$0xff]
        %v1169 = vld [vmem:[%s1167 + $0x8] sm:$0xff]
        %v1170 = vld [vmem:[%s1167 + $0x10] sm:$0xff]
        %v1171 = vld [vmem:[%s1167 + $0x18] sm:$0xff]
        %1173 = vset.pattern.permute.xlu0 0
        %1174 = vperm.xlu0 %1173, %v1168
        %v1175 = vpop.permute.xlu0 %1174
        %1178 = vset.pattern.permute.xlu0 0
        %1179 = vperm.xlu0 %1178, %v1169
        %v1180 = vpop.permute.xlu0 %1179
        %1183 = vset.pattern.permute.xlu0 0
        %1184 = vperm.xlu0 %1183, %v1170
        %v1185 = vpop.permute.xlu0 %1184
        %1188 = vset.pattern.permute.xlu0 0
        %1189 = vperm.xlu0 %1188, %v1171
        %v1190 = vpop.permute.xlu0 %1189
        %v1192 = vperm.slane %v1163, 0
        %v1193 = vperm.slane %v1164, 0
        %v1194 = vperm.slane %v1165, 0
        %v1195 = vperm.slane %v1166, 0
        %v1196 = vmul.f32 %v1175, %v1192
        %v1197 = vmul.f32 %v1175, %v1193
        %v1198 = vmul.f32 %v1175, %v1194
        %v1199 = vmul.f32 %v1175, %v1195
        %v1200 = vmul.f32 %v1180, %v1192
        %v1201 = vmul.f32 %v1180, %v1193
        %v1202 = vmul.f32 %v1180, %v1194
        %v1203 = vmul.f32 %v1180, %v1195
        %v1204 = vmul.f32 %v1185, %v1192
        %v1205 = vmul.f32 %v1185, %v1193
        %v1206 = vmul.f32 %v1185, %v1194
        %v1207 = vmul.f32 %v1185, %v1195
        %v1208 = vmul.f32 %v1190, %v1192
        %v1209 = vmul.f32 %v1190, %v1193
        %v1210 = vmul.f32 %v1190, %v1194
        %v1211 = vmul.f32 %v1190, %v1195
        %1212 = vset.pattern.permute.xlu0 1
        %1213 = vperm.xlu0 %1212, %v1168
        %v1214 = vpop.permute.xlu0 %1213
        %1216 = vset.pattern.permute.xlu0 1
        %1217 = vperm.xlu0 %1216, %v1169
        %v1218 = vpop.permute.xlu0 %1217
        %1220 = vset.pattern.permute.xlu0 1
        %1221 = vperm.xlu0 %1220, %v1170
        %v1222 = vpop.permute.xlu0 %1221
        %1224 = vset.pattern.permute.xlu0 1
        %1225 = vperm.xlu0 %1224, %v1171
        %v1226 = vpop.permute.xlu0 %1225
        %v1228 = vperm.slane %v1163, 1
        %v1229 = vperm.slane %v1164, 1
        %v1230 = vperm.slane %v1165, 1
        %v1231 = vperm.slane %v1166, 1
        %v1232 = vmul.f32 %v1214, %v1228
        %v1233 = vmul.f32 %v1214, %v1229
        %v1234 = vmul.f32 %v1214, %v1230
        %v1235 = vmul.f32 %v1214, %v1231
        %v1236 = vmul.f32 %v1218, %v1228
        %v1237 = vmul.f32 %v1218, %v1229
        %v1238 = vmul.f32 %v1218, %v1230
        %v1239 = vmul.f32 %v1218, %v1231
        %v1240 = vmul.f32 %v1222, %v1228
        %v1241 = vmul.f32 %v1222, %v1229
        %v1242 = vmul.f32 %v1222, %v1230
        %v1243 = vmul.f32 %v1222, %v1231
        %v1244 = vmul.f32 %v1226, %v1228
        %v1245 = vmul.f32 %v1226, %v1229
        %v1246 = vmul.f32 %v1226, %v1230
        %v1247 = vmul.f32 %v1226, %v1231
        %v1248 = vadd.f32 %v1196, %v1232
        %v1249 = vadd.f32 %v1197, %v1233
        %v1250 = vadd.f32 %v1198, %v1234
        %v1251 = vadd.f32 %v1199, %v1235
        %v1252 = vadd.f32 %v1200, %v1236
        %v1253 = vadd.f32 %v1201, %v1237
        %v1254 = vadd.f32 %v1202, %v1238
        %v1255 = vadd.f32 %v1203, %v1239
        %v1256 = vadd.f32 %v1204, %v1240
        %v1257 = vadd.f32 %v1205, %v1241
        %v1258 = vadd.f32 %v1206, %v1242
        %v1259 = vadd.f32 %v1207, %v1243
        %v1260 = vadd.f32 %v1208, %v1244
        %v1261 = vadd.f32 %v1209, %v1245
        %v1262 = vadd.f32 %v1210, %v1246
        %v1263 = vadd.f32 %v1211, %v1247
        %1264 = vset.pattern.permute.xlu0 2
        %1265 = vperm.xlu0 %1264, %v1168
        %v1266 = vpop.permute.xlu0 %1265
        %1268 = vset.pattern.permute.xlu0 2
        %1269 = vperm.xlu0 %1268, %v1169
        %v1270 = vpop.permute.xlu0 %1269
        %1272 = vset.pattern.permute.xlu0 2
        %1273 = vperm.xlu0 %1272, %v1170
        %v1274 = vpop.permute.xlu0 %1273
        %1276 = vset.pattern.permute.xlu0 2
        %1277 = vperm.xlu0 %1276, %v1171
        %v1278 = vpop.permute.xlu0 %1277
        %v1280 = vperm.slane %v1163, 2
        %v1281 = vperm.slane %v1164, 2
        %v1282 = vperm.slane %v1165, 2
        %v1283 = vperm.slane %v1166, 2
        %v1284 = vmul.f32 %v1266, %v1280
        %v1285 = vmul.f32 %v1266, %v1281
        %v1286 = vmul.f32 %v1266, %v1282
        %v1287 = vmul.f32 %v1266, %v1283
        %v1288 = vmul.f32 %v1270, %v1280
        %v1289 = vmul.f32 %v1270, %v1281
        %v1290 = vmul.f32 %v1270, %v1282
        %v1291 = vmul.f32 %v1270, %v1283
        %v1292 = vmul.f32 %v1274, %v1280
        %v1293 = vmul.f32 %v1274, %v1281
        %v1294 = vmul.f32 %v1274, %v1282
        %v1295 = vmul.f32 %v1274, %v1283
        %v1296 = vmul.f32 %v1278, %v1280
        %v1297 = vmul.f32 %v1278, %v1281
        %v1298 = vmul.f32 %v1278, %v1282
        %v1299 = vmul.f32 %v1278, %v1283
        %v1300 = vadd.f32 %v1248, %v1284
        %v1301 = vadd.f32 %v1249, %v1285
        %v1302 = vadd.f32 %v1250, %v1286
        %v1303 = vadd.f32 %v1251, %v1287
        %v1304 = vadd.f32 %v1252, %v1288
        %v1305 = vadd.f32 %v1253, %v1289
        %v1306 = vadd.f32 %v1254, %v1290
        %v1307 = vadd.f32 %v1255, %v1291
        %v1308 = vadd.f32 %v1256, %v1292
        %v1309 = vadd.f32 %v1257, %v1293
        %v1310 = vadd.f32 %v1258, %v1294
        %v1311 = vadd.f32 %v1259, %v1295
        %v1312 = vadd.f32 %v1260, %v1296
        %v1313 = vadd.f32 %v1261, %v1297
        %v1314 = vadd.f32 %v1262, %v1298
        %v1315 = vadd.f32 %v1263, %v1299
        %v1316 = vadd.f32 %v628, %v1300
        %v1317 = vadd.f32 %v667, %v1301
        %v1318 = vadd.f32 %v706, %v1302
        %v1319 = vadd.f32 %v745, %v1303
        %v1320 = vadd.f32 %v630, %v1304
        %v1321 = vadd.f32 %v669, %v1305
        %v1322 = vadd.f32 %v708, %v1306
        %v1323 = vadd.f32 %v747, %v1307
        %v1324 = vadd.f32 %v633, %v1308
        %v1325 = vadd.f32 %v672, %v1309
        %v1326 = vadd.f32 %v711, %v1310
        %v1327 = vadd.f32 %v750, %v1311
        %v1328 = vadd.f32 %v635, %v1312
        %v1329 = vadd.f32 %v674, %v1313
        %v1330 = vadd.f32 %v713, %v1314
        %v1331 = vadd.f32 %v752, %v1315
        %v1332 = vmax.f32 %v1316, 0.0
        %v1333 = vmax.f32 %v1317, 0.0
        %v1334 = vmax.f32 %v1318, 0.0
        %v1335 = vmax.f32 %v1319, 0.0
        %v1336 = vmax.f32 %v1320, 0.0
        %v1337 = vmax.f32 %v1321, 0.0
        %v1338 = vmax.f32 %v1322, 0.0
        %v1339 = vmax.f32 %v1323, 0.0
        %v1340 = vmax.f32 %v1324, 0.0
        %v1341 = vmax.f32 %v1325, 0.0
        %v1342 = vmax.f32 %v1326, 0.0
        %v1343 = vmax.f32 %v1327, 0.0
        %v1344 = vmax.f32 %v1328, 0.0
        %v1345 = vmax.f32 %v1329, 0.0
        %v1346 = vmax.f32 %v1330, 0.0
        %v1347 = vmax.f32 %v1331, 0.0
        %s1348 = scalar_lea.vmem [#allocation5], 16
        %v1349 = vld [vmem:[%s1348] sm:$0xf]
        %v1350 = vld [vmem:[%s1348 + $0x4] sm:$0xf]
        %v1351 = vld [vmem:[%s1348 + $0x8] sm:$0xf]
        %v1352 = vld [vmem:[%s1348 + $0xc] sm:$0xf]
        %v1353 = vpack.c.bf16 %v1336, %v1332
        %v1354 = vpack.c.bf16 %v1337, %v1333
        %v1355 = vpack.c.bf16 %v1338, %v1334
        %v1356 = vpack.c.bf16 %v1339, %v1335
        %v1357 = vpack.c.bf16 %v1344, %v1340
        %v1358 = vpack.c.bf16 %v1345, %v1341
        %v1359 = vpack.c.bf16 %v1346, %v1342
        %v1360 = vpack.c.bf16 %v1347, %v1343
        %s1361 = scalar_lea.vmem %s5, 32
        %v1362 = vld [vmem:[%s1361] sm:$0xff]
        %v1363 = vld [vmem:[%s1361 + $0x8] sm:$0xff]
        %v1364 = vld [vmem:[%s1361 + $0x10] sm:$0xff]
        %v1365 = vld [vmem:[%s1361 + $0x18] sm:$0xff]
        %1367 = vset.pattern.permute.xlu0 0
        %1368 = vperm.xlu0 %1367, %v1362
        %v1369 = vpop.permute.xlu0 %1368
        %1372 = vset.pattern.permute.xlu0 0
        %1373 = vperm.xlu0 %1372, %v1363
        %v1374 = vpop.permute.xlu0 %1373
        %1377 = vset.pattern.permute.xlu0 0
        %1378 = vperm.xlu0 %1377, %v1364
        %v1379 = vpop.permute.xlu0 %1378
        %1382 = vset.pattern.permute.xlu0 0
        %1383 = vperm.xlu0 %1382, %v1365
        %v1384 = vpop.permute.xlu0 %1383
        %v1390 = vunpack.c.l.b16 %v1349
        %v1391 = vunpack.c.l.b16 %v1350
        %v1392 = vunpack.c.l.b16 %v1351
        %v1393 = vunpack.c.l.b16 %v1352
        %v1394 = vpack.c.b16 %v1391, %v1390
        %v1395 = vpack.c.b16 %v1393, %v1392
        %v1397 = vsel %vm994, %v1394, 0
        %v1400 = vsel %vm994, %v1395, 0
        %1402 = vmatpush.bf16.msra.mxu0 0
        %1403 = vmatpush.bf16.msra.mxu0 0
        %1404 = vmatpush.bf16.msra.mxu0 0
        %1405 = vmatpush.bf16.msra.mxu0 0
        %1406 = vmatpush.bf16.msra.mxu0 0
        %1407 = vmatpush.bf16.msra.mxu0 0
        %1408 = vmatpush.bf16.msra.mxu0 %v1357
        %1409 = vmatpush.bf16.msra.mxu0 %v1353
        %1410 = vmatmul.bf16.gmra.mxu0 %v1397
        %v1411 = vpop.f32.mrf.mxu0
        %v1412 = vadd.f32 %v1369, %v1411
        %v1413 = vpop.f32.mrf.mxu0
        %v1414 = vadd.f32 %v1374, %v1413
        %1415 = vmatmul.bf16.gmra.mxu0 %v1400
        %v1416 = vpop.f32.mrf.mxu0
        %v1417 = vadd.f32 %v1379, %v1416
        %v1418 = vpop.f32.mrf.mxu0
        %v1419 = vadd.f32 %v1384, %v1418
        %1420 = vdwg.mxu0
        %1421 = vmatpush.bf16.msra.mxu0 0
        %1422 = vmatpush.bf16.msra.mxu0 0
        %1423 = vmatpush.bf16.msra.mxu0 0
        %1424 = vmatpush.bf16.msra.mxu0 0
        %1425 = vmatpush.bf16.msra.mxu0 0
        %1426 = vmatpush.bf16.msra.mxu0 0
        %1427 = vmatpush.bf16.msra.mxu0 %v1358
        %1428 = vmatpush.bf16.msra.mxu0 %v1354
        %1429 = vmatmul.bf16.gmra.mxu0 %v1397
        %v1430 = vpop.f32.mrf.mxu0
        %v1431 = vadd.f32 %v1369, %v1430
        %v1432 = vpop.f32.mrf.mxu0
        %v1433 = vadd.f32 %v1374, %v1432
        %1434 = vmatmul.bf16.gmra.mxu0 %v1400
        %v1435 = vpop.f32.mrf.mxu0
        %v1436 = vadd.f32 %v1379, %v1435
        %v1437 = vpop.f32.mrf.mxu0
        %v1438 = vadd.f32 %v1384, %v1437
        %1439 = vdwg.mxu0
        %1440 = vmatpush.bf16.msra.mxu0 0
        %1441 = vmatpush.bf16.msra.mxu0 0
        %1442 = vmatpush.bf16.msra.mxu0 0
        %1443 = vmatpush.bf16.msra.mxu0 0
        %1444 = vmatpush.bf16.msra.mxu0 0
        %1445 = vmatpush.bf16.msra.mxu0 0
        %1446 = vmatpush.bf16.msra.mxu0 %v1359
        %1447 = vmatpush.bf16.msra.mxu0 %v1355
        %1448 = vmatmul.bf16.gmra.mxu0 %v1397
        %v1449 = vpop.f32.mrf.mxu0
        %v1450 = vadd.f32 %v1369, %v1449
        %v1451 = vpop.f32.mrf.mxu0
        %v1452 = vadd.f32 %v1374, %v1451
        %1453 = vmatmul.bf16.gmra.mxu0 %v1400
        %v1454 = vpop.f32.mrf.mxu0
        %v1455 = vadd.f32 %v1379, %v1454
        %v1456 = vpop.f32.mrf.mxu0
        %v1457 = vadd.f32 %v1384, %v1456
        %1458 = vdwg.mxu0
        %1459 = vmatpush.bf16.msra.mxu0 0
        %1460 = vmatpush.bf16.msra.mxu0 0
        %1461 = vmatpush.bf16.msra.mxu0 0
        %1462 = vmatpush.bf16.msra.mxu0 0
        %1463 = vmatpush.bf16.msra.mxu0 0
        %1464 = vmatpush.bf16.msra.mxu0 0
        %1465 = vmatpush.bf16.msra.mxu0 %v1360
        %1466 = vmatpush.bf16.msra.mxu0 %v1356
        %1467 = vmatmul.bf16.gmra.mxu0 %v1397
        %v1468 = vpop.f32.mrf.mxu0
        %v1469 = vadd.f32 %v1369, %v1468
        %v1470 = vpop.f32.mrf.mxu0
        %v1471 = vadd.f32 %v1374, %v1470
        %1472 = vmatmul.bf16.gmra.mxu0 %v1400
        %v1473 = vpop.f32.mrf.mxu0
        %v1474 = vadd.f32 %v1379, %v1473
        %v1475 = vpop.f32.mrf.mxu0
        %v1476 = vadd.f32 %v1384, %v1475
        %1477 = vdwg.mxu0
        %v1478 = vmax.f32 %v1412, 0.0
        %v1479 = vmax.f32 %v1431, 0.0
        %v1480 = vmax.f32 %v1450, 0.0
        %v1481 = vmax.f32 %v1469, 0.0
        %v1482 = vmax.f32 %v1414, 0.0
        %v1483 = vmax.f32 %v1433, 0.0
        %v1484 = vmax.f32 %v1452, 0.0
        %v1485 = vmax.f32 %v1471, 0.0
        %v1486 = vmax.f32 %v1417, 0.0
        %v1487 = vmax.f32 %v1436, 0.0
        %v1488 = vmax.f32 %v1455, 0.0
        %v1489 = vmax.f32 %v1474, 0.0
        %v1490 = vmax.f32 %v1419, 0.0
        %v1491 = vmax.f32 %v1438, 0.0
        %v1492 = vmax.f32 %v1457, 0.0
        %v1493 = vmax.f32 %v1476, 0.0
        %s1494 = scalar_lea.vmem %s6, 2
        %v1495 = vld [vmem:[%s1494] sm:$0x3]
        %v1496 = vpack.c.bf16 %v1482, %v1478
        %v1497 = vpack.c.bf16 %v1483, %v1479
        %v1498 = vpack.c.bf16 %v1484, %v1480
        %v1499 = vpack.c.bf16 %v1485, %v1481
        %v1500 = vpack.c.bf16 %v1490, %v1486
        %v1501 = vpack.c.bf16 %v1491, %v1487
        %v1502 = vpack.c.bf16 %v1492, %v1488
        %v1503 = vpack.c.bf16 %v1493, %v1489
        %s1504 = scalar_lea.vmem %s7, 4
        %v1505 = vld [vmem:[%s1504] sm:$0x7]
        %1507 = vset.pattern.permute.xlu0 0
        %1508 = vperm.xlu0 %1507, %v1505
        %v1509 = vpop.permute.xlu0 %1508
        %v1512 = vsel %vm994, %v1495, 0
        %1514 = vmatpush.bf16.msra.mxu0 0
        %1515 = vmatpush.bf16.msra.mxu0 0
        %1516 = vmatpush.bf16.msra.mxu0 0
        %1517 = vmatpush.bf16.msra.mxu0 0
        %1518 = vmatpush.bf16.msra.mxu0 0
        %1519 = vmatpush.bf16.msra.mxu0 0
        %1520 = vmatpush.bf16.msra.mxu0 %v1500
        %1521 = vmatpush.bf16.msra.mxu0 %v1496
        %1522 = vmatmul.bf16.gmra.mxu0 %v1512
        %v1523 = vpop.f32.mrf.mxu0
        %v1524 = vadd.f32 %v1509, %v1523
        %v1525 = vpop.f32.mrf.mxu0
        %1526 = vdwg.mxu0
        %1527 = vmatpush.bf16.msra.mxu0 0
        %1528 = vmatpush.bf16.msra.mxu0 0
        %1529 = vmatpush.bf16.msra.mxu0 0
        %1530 = vmatpush.bf16.msra.mxu0 0
        %1531 = vmatpush.bf16.msra.mxu0 0
        %1532 = vmatpush.bf16.msra.mxu0 0
        %1533 = vmatpush.bf16.msra.mxu0 %v1501
        %1534 = vmatpush.bf16.msra.mxu0 %v1497
        %1535 = vmatmul.bf16.gmra.mxu0 %v1512
        %v1536 = vpop.f32.mrf.mxu0
        %v1537 = vadd.f32 %v1509, %v1536
        %v1538 = vpop.f32.mrf.mxu0
        %1539 = vdwg.mxu0
        %1540 = vmatpush.bf16.msra.mxu0 0
        %1541 = vmatpush.bf16.msra.mxu0 0
        %1542 = vmatpush.bf16.msra.mxu0 0
        %1543 = vmatpush.bf16.msra.mxu0 0
        %1544 = vmatpush.bf16.msra.mxu0 0
        %1545 = vmatpush.bf16.msra.mxu0 0
        %1546 = vmatpush.bf16.msra.mxu0 %v1502
        %1547 = vmatpush.bf16.msra.mxu0 %v1498
        %1548 = vmatmul.bf16.gmra.mxu0 %v1512
        %v1549 = vpop.f32.mrf.mxu0
        %v1550 = vadd.f32 %v1509, %v1549
        %v1551 = vpop.f32.mrf.mxu0
        %1552 = vdwg.mxu0
        %1553 = vmatpush.bf16.msra.mxu0 0
        %1554 = vmatpush.bf16.msra.mxu0 0
        %1555 = vmatpush.bf16.msra.mxu0 0
        %1556 = vmatpush.bf16.msra.mxu0 0
        %1557 = vmatpush.bf16.msra.mxu0 0
        %1558 = vmatpush.bf16.msra.mxu0 0
        %1559 = vmatpush.bf16.msra.mxu0 %v1503
        %1560 = vmatpush.bf16.msra.mxu0 %v1499
        %1561 = vmatmul.bf16.gmra.mxu0 %v1512
        %v1562 = vpop.f32.mrf.mxu0
        %v1563 = vadd.f32 %v1509, %v1562
        %v1564 = vpop.f32.mrf.mxu0
        %1565 = vdwg.mxu0
        %v1566 = vadd.f32 %v1524, %v1163
        %v1567 = vadd.f32 %v1537, %v1164
        %v1568 = vadd.f32 %v1550, %v1165
        %v1569 = vadd.f32 %v1563, %v1166
        %s1570 = scalar_lea.vmem %s3, 64
        %v1571 = vld [vmem:[%s1570] sm:$0xff]
        %v1572 = vld [vmem:[%s1570 + $0x8] sm:$0xff]
        %v1573 = vld [vmem:[%s1570 + $0x10] sm:$0xff]
        %v1574 = vld [vmem:[%s1570 + $0x18] sm:$0xff]
        %1576 = vset.pattern.permute.xlu0 0
        %1577 = vperm.xlu0 %1576, %v1571
        %v1578 = vpop.permute.xlu0 %1577
        %1581 = vset.pattern.permute.xlu0 0
        %1582 = vperm.xlu0 %1581, %v1572
        %v1583 = vpop.permute.xlu0 %1582
        %1586 = vset.pattern.permute.xlu0 0
        %1587 = vperm.xlu0 %1586, %v1573
        %v1588 = vpop.permute.xlu0 %1587
        %1591 = vset.pattern.permute.xlu0 0
        %1592 = vperm.xlu0 %1591, %v1574
        %v1593 = vpop.permute.xlu0 %1592
        %v1595 = vperm.slane %v1566, 0
        %v1596 = vperm.slane %v1567, 0
        %v1597 = vperm.slane %v1568, 0
        %v1598 = vperm.slane %v1569, 0
        %v1599 = vmul.f32 %v1578, %v1595
        %v1600 = vmul.f32 %v1578, %v1596
        %v1601 = vmul.f32 %v1578, %v1597
        %v1602 = vmul.f32 %v1578, %v1598
        %v1603 = vmul.f32 %v1583, %v1595
        %v1604 = vmul.f32 %v1583, %v1596
        %v1605 = vmul.f32 %v1583, %v1597
        %v1606 = vmul.f32 %v1583, %v1598
        %v1607 = vmul.f32 %v1588, %v1595
        %v1608 = vmul.f32 %v1588, %v1596
        %v1609 = vmul.f32 %v1588, %v1597
        %v1610 = vmul.f32 %v1588, %v1598
        %v1611 = vmul.f32 %v1593, %v1595
        %v1612 = vmul.f32 %v1593, %v1596
        %v1613 = vmul.f32 %v1593, %v1597
        %v1614 = vmul.f32 %v1593, %v1598
        %1615 = vset.pattern.permute.xlu0 1
        %1616 = vperm.xlu0 %1615, %v1571
        %v1617 = vpop.permute.xlu0 %1616
        %1619 = vset.pattern.permute.xlu0 1
        %1620 = vperm.xlu0 %1619, %v1572
        %v1621 = vpop.permute.xlu0 %1620
        %1623 = vset.pattern.permute.xlu0 1
        %1624 = vperm.xlu0 %1623, %v1573
        %v1625 = vpop.permute.xlu0 %1624
        %1627 = vset.pattern.permute.xlu0 1
        %1628 = vperm.xlu0 %1627, %v1574
        %v1629 = vpop.permute.xlu0 %1628
        %v1631 = vperm.slane %v1566, 1
        %v1632 = vperm.slane %v1567, 1
        %v1633 = vperm.slane %v1568, 1
        %v1634 = vperm.slane %v1569, 1
        %v1635 = vmul.f32 %v1617, %v1631
        %v1636 = vmul.f32 %v1617, %v1632
        %v1637 = vmul.f32 %v1617, %v1633
        %v1638 = vmul.f32 %v1617, %v1634
        %v1639 = vmul.f32 %v1621, %v1631
        %v1640 = vmul.f32 %v1621, %v1632
        %v1641 = vmul.f32 %v1621, %v1633
        %v1642 = vmul.f32 %v1621, %v1634
        %v1643 = vmul.f32 %v1625, %v1631
        %v1644 = vmul.f32 %v1625, %v1632
        %v1645 = vmul.f32 %v1625, %v1633
        %v1646 = vmul.f32 %v1625, %v1634
        %v1647 = vmul.f32 %v1629, %v1631
        %v1648 = vmul.f32 %v1629, %v1632
        %v1649 = vmul.f32 %v1629, %v1633
        %v1650 = vmul.f32 %v1629, %v1634
        %v1651 = vadd.f32 %v1599, %v1635
        %v1652 = vadd.f32 %v1600, %v1636
        %v1653 = vadd.f32 %v1601, %v1637
        %v1654 = vadd.f32 %v1602, %v1638
        %v1655 = vadd.f32 %v1603, %v1639
        %v1656 = vadd.f32 %v1604, %v1640
        %v1657 = vadd.f32 %v1605, %v1641
        %v1658 = vadd.f32 %v1606, %v1642
        %v1659 = vadd.f32 %v1607, %v1643
        %v1660 = vadd.f32 %v1608, %v1644
        %v1661 = vadd.f32 %v1609, %v1645
        %v1662 = vadd.f32 %v1610, %v1646
        %v1663 = vadd.f32 %v1611, %v1647
        %v1664 = vadd.f32 %v1612, %v1648
        %v1665 = vadd.f32 %v1613, %v1649
        %v1666 = vadd.f32 %v1614, %v1650
        %1667 = vset.pattern.permute.xlu0 2
        %1668 = vperm.xlu0 %1667, %v1571
        %v1669 = vpop.permute.xlu0 %1668
        %1671 = vset.pattern.permute.xlu0 2
        %1672 = vperm.xlu0 %1671, %v1572
        %v1673 = vpop.permute.xlu0 %1672
        %1675 = vset.pattern.permute.xlu0 2
        %1676 = vperm.xlu0 %1675, %v1573
        %v1677 = vpop.permute.xlu0 %1676
        %1679 = vset.pattern.permute.xlu0 2
        %1680 = vperm.xlu0 %1679, %v1574
        %v1681 = vpop.permute.xlu0 %1680
        %v1683 = vperm.slane %v1566, 2
        %v1684 = vperm.slane %v1567, 2
        %v1685 = vperm.slane %v1568, 2
        %v1686 = vperm.slane %v1569, 2
        %v1687 = vmul.f32 %v1669, %v1683
        %v1688 = vmul.f32 %v1669, %v1684
        %v1689 = vmul.f32 %v1669, %v1685
        %v1690 = vmul.f32 %v1669, %v1686
        %v1691 = vmul.f32 %v1673, %v1683
        %v1692 = vmul.f32 %v1673, %v1684
        %v1693 = vmul.f32 %v1673, %v1685
        %v1694 = vmul.f32 %v1673, %v1686
        %v1695 = vmul.f32 %v1677, %v1683
        %v1696 = vmul.f32 %v1677, %v1684
        %v1697 = vmul.f32 %v1677, %v1685
        %v1698 = vmul.f32 %v1677, %v1686
        %v1699 = vmul.f32 %v1681, %v1683
        %v1700 = vmul.f32 %v1681, %v1684
        %v1701 = vmul.f32 %v1681, %v1685
        %v1702 = vmul.f32 %v1681, %v1686
        %v1703 = vadd.f32 %v1651, %v1687
        %v1704 = vadd.f32 %v1652, %v1688
        %v1705 = vadd.f32 %v1653, %v1689
        %v1706 = vadd.f32 %v1654, %v1690
        %v1707 = vadd.f32 %v1655, %v1691
        %v1708 = vadd.f32 %v1656, %v1692
        %v1709 = vadd.f32 %v1657, %v1693
        %v1710 = vadd.f32 %v1658, %v1694
        %v1711 = vadd.f32 %v1659, %v1695
        %v1712 = vadd.f32 %v1660, %v1696
        %v1713 = vadd.f32 %v1661, %v1697
        %v1714 = vadd.f32 %v1662, %v1698
        %v1715 = vadd.f32 %v1663, %v1699
        %v1716 = vadd.f32 %v1664, %v1700
        %v1717 = vadd.f32 %v1665, %v1701
        %v1718 = vadd.f32 %v1666, %v1702
        %v1719 = vadd.f32 %v638, %v1703
        %v1720 = vadd.f32 %v677, %v1704
        %v1721 = vadd.f32 %v716, %v1705
        %v1722 = vadd.f32 %v755, %v1706
        %v1723 = vadd.f32 %v640, %v1707
        %v1724 = vadd.f32 %v679, %v1708
        %v1725 = vadd.f32 %v718, %v1709
        %v1726 = vadd.f32 %v757, %v1710
        %v1727 = vadd.f32 %v643, %v1711
        %v1728 = vadd.f32 %v682, %v1712
        %v1729 = vadd.f32 %v721, %v1713
        %v1730 = vadd.f32 %v760, %v1714
        %v1731 = vadd.f32 %v645, %v1715
        %v1732 = vadd.f32 %v684, %v1716
        %v1733 = vadd.f32 %v723, %v1717
        %v1734 = vadd.f32 %v762, %v1718
        %v1735 = vmax.f32 %v1719, 0.0
        %v1736 = vmax.f32 %v1720, 0.0
        %v1737 = vmax.f32 %v1721, 0.0
        %v1738 = vmax.f32 %v1722, 0.0
        %v1739 = vmax.f32 %v1723, 0.0
        %v1740 = vmax.f32 %v1724, 0.0
        %v1741 = vmax.f32 %v1725, 0.0
        %v1742 = vmax.f32 %v1726, 0.0
        %v1743 = vmax.f32 %v1727, 0.0
        %v1744 = vmax.f32 %v1728, 0.0
        %v1745 = vmax.f32 %v1729, 0.0
        %v1746 = vmax.f32 %v1730, 0.0
        %v1747 = vmax.f32 %v1731, 0.0
        %v1748 = vmax.f32 %v1732, 0.0
        %v1749 = vmax.f32 %v1733, 0.0
        %v1750 = vmax.f32 %v1734, 0.0
        %s1751 = scalar_lea.vmem [#allocation5], 32
        %v1752 = vld [vmem:[%s1751] sm:$0xf]
        %v1753 = vld [vmem:[%s1751 + $0x4] sm:$0xf]
        %v1754 = vld [vmem:[%s1751 + $0x8] sm:$0xf]
        %v1755 = vld [vmem:[%s1751 + $0xc] sm:$0xf]
        %v1756 = vpack.c.bf16 %v1739, %v1735
        %v1757 = vpack.c.bf16 %v1740, %v1736
        %v1758 = vpack.c.bf16 %v1741, %v1737
        %v1759 = vpack.c.bf16 %v1742, %v1738
        %v1760 = vpack.c.bf16 %v1747, %v1743
        %v1761 = vpack.c.bf16 %v1748, %v1744
        %v1762 = vpack.c.bf16 %v1749, %v1745
        %v1763 = vpack.c.bf16 %v1750, %v1746
        %s1764 = scalar_lea.vmem %s5, 64
        %v1765 = vld [vmem:[%s1764] sm:$0xff]
        %v1766 = vld [vmem:[%s1764 + $0x8] sm:$0xff]
        %v1767 = vld [vmem:[%s1764 + $0x10] sm:$0xff]
        %v1768 = vld [vmem:[%s1764 + $0x18] sm:$0xff]
        %1770 = vset.pattern.permute.xlu0 0
        %1771 = vperm.xlu0 %1770, %v1765
        %v1772 = vpop.permute.xlu0 %1771
        %1775 = vset.pattern.permute.xlu0 0
        %1776 = vperm.xlu0 %1775, %v1766
        %v1777 = vpop.permute.xlu0 %1776
        %1780 = vset.pattern.permute.xlu0 0
        %1781 = vperm.xlu0 %1780, %v1767
        %v1782 = vpop.permute.xlu0 %1781
        %1785 = vset.pattern.permute.xlu0 0
        %1786 = vperm.xlu0 %1785, %v1768
        %v1787 = vpop.permute.xlu0 %1786
        %v1793 = vunpack.c.l.b16 %v1752
        %v1794 = vunpack.c.l.b16 %v1753
        %v1795 = vunpack.c.l.b16 %v1754
        %v1796 = vunpack.c.l.b16 %v1755
        %v1797 = vpack.c.b16 %v1794, %v1793
        %v1798 = vpack.c.b16 %v1796, %v1795
        %v1800 = vsel %vm994, %v1797, 0
        %v1803 = vsel %vm994, %v1798, 0
        %1805 = vmatpush.bf16.msra.mxu0 0
        %1806 = vmatpush.bf16.msra.mxu0 0
        %1807 = vmatpush.bf16.msra.mxu0 0
        %1808 = vmatpush.bf16.msra.mxu0 0
        %1809 = vmatpush.bf16.msra.mxu0 0
        %1810 = vmatpush.bf16.msra.mxu0 0
        %1811 = vmatpush.bf16.msra.mxu0 %v1760
        %1812 = vmatpush.bf16.msra.mxu0 %v1756
        %1813 = vmatmul.bf16.gmra.mxu0 %v1800
        %v1814 = vpop.f32.mrf.mxu0
        %v1815 = vadd.f32 %v1772, %v1814
        %v1816 = vpop.f32.mrf.mxu0
        %v1817 = vadd.f32 %v1777, %v1816
        %1818 = vmatmul.bf16.gmra.mxu0 %v1803
        %v1819 = vpop.f32.mrf.mxu0
        %v1820 = vadd.f32 %v1782, %v1819
        %v1821 = vpop.f32.mrf.mxu0
        %v1822 = vadd.f32 %v1787, %v1821
        %1823 = vdwg.mxu0
        %1824 = vmatpush.bf16.msra.mxu0 0
        %1825 = vmatpush.bf16.msra.mxu0 0
        %1826 = vmatpush.bf16.msra.mxu0 0
        %1827 = vmatpush.bf16.msra.mxu0 0
        %1828 = vmatpush.bf16.msra.mxu0 0
        %1829 = vmatpush.bf16.msra.mxu0 0
        %1830 = vmatpush.bf16.msra.mxu0 %v1761
        %1831 = vmatpush.bf16.msra.mxu0 %v1757
        %1832 = vmatmul.bf16.gmra.mxu0 %v1800
        %v1833 = vpop.f32.mrf.mxu0
        %v1834 = vadd.f32 %v1772, %v1833
        %v1835 = vpop.f32.mrf.mxu0
        %v1836 = vadd.f32 %v1777, %v1835
        %1837 = vmatmul.bf16.gmra.mxu0 %v1803
        %v1838 = vpop.f32.mrf.mxu0
        %v1839 = vadd.f32 %v1782, %v1838
        %v1840 = vpop.f32.mrf.mxu0
        %v1841 = vadd.f32 %v1787, %v1840
        %1842 = vdwg.mxu0
        %1843 = vmatpush.bf16.msra.mxu0 0
        %1844 = vmatpush.bf16.msra.mxu0 0
        %1845 = vmatpush.bf16.msra.mxu0 0
        %1846 = vmatpush.bf16.msra.mxu0 0
        %1847 = vmatpush.bf16.msra.mxu0 0
        %1848 = vmatpush.bf16.msra.mxu0 0
        %1849 = vmatpush.bf16.msra.mxu0 %v1762
        %1850 = vmatpush.bf16.msra.mxu0 %v1758
        %1851 = vmatmul.bf16.gmra.mxu0 %v1800
        %v1852 = vpop.f32.mrf.mxu0
        %v1853 = vadd.f32 %v1772, %v1852
        %v1854 = vpop.f32.mrf.mxu0
        %v1855 = vadd.f32 %v1777, %v1854
        %1856 = vmatmul.bf16.gmra.mxu0 %v1803
        %v1857 = vpop.f32.mrf.mxu0
        %v1858 = vadd.f32 %v1782, %v1857
        %v1859 = vpop.f32.mrf.mxu0
        %v1860 = vadd.f32 %v1787, %v1859
        %1861 = vdwg.mxu0
        %1862 = vmatpush.bf16.msra.mxu0 0
        %1863 = vmatpush.bf16.msra.mxu0 0
        %1864 = vmatpush.bf16.msra.mxu0 0
        %1865 = vmatpush.bf16.msra.mxu0 0
        %1866 = vmatpush.bf16.msra.mxu0 0
        %1867 = vmatpush.bf16.msra.mxu0 0
        %1868 = vmatpush.bf16.msra.mxu0 %v1763
        %1869 = vmatpush.bf16.msra.mxu0 %v1759
        %1870 = vmatmul.bf16.gmra.mxu0 %v1800
        %v1871 = vpop.f32.mrf.mxu0
        %v1872 = vadd.f32 %v1772, %v1871
        %v1873 = vpop.f32.mrf.mxu0
        %v1874 = vadd.f32 %v1777, %v1873
        %1875 = vmatmul.bf16.gmra.mxu0 %v1803
        %v1876 = vpop.f32.mrf.mxu0
        %v1877 = vadd.f32 %v1782, %v1876
        %v1878 = vpop.f32.mrf.mxu0
        %v1879 = vadd.f32 %v1787, %v1878
        %1880 = vdwg.mxu0
        %v1881 = vmax.f32 %v1815, 0.0
        %v1882 = vmax.f32 %v1834, 0.0
        %v1883 = vmax.f32 %v1853, 0.0
        %v1884 = vmax.f32 %v1872, 0.0
        %v1885 = vmax.f32 %v1817, 0.0
        %v1886 = vmax.f32 %v1836, 0.0
        %v1887 = vmax.f32 %v1855, 0.0
        %v1888 = vmax.f32 %v1874, 0.0
        %v1889 = vmax.f32 %v1820, 0.0
        %v1890 = vmax.f32 %v1839, 0.0
        %v1891 = vmax.f32 %v1858, 0.0
        %v1892 = vmax.f32 %v1877, 0.0
        %v1893 = vmax.f32 %v1822, 0.0
        %v1894 = vmax.f32 %v1841, 0.0
        %v1895 = vmax.f32 %v1860, 0.0
        %v1896 = vmax.f32 %v1879, 0.0
        %s1897 = scalar_lea.vmem %s6, 4
        %v1898 = vld [vmem:[%s1897] sm:$0x3]
        %v1899 = vpack.c.bf16 %v1885, %v1881
        %v1900 = vpack.c.bf16 %v1886, %v1882
        %v1901 = vpack.c.bf16 %v1887, %v1883
        %v1902 = vpack.c.bf16 %v1888, %v1884
        %v1903 = vpack.c.bf16 %v1893, %v1889
        %v1904 = vpack.c.bf16 %v1894, %v1890
        %v1905 = vpack.c.bf16 %v1895, %v1891
        %v1906 = vpack.c.bf16 %v1896, %v1892
        %s1907 = scalar_lea.vmem %s7, 8
        %v1908 = vld [vmem:[%s1907] sm:$0x7]
        %1910 = vset.pattern.permute.xlu0 0
        %1911 = vperm.xlu0 %1910, %v1908
        %v1912 = vpop.permute.xlu0 %1911
        %v1915 = vsel %vm994, %v1898, 0
        %1917 = vmatpush.bf16.msra.mxu0 0
        %1918 = vmatpush.bf16.msra.mxu0 0
        %1919 = vmatpush.bf16.msra.mxu0 0
        %1920 = vmatpush.bf16.msra.mxu0 0
        %1921 = vmatpush.bf16.msra.mxu0 0
        %1922 = vmatpush.bf16.msra.mxu0 0
        %1923 = vmatpush.bf16.msra.mxu0 %v1903
        %1924 = vmatpush.bf16.msra.mxu0 %v1899
        %1925 = vmatmul.bf16.gmra.mxu0 %v1915
        %v1926 = vpop.f32.mrf.mxu0
        %v1927 = vadd.f32 %v1912, %v1926
        %v1928 = vpop.f32.mrf.mxu0
        %1929 = vdwg.mxu0
        %1930 = vmatpush.bf16.msra.mxu0 0
        %1931 = vmatpush.bf16.msra.mxu0 0
        %1932 = vmatpush.bf16.msra.mxu0 0
        %1933 = vmatpush.bf16.msra.mxu0 0
        %1934 = vmatpush.bf16.msra.mxu0 0
        %1935 = vmatpush.bf16.msra.mxu0 0
        %1936 = vmatpush.bf16.msra.mxu0 %v1904
        %1937 = vmatpush.bf16.msra.mxu0 %v1900
        %1938 = vmatmul.bf16.gmra.mxu0 %v1915
        %v1939 = vpop.f32.mrf.mxu0
        %v1940 = vadd.f32 %v1912, %v1939
        %v1941 = vpop.f32.mrf.mxu0
        %1942 = vdwg.mxu0
        %1943 = vmatpush.bf16.msra.mxu0 0
        %1944 = vmatpush.bf16.msra.mxu0 0
        %1945 = vmatpush.bf16.msra.mxu0 0
        %1946 = vmatpush.bf16.msra.mxu0 0
        %1947 = vmatpush.bf16.msra.mxu0 0
        %1948 = vmatpush.bf16.msra.mxu0 0
        %1949 = vmatpush.bf16.msra.mxu0 %v1905
        %1950 = vmatpush.bf16.msra.mxu0 %v1901
        %1951 = vmatmul.bf16.gmra.mxu0 %v1915
        %v1952 = vpop.f32.mrf.mxu0
        %v1953 = vadd.f32 %v1912, %v1952
        %v1954 = vpop.f32.mrf.mxu0
        %1955 = vdwg.mxu0
        %1956 = vmatpush.bf16.msra.mxu0 0
        %1957 = vmatpush.bf16.msra.mxu0 0
        %1958 = vmatpush.bf16.msra.mxu0 0
        %1959 = vmatpush.bf16.msra.mxu0 0
        %1960 = vmatpush.bf16.msra.mxu0 0
        %1961 = vmatpush.bf16.msra.mxu0 0
        %1962 = vmatpush.bf16.msra.mxu0 %v1906
        %1963 = vmatpush.bf16.msra.mxu0 %v1902
        %1964 = vmatmul.bf16.gmra.mxu0 %v1915
        %v1965 = vpop.f32.mrf.mxu0
        %v1966 = vadd.f32 %v1912, %v1965
        %v1967 = vpop.f32.mrf.mxu0
        %1968 = vdwg.mxu0
        %v1969 = vmul.f32 %v1927, 200.0
        %v1970 = vmul.f32 %v1940, 200.0
        %v1971 = vmul.f32 %v1953, 200.0
        %v1972 = vmul.f32 %v1966, 200.0
        %v1977 = vrot.slane %v1970, 4
        %v1978 = vrot.slane %v1972, 4
        %vm1979 = vcmask 1043456
        %v1980 = vsel %vm1979, %v1969, %v1977
        %v1981 = vsel %vm1979, %v1971, %v1978
        %1984 = vst [vmem:[%s358] sm:$0x77] %v1980
        %1985 = vst [vmem:[%s358 + $0x8] sm:$0x77] %v1981
        %s1986 = sand.u32 %s212, 1
        %s1987 = scalar_lea.sflag [#allocation4], %s1986
        %s1988 = sand.u32 %s212, 1
        %s1989 = smul.addr %s1988, 16
        %s1990 = scalar_lea.vmem [#allocation7], %s1989
        // Predicated region
        $region61: #{tpu_custom_call.1} parent=51 // pred_check
          %p1991 = pneg %p222
        $region62: #{tpu_custom_call.1} parent=51 // pred_check_branch
          %1993 = sbr.rel (%p1991) target = $region64
        $region63: #{tpu_custom_call.1} parent=51 // pred_region
          %s1994 = smul.u32 4, %s26
          %1996 = vsyncadd %s1987, 0
          %s1997 = smul.addr %s1994, 4
          %s1998 = scalar_lea.hbm %s8, %s1997
          %s2000 = sshll.u32 %s1990, 4
          %s2001 = int_to_ptr.vmem [resolvable:$true] %s2000
          %s2002 = sshll.u32 %s1998, 4
          %s2003 = int_to_ptr.hbm [resolvable:$true] %s2002
          %2005 = dma.vmem_to_hbm [thread:$0]  %s2001, 256, %s2003, %s1987
        $region64: #{tpu_custom_call.1} parent=51 // pred_fallthru
          _
      $region52: #{tpu_custom_call.1} parent=5 // pred_fallthru
        _
      %p2006 = scmp.le.s32.totalorder 2, %s21
      // Predicated region
      $region65: #{tpu_custom_call.1} parent=5 // pred_check
        %p2007 = pneg %p2006
      $region66: #{tpu_custom_call.1} parent=5 // pred_check_branch
        %2009 = sbr.rel (%p2007) target = $region68
      $region67: #{tpu_custom_call.1} parent=5 // pred_region
        %s2010 = ssub.s32 %s21, 2
        // Predicated region
        $region69: #{tpu_custom_call.1} parent=67 // pred_check
          %p2011 = pneg %p228
        $region70: #{tpu_custom_call.1} parent=67 // pred_check_branch
          %2013 = sbr.rel (%p2011) target = $region72
        $region71: #{tpu_custom_call.1} parent=67 // pred_region
          %s2014 = sand.u32 %s213, 1
          %s2015 = scalar_lea.sflag [#allocation4], %s2014
          %s2016 = sand.u32 %s213, 1
          %s2017 = smul.addr %s2016, 16
          %s2018 = scalar_lea.vmem [#allocation7], %s2017
          %2020 = dma.done %s2015, 256
        $region72: #{tpu_custom_call.1} parent=67 // pred_fallthru
          _
      $region68: #{tpu_custom_call.1} parent=5 // pred_fallthru
        _
    $region6: #{tpu_custom_call.1} parent=1 // loop_footer
      %s25 = sadd.s32 1, %s21
    $region7: #{tpu_custom_call.1} parent=1 // loop_footer_branch
      %20 = sbr.rel target = $region3
    $region8: #{tpu_custom_call.1} parent=1 // loop_exit
      _
    %2021 = vsyncpa [#allocation3], 1
    %s2022 = scalar_lea.sflag [#allocation3], 1
    %2023 = vsyncpa %s2022, 1
    %2024 = vsyncpa [#allocation6], 1
    %2025 = vsyncpa [#allocation4], 1
    %s2026 = scalar_lea.sflag [#allocation4], 1
    %2027 = vsyncpa %s2026, 1

// kernel: tpu_custom_call.1
$region0: #{tpu_custom_call.1}
  #allocation0 [shape = 'u32[]', space=smem, size = 0x4, offset = 0x4, fixed_abs, tag = 'smem constant byte address 0x4 - core index']
  #allocation1 [shape = 'u32[72,128]{1,0:T(1,128)}', space=vmem, size = 0x9000, scoped, tag = 'internal scratch']
  %s0 = inlined_call_operand.vmem [shape: f32[8,2048], index: 0, kind: input, shape index: {}]
  %s1 = inlined_call_operand.hbm [shape: bf16[128,2048], index: 1, kind: input, shape index: {}]
  %s2 = inlined_call_operand.vmem [shape: bf16[96,128], index: 2, kind: input, shape index: {}]
  %s3 = inlined_call_operand.vmem [shape: f32[3,32,3], index: 3, kind: input, shape index: {}]
  %s4 = inlined_call_operand.hbm [shape: bf16[3,32,32], index: 4, kind: input, shape index: {}]
  %s5 = inlined_call_operand.vmem [shape: f32[3,32,1], index: 5, kind: input, shape index: {}]
  %s6 = inlined_call_operand.vmem [shape: bf16[3,3,32], index: 6, kind: input, shape index: {}]
  %s7 = inlined_call_operand.vmem [shape: f32[3,3,1], index: 7, kind: input, shape index: {}]
  %s8 = inlined_call_operand.hbm [shape: f32[3,2048], index: 8, kind: output, shape index: {}]
  %s9 = sld [smem:[#allocation0]]
  $region73: #{tpu_custom_call.1} parent=0
    _
  %s11 = ssub.s32 1, %s9
  %s12 = scalar_select 0, %s11, %s9
  $region1: #{tpu_custom_call.1} parent=0
    #allocation2 [shape = 'u8[262144]{0}', space=vmem, size = 0x40000, scoped, tag = 'input window, operand 1']
    #allocation3 [shape = 's32[2]{0}', space=sflag, size = 0x8, scoped, tag = 'scoped memory for tpu_custom_call.1']
    #allocation4 [shape = 's32[2]{0}', space=sflag, size = 0x8, scoped, tag = 'scoped memory for tpu_custom_call.1']
    #allocation5 [shape = 'u8[24576]{0}', space=vmem, size = 0x6000, scoped, tag = 'input window, operand 4, single buffered']
    #allocation6 [shape = 's32[1]{0}', space=sflag, size = 0x4, scoped, tag = 'scoped memory for tpu_custom_call.1']
    #allocation7 [shape = 'u8[16384]{0}', space=vmem, size = 0x4000, scoped, tag = 'output window, operand 0']
    %13 = vsyncpa [#allocation3], 0
    %s14 = scalar_lea.sflag [#allocation3], 1
    %15 = vsyncpa %s14, 0
    %16 = vsyncpa [#allocation6], 0
    %17 = vsyncpa [#allocation4], 0
    %s18 = scalar_lea.sflag [#allocation4], 1
    %19 = vsyncpa %s18, 0
    loop: start=0, step=1, limit=6
    $region2: #{tpu_custom_call.1} parent=1 // loop_pre_header
      _
    $region3: #{tpu_custom_call.1} parent=1 // loop_header
      %s21 = sphi 0, %s25
      %p22 = scmp.ge.s32.totalorder %s21, 6
      %s31 = sphi 0, %s33
      %s34 = sphi 0, %s31
      %s35 = sphi 0, %s34
      %s51 = sphi 0, %s35
      %s57 = sphi 0, %s59
      %s60 = sphi 0, %s57
      %s61 = sphi 0, %s60
      %s77 = sphi 0, %s61
      %s81 = sphi 0, %s81
      %s83 = sphi 0, %s81
      %s84 = sphi 0, %s83
      %s98 = sphi 0, %s84
      %s102 = sphi 0, %s102
      %s104 = sphi 0, %s102
      %s105 = sphi 0, %s104
      %s119 = sphi 0, %s105
      %s123 = sphi 0, %s123
      %s125 = sphi 0, %s123
      %s126 = sphi 0, %s125
      %s140 = sphi 0, %s126
      %s144 = sphi 0, %s144
      %s146 = sphi 0, %s144
      %s147 = sphi 0, %s146
      %s161 = sphi 0, %s147
      %s165 = sphi 0, %s165
      %s167 = sphi 0, %s165
      %s168 = sphi 0, %s167
      %s182 = sphi 0, %s168
      %s186 = sphi 0, %s186
      %s188 = sphi 0, %s186
      %s189 = sphi 0, %s188
      %s203 = sphi 0, %s189
      %s209 = sphi 0, %s211
      %s212 = sphi 0, %s209
      %s213 = sphi 0, %s212
      %s229 = sphi 0, %s213
    $region4: #{tpu_custom_call.1} parent=1 // loop_header_branch
      %24 = sbr.rel (%p22) target = $region8
    $region5: #{tpu_custom_call.1} parent=1 // loop_body
      %s26 = ssub.s32 %s21, 1
      %s27 = ssub.s32 %s21, 2
      %s28 = sadd.s32 %s21, 1
      %s29 = ssub.s32 %s21, %s28
      %p30 = scmp.eq.s32.totalorder %s29, 0
      %s32 = sadd.s32 %s31, 1
      %s33 = scalar_select %p30, %s31, %s32
      %p36 = pneg %p30
      %p37 = scmp.eq.s32.totalorder %s21, 3
      %p38 = por %p36, %p37
      %p39 = scmp.ne.s32.totalorder %s31, %s34
      %p40 = scmp.eq.s32.totalorder %s21, 0
      %p41 = por %p39, %p40
      %p42 = scmp.ne.s32.totalorder %s31, %s34
      %p43 = scmp.eq.s32.totalorder %s26, 3
      %p44 = por %p42, %p43
      %p45 = scmp.ne.s32.totalorder %s34, %s35
      %p46 = scmp.eq.s32.totalorder %s26, 0
      %p47 = por %p45, %p46
      %p48 = scmp.ne.s32.totalorder %s34, %s35
      %p49 = scmp.eq.s32.totalorder %s27, 3
      %p50 = por %p48, %p49
      %p52 = scmp.ne.s32.totalorder %s35, %s51
      %p53 = scmp.eq.s32.totalorder %s27, 0
      %p54 = por %p52, %p53
      %s55 = ssub.s32 %s21, %s28
      %p56 = scmp.eq.s32.totalorder %s55, 0
      %s58 = sadd.s32 %s57, 1
      %s59 = scalar_select %p56, %s57, %s58
      %p62 = pneg %p56
      %p63 = scmp.eq.s32.totalorder %s21, 3
      %p64 = por %p62, %p63
      %p65 = scmp.ne.s32.totalorder %s57, %s60
      %p66 = scmp.eq.s32.totalorder %s21, 0
      %p67 = por %p65, %p66
      %p68 = scmp.ne.s32.totalorder %s57, %s60
      %p69 = scmp.eq.s32.totalorder %s26, 3
      %p70 = por %p68, %p69
      %p71 = scmp.ne.s32.totalorder %s60, %s61
      %p72 = scmp.eq.s32.totalorder %s26, 0
      %p73 = por %p71, %p72
      %p74 = scmp.ne.s32.totalorder %s60, %s61
      %p75 = scmp.eq.s32.totalorder %s27, 3
      %p76 = por %p74, %p75
      %p78 = scmp.ne.s32.totalorder %s61, %s77
      %p79 = scmp.eq.s32.totalorder %s27, 0
      %p80 = por %p78, %p79
      %s82 = sadd.s32 %s81, 1
      %p85 = scmp.eq.s32.totalorder %s21, 3
      %p86 = scmp.ne.s32.totalorder %s81, %s83
      %p87 = scmp.eq.s32.totalorder %s21, 0
      %p88 = por %p86, %p87
      %p89 = scmp.ne.s32.totalorder %s81, %s83
      %p90 = scmp.eq.s32.totalorder %s26, 3
      %p91 = por %p89, %p90
      %p92 = scmp.ne.s32.totalorder %s83, %s84
      %p93 = scmp.eq.s32.totalorder %s26, 0
      %p94 = por %p92, %p93
      %p95 = scmp.ne.s32.totalorder %s83, %s84
      %p96 = scmp.eq.s32.totalorder %s27, 3
      %p97 = por %p95, %p96
      %p99 = scmp.ne.s32.totalorder %s84, %s98
      %p100 = scmp.eq.s32.totalorder %s27, 0
      %p101 = por %p99, %p100
      %s103 = sadd.s32 %s102, 1
      %p106 = scmp.eq.s32.totalorder %s21, 3
      %p107 = scmp.ne.s32.totalorder %s102, %s104
      %p108 = scmp.eq.s32.totalorder %s21, 0
      %p109 = por %p107, %p108
      %p110 = scmp.ne.s32.totalorder %s102, %s104
      %p111 = scmp.eq.s32.totalorder %s26, 3
      %p112 = por %p110, %p111
      %p113 = scmp.ne.s32.totalorder %s104, %s105
      %p114 = scmp.eq.s32.totalorder %s26, 0
      %p115 = por %p113, %p114
      %p116 = scmp.ne.s32.totalorder %s104, %s105
      %p117 = scmp.eq.s32.totalorder %s27, 3
      %p118 = por %p116, %p117
      %p120 = scmp.ne.s32.totalorder %s105, %s119
      %p121 = scmp.eq.s32.totalorder %s27, 0
      %p122 = por %p120, %p121
      %s124 = sadd.s32 %s123, 1
      %p127 = scmp.eq.s32.totalorder %s21, 3
      %p128 = scmp.ne.s32.totalorder %s123, %s125
      %p129 = scmp.eq.s32.totalorder %s21, 0
      %p130 = por %p128, %p129
      %p131 = scmp.ne.s32.totalorder %s123, %s125
      %p132 = scmp.eq.s32.totalorder %s26, 3
      %p133 = por %p131, %p132
      %p134 = scmp.ne.s32.totalorder %s125, %s126
      %p135 = scmp.eq.s32.totalorder %s26, 0
      %p136 = por %p134, %p135
      %p137 = scmp.ne.s32.totalorder %s125, %s126
      %p138 = scmp.eq.s32.totalorder %s27, 3
      %p139 = por %p137, %p138
      %p141 = scmp.ne.s32.totalorder %s126, %s140
      %p142 = scmp.eq.s32.totalorder %s27, 0
      %p143 = por %p141, %p142
      %s145 = sadd.s32 %s144, 1
      %p148 = scmp.eq.s32.totalorder %s21, 3
      %p149 = scmp.ne.s32.totalorder %s144, %s146
      %p150 = scmp.eq.s32.totalorder %s21, 0
      %p151 = por %p149, %p150
      %p152 = scmp.ne.s32.totalorder %s144, %s146
      %p153 = scmp.eq.s32.totalorder %s26, 3
      %p154 = por %p152, %p153
      %p155 = scmp.ne.s32.totalorder %s146, %s147
      %p156 = scmp.eq.s32.totalorder %s26, 0
      %p157 = por %p155, %p156
      %p158 = scmp.ne.s32.totalorder %s146, %s147
      %p159 = scmp.eq.s32.totalorder %s27, 3
      %p160 = por %p158, %p159
      %p162 = scmp.ne.s32.totalorder %s147, %s161
      %p163 = scmp.eq.s32.totalorder %s27, 0
      %p164 = por %p162, %p163
      %s166 = sadd.s32 %s165, 1
      %p169 = scmp.eq.s32.totalorder %s21, 3
      %p170 = scmp.ne.s32.totalorder %s165, %s167
      %p171 = scmp.eq.s32.totalorder %s21, 0
      %p172 = por %p170, %p171
      %p173 = scmp.ne.s32.totalorder %s165, %s167
      %p174 = scmp.eq.s32.totalorder %s26, 3
      %p175 = por %p173, %p174
      %p176 = scmp.ne.s32.totalorder %s167, %s168
      %p177 = scmp.eq.s32.totalorder %s26, 0
      %p178 = por %p176, %p177
      %p179 = scmp.ne.s32.totalorder %s167, %s168
      %p180 = scmp.eq.s32.totalorder %s27, 3
      %p181 = por %p179, %p180
      %p183 = scmp.ne.s32.totalorder %s168, %s182
      %p184 = scmp.eq.s32.totalorder %s27, 0
      %p185 = por %p183, %p184
      %s187 = sadd.s32 %s186, 1
      %p190 = scmp.eq.s32.totalorder %s21, 3
      %p191 = scmp.ne.s32.totalorder %s186, %s188
      %p192 = scmp.eq.s32.totalorder %s21, 0
      %p193 = por %p191, %p192
      %p194 = scmp.ne.s32.totalorder %s186, %s188
      %p195 = scmp.eq.s32.totalorder %s26, 3
      %p196 = por %p194, %p195
      %p197 = scmp.ne.s32.totalorder %s188, %s189
      %p198 = scmp.eq.s32.totalorder %s26, 0
      %p199 = por %p197, %p198
      %p200 = scmp.ne.s32.totalorder %s188, %s189
      %p201 = scmp.eq.s32.totalorder %s27, 3
      %p202 = por %p200, %p201
      %p204 = scmp.ne.s32.totalorder %s189, %s203
      %p205 = scmp.eq.s32.totalorder %s27, 0
      %p206 = por %p204, %p205
      %s207 = ssub.s32 %s21, %s28
      %p208 = scmp.eq.s32.totalorder %s207, 0
      %s210 = sadd.s32 %s209, 1
      %s211 = scalar_select %p208, %s209, %s210
      %p214 = pneg %p208
      %p215 = scmp.eq.s32.totalorder %s21, 3
      %p216 = por %p214, %p215
      %p217 = scmp.ne.s32.totalorder %s209, %s212
      %p218 = scmp.eq.s32.totalorder %s21, 0
      %p219 = por %p217, %p218
      %p220 = scmp.ne.s32.totalorder %s209, %s212
      %p221 = scmp.eq.s32.totalorder %s26, 3
      %p222 = por %p220, %p221
      %p223 = scmp.ne.s32.totalorder %s212, %s213
      %p224 = scmp.eq.s32.totalorder %s26, 0
      %p225 = por %p223, %p224
      %p226 = scmp.ne.s32.totalorder %s212, %s213
      %p227 = scmp.eq.s32.totalorder %s27, 3
      %p228 = por %p226, %p227
      %p230 = scmp.ne.s32.totalorder %s213, %s229
      %p231 = scmp.eq.s32.totalorder %s27, 0
      %p232 = por %p230, %p231
      %p233 = scmp.le.s32.totalorder 1, %s21
      %p234 = scmp.lt.s32.totalorder %s21, 5
      %p235 = pnand %p233, %p234
      %p236 = pneg %p235
      // Predicated region
      $region9: #{tpu_custom_call.1} parent=5 // pred_check
        _
      $region10: #{tpu_custom_call.1} parent=5 // pred_check_branch
        %238 = sbr.rel (%p235) target = $region12
      $region11: #{tpu_custom_call.1} parent=5 // pred_region
        %s239 = ssub.s32 %s21, 1
        // Predicated region
        $region13: #{tpu_custom_call.1} parent=11 // pred_check
          %p240 = pneg %p94
        $region14: #{tpu_custom_call.1} parent=11 // pred_check_branch
          %242 = sbr.rel (%p240) target = $region16
        $region15: #{tpu_custom_call.1} parent=11 // pred_region
          _
        $region16: #{tpu_custom_call.1} parent=11 // pred_fallthru
          _
        // Predicated region
        $region17: #{tpu_custom_call.1} parent=11 // pred_check
          %p243 = pneg %p115
        $region18: #{tpu_custom_call.1} parent=11 // pred_check_branch
          %245 = sbr.rel (%p243) target = $region20
        $region19: #{tpu_custom_call.1} parent=11 // pred_region
          _
        $region20: #{tpu_custom_call.1} parent=11 // pred_fallthru
          _
        // Predicated region
        $region21: #{tpu_custom_call.1} parent=11 // pred_check
          %p246 = pneg %p136
        $region22: #{tpu_custom_call.1} parent=11 // pred_check_branch
          %248 = sbr.rel (%p246) target = $region24
        $region23: #{tpu_custom_call.1} parent=11 // pred_region
          %250 = vsyncadd [#allocation6], 0
          %s251 = sshll.u32 %s4, 4
          %s252 = int_to_ptr.hbm [resolvable:$true] %s251
          %s253 = sshll.u32 [#allocation5], 4
          %s254 = int_to_ptr.vmem [resolvable:$true] %s253
          %259 = dma.hbm_to_vmem [thread:$0]  %s252, 768, %s254, [#allocation6], 64, 64, 4
        $region24: #{tpu_custom_call.1} parent=11 // pred_fallthru
          _
        // Predicated region
        $region25: #{tpu_custom_call.1} parent=11 // pred_check
          %p260 = pneg %p157
        $region26: #{tpu_custom_call.1} parent=11 // pred_check_branch
          %262 = sbr.rel (%p260) target = $region28
        $region27: #{tpu_custom_call.1} parent=11 // pred_region
          _
        $region28: #{tpu_custom_call.1} parent=11 // pred_fallthru
          _
        // Predicated region
        $region29: #{tpu_custom_call.1} parent=11 // pred_check
          %p263 = pneg %p178
        $region30: #{tpu_custom_call.1} parent=11 // pred_check_branch
          %265 = sbr.rel (%p263) target = $region32
        $region31: #{tpu_custom_call.1} parent=11 // pred_region
          _
        $region32: #{tpu_custom_call.1} parent=11 // pred_fallthru
          _
        // Predicated region
        $region33: #{tpu_custom_call.1} parent=11 // pred_check
          %p266 = pneg %p199
        $region34: #{tpu_custom_call.1} parent=11 // pred_check_branch
          %268 = sbr.rel (%p266) target = $region36
        $region35: #{tpu_custom_call.1} parent=11 // pred_region
          _
        $region36: #{tpu_custom_call.1} parent=11 // pred_fallthru
          _
      $region12: #{tpu_custom_call.1} parent=5 // pred_fallthru
        _
      %p269 = scmp.lt.s32.totalorder %s21, 4
      // Predicated region
      $region37: #{tpu_custom_call.1} parent=5 // pred_check
        %p270 = pneg %p269
      $region38: #{tpu_custom_call.1} parent=5 // pred_check_branch
        %272 = sbr.rel (%p270) target = $region40
      $region39: #{tpu_custom_call.1} parent=5 // pred_region
        // Predicated region
        $region41: #{tpu_custom_call.1} parent=39 // pred_check
          %p273 = pneg %p41
        $region42: #{tpu_custom_call.1} parent=39 // pred_check_branch
          %275 = sbr.rel (%p273) target = $region44
        $region43: #{tpu_custom_call.1} parent=39 // pred_region
          %s276 = smul.u32 4, %s21
          %p277 = scmp.lt.s32.totalorder %s276, 15
          %s278 = scalar_select %p277, %s276, 15
          %s279 = smul.addr %s278, 8
          %s280 = scalar_lea.vmem %s0, %s279
          %s281 = smul.u32 4, %s21
        $region44: #{tpu_custom_call.1} parent=39 // pred_fallthru
          _
        // Predicated region
        $region45: #{tpu_custom_call.1} parent=39 // pred_check
          %p282 = pneg %p67
        $region46: #{tpu_custom_call.1} parent=39 // pred_check_branch
          %284 = sbr.rel (%p282) target = $region48
        $region47: #{tpu_custom_call.1} parent=39 // pred_region
          %s285 = sand.u32 %s57, 1
          %s286 = scalar_lea.sflag [#allocation3], %s285
          %s287 = sand.u32 %s57, 1
          %s288 = smul.addr %s287, 256
          %s289 = scalar_lea.vmem [#allocation2], %s288
          %s290 = smul.u32 4, %s21
          %292 = vsyncadd %s286, 0
          %s293 = smul.addr %s290, 4
          %s294 = scalar_lea.hbm %s1, %s293
          %s295 = sshll.u32 %s294, 4
          %s296 = int_to_ptr.hbm [resolvable:$true] %s295
          %s297 = sshll.u32 %s289, 4
          %s298 = int_to_ptr.vmem [resolvable:$true] %s297
          %303 = dma.hbm_to_vmem [thread:$0]  %s296, 4096, %s298, %s286, 1024, 256, 16
        $region48: #{tpu_custom_call.1} parent=39 // pred_fallthru
          _
      $region40: #{tpu_custom_call.1} parent=5 // pred_fallthru
        _
      %p304 = scmp.le.s32.totalorder 1, %s21
      %p305 = scmp.lt.s32.totalorder %s21, 5
      %p306 = pnand %p304, %p305
      %p307 = pneg %p306
      // Predicated region
      $region49: #{tpu_custom_call.1} parent=5 // pred_check
        _
      $region50: #{tpu_custom_call.1} parent=5 // pred_check_branch
        %309 = sbr.rel (%p306) target = $region52
      $region51: #{tpu_custom_call.1} parent=5 // pred_region
        %s310 = ssub.s32 %s21, 1
        %s311 = sand.u32 %s60, 1
        %s312 = scalar_lea.sflag [#allocation3], %s311
        %s313 = sand.u32 %s60, 1
        %s314 = smul.addr %s313, 256
        %s315 = scalar_lea.vmem [#allocation2], %s314
        // Predicated region
        $region53: #{tpu_custom_call.1} parent=51 // pred_check
          %p316 = pneg %p73
        $region54: #{tpu_custom_call.1} parent=51 // pred_check_branch
          %318 = sbr.rel (%p316) target = $region56
        $region55: #{tpu_custom_call.1} parent=51 // pred_region
          %320 = dma.done %s312, 4096
        $region56: #{tpu_custom_call.1} parent=51 // pred_fallthru
          _
        // Predicated region
        $region57: #{tpu_custom_call.1} parent=51 // pred_check
          %p321 = pneg %p136
        $region58: #{tpu_custom_call.1} parent=51 // pred_check_branch
          %323 = sbr.rel (%p321) target = $region60
        $region59: #{tpu_custom_call.1} parent=51 // pred_region
          %325 = dma.done [#allocation6], 768
        $region60: #{tpu_custom_call.1} parent=51 // pred_fallthru
          _
        %s326 = smul.u32 4, %s26
        %p327 = scmp.lt.s32.totalorder %s326, 15
        %s328 = scalar_select %p327, %s326, 15
        %s329 = smul.addr %s328, 8
        %s330 = scalar_lea.vmem %s0, %s329
        %p331 = pneg %p47
        %p332 = pneg %p44
        %s333 = sand.u32 %s60, 1
        %s334 = scalar_lea.sflag [#allocation3], %s333
        %s335 = sand.u32 %s60, 1
        %s336 = smul.addr %s335, 256
        %s337 = scalar_lea.vmem [#allocation2], %s336
        %p338 = pneg %p73
        %p339 = pneg %p70
        %p340 = pneg %p94
        %p341 = pneg %p91
        %p342 = pneg %p115
        %p343 = pneg %p112
        %p344 = pneg %p136
        %p345 = pneg %p133
        %p346 = pneg %p157
        %p347 = pneg %p154
        %p348 = pneg %p178
        %p349 = pneg %p175
        %p350 = pneg %p199
        %p351 = pneg %p196
        %p352 = pneg %p225
        %p353 = pneg %p222
        %s354 = sand.u32 %s212, 1
        %s355 = scalar_lea.sflag [#allocation4], %s354
        %s356 = sand.u32 %s212, 1
        %s357 = smul.addr %s356, 16
        %s358 = scalar_lea.vmem [#allocation7], %s357
        %s359 = smul.u32 4, %s26
        %p360 = scmp.lt.s32.totalorder %s359, 15
        %s361 = scalar_select %p360, %s359, 15
        %s362 = smul.addr %s361, 8
        %s363 = scalar_lea.vmem %s0, %s362
        %s364 = smul.u32 4, %s26
        %s365 = smul.u32 4, %s26
        %s366 = smul.u32 4, %s26
        %v368 = vld [vmem:[%s2] sm:$0xf]
        %v369 = vld [vmem:[%s2 + $0x4] sm:$0xf]
        %v370 = vld [vmem:[%s2 + $0x8] sm:$0xf]
        %v371 = vld [vmem:[%s2 + $0xc] sm:$0xf]
        %v372 = vld [vmem:[%s2 + $0x10] sm:$0xf]
        %v373 = vld [vmem:[%s2 + $0x14] sm:$0xf]
        %v374 = vld [vmem:[%s2 + $0x18] sm:$0xf]
        %v375 = vld [vmem:[%s2 + $0x1c] sm:$0xf]
        %v376 = vld [vmem:[%s2 + $0x20] sm:$0xf]
        %v377 = vld [vmem:[%s2 + $0x24] sm:$0xf]
        %v378 = vld [vmem:[%s2 + $0x28] sm:$0xf]
        %v379 = vld [vmem:[%s2 + $0x2c] sm:$0xf]
        %v380 = vld [vmem:[%s315] sm:$0xff]
        %v381 = vld [vmem:[%s315 + $0x8] sm:$0xff]
        %v382 = vld [vmem:[%s315 + $0x10] sm:$0xff]
        %v383 = vld [vmem:[%s315 + $0x18] sm:$0xff]
        %v384 = vld [vmem:[%s315 + $0x20] sm:$0xff]
        %v385 = vld [vmem:[%s315 + $0x28] sm:$0xff]
        %v386 = vld [vmem:[%s315 + $0x30] sm:$0xff]
        %v387 = vld [vmem:[%s315 + $0x38] sm:$0xff]
        %v388 = vld [vmem:[%s315 + $0x40] sm:$0xff]
        %v389 = vld [vmem:[%s315 + $0x48] sm:$0xff]
        %v390 = vld [vmem:[%s315 + $0x50] sm:$0xff]
        %v391 = vld [vmem:[%s315 + $0x58] sm:$0xff]
        %v392 = vld [vmem:[%s315 + $0x60] sm:$0xff]
        %v393 = vld [vmem:[%s315 + $0x68] sm:$0xff]
        %v394 = vld [vmem:[%s315 + $0x70] sm:$0xff]
        %v395 = vld [vmem:[%s315 + $0x78] sm:$0xff]
        %v396 = vld [vmem:[%s315 + $0x80] sm:$0xff]
        %v397 = vld [vmem:[%s315 + $0x88] sm:$0xff]
        %v398 = vld [vmem:[%s315 + $0x90] sm:$0xff]
        %v399 = vld [vmem:[%s315 + $0x98] sm:$0xff]
        %v400 = vld [vmem:[%s315 + $0xa0] sm:$0xff]
        %v401 = vld [vmem:[%s315 + $0xa8] sm:$0xff]
        %v402 = vld [vmem:[%s315 + $0xb0] sm:$0xff]
        %v403 = vld [vmem:[%s315 + $0xb8] sm:$0xff]
        %v404 = vld [vmem:[%s315 + $0xc0] sm:$0xff]
        %v405 = vld [vmem:[%s315 + $0xc8] sm:$0xff]
        %v406 = vld [vmem:[%s315 + $0xd0] sm:$0xff]
        %v407 = vld [vmem:[%s315 + $0xd8] sm:$0xff]
        %v408 = vld [vmem:[%s315 + $0xe0] sm:$0xff]
        %v409 = vld [vmem:[%s315 + $0xe8] sm:$0xff]
        %v410 = vld [vmem:[%s315 + $0xf0] sm:$0xff]
        %v411 = vld [vmem:[%s315 + $0xf8] sm:$0xff]
        %v424 = vunpack.c.l.b16 %v368
        %v425 = vunpack.c.l.b16 %v369
        %v426 = vunpack.c.l.b16 %v370
        %v427 = vunpack.c.l.b16 %v371
        %v428 = vunpack.c.l.b16 %v372
        %v429 = vunpack.c.l.b16 %v373
        %v430 = vunpack.c.l.b16 %v374
        %v431 = vunpack.c.l.b16 %v375
        %v432 = vunpack.c.l.b16 %v376
        %v433 = vunpack.c.l.b16 %v377
        %v434 = vunpack.c.l.b16 %v378
        %v435 = vunpack.c.l.b16 %v379
        %v436 = vpack.c.b16 %v425, %v424
        %v437 = vpack.c.b16 %v427, %v426
        %v438 = vpack.c.b16 %v429, %v428
        %v439 = vpack.c.b16 %v431, %v430
        %v440 = vpack.c.b16 %v433, %v432
        %v441 = vpack.c.b16 %v435, %v434
        %v480 = vunpack.c.l.b16 %v380
        %v481 = vunpack.c.h.b16 %v380
        %v482 = vunpack.c.l.b16 %v381
        %v483 = vunpack.c.h.b16 %v381
        %v484 = vunpack.c.l.b16 %v382
        %v485 = vunpack.c.h.b16 %v382
        %v486 = vunpack.c.l.b16 %v383
        %v487 = vunpack.c.h.b16 %v383
        %v488 = vunpack.c.l.b16 %v384
        %v489 = vunpack.c.h.b16 %v384
        %v490 = vunpack.c.l.b16 %v385
        %v491 = vunpack.c.h.b16 %v385
        %v492 = vunpack.c.l.b16 %v386
        %v493 = vunpack.c.h.b16 %v386
        %v494 = vunpack.c.l.b16 %v387
        %v495 = vunpack.c.h.b16 %v387
        %v496 = vunpack.c.l.b16 %v388
        %v497 = vunpack.c.h.b16 %v388
        %v498 = vunpack.c.l.b16 %v389
        %v499 = vunpack.c.h.b16 %v389
        %v500 = vunpack.c.l.b16 %v390
        %v501 = vunpack.c.h.b16 %v390
        %v502 = vunpack.c.l.b16 %v391
        %v503 = vunpack.c.h.b16 %v391
        %v504 = vunpack.c.l.b16 %v392
        %v505 = vunpack.c.h.b16 %v392
        %v506 = vunpack.c.l.b16 %v393
        %v507 = vunpack.c.h.b16 %v393
        %v508 = vunpack.c.l.b16 %v394
        %v509 = vunpack.c.h.b16 %v394
        %v510 = vunpack.c.l.b16 %v395
        %v511 = vunpack.c.h.b16 %v395
        %v512 = vunpack.c.l.b16 %v396
        %v513 = vunpack.c.h.b16 %v396
        %v514 = vunpack.c.l.b16 %v397
        %v515 = vunpack.c.h.b16 %v397
        %v516 = vunpack.c.l.b16 %v398
        %v517 = vunpack.c.h.b16 %v398
        %v518 = vunpack.c.l.b16 %v399
        %v519 = vunpack.c.h.b16 %v399
        %v520 = vunpack.c.l.b16 %v400
        %v521 = vunpack.c.h.b16 %v400
        %v522 = vunpack.c.l.b16 %v401
        %v523 = vunpack.c.h.b16 %v401
        %v524 = vunpack.c.l.b16 %v402
        %v525 = vunpack.c.h.b16 %v402
        %v526 = vunpack.c.l.b16 %v403
        %v527 = vunpack.c.h.b16 %v403
        %v528 = vunpack.c.l.b16 %v404
        %v529 = vunpack.c.h.b16 %v404
        %v530 = vunpack.c.l.b16 %v405
        %v531 = vunpack.c.h.b16 %v405
        %v532 = vunpack.c.l.b16 %v406
        %v533 = vunpack.c.h.b16 %v406
        %v534 = vunpack.c.l.b16 %v407
        %v535 = vunpack.c.h.b16 %v407
        %v536 = vunpack.c.l.b16 %v408
        %v537 = vunpack.c.h.b16 %v408
        %v538 = vunpack.c.l.b16 %v409
        %v539 = vunpack.c.h.b16 %v409
        %v540 = vunpack.c.l.b16 %v410
        %v541 = vunpack.c.h.b16 %v410
        %v542 = vunpack.c.l.b16 %v411
        %v543 = vunpack.c.h.b16 %v411
        %v544 = vpack.c.b16 %v484, %v480
        %v545 = vpack.c.b16 %v485, %v481
        %v546 = vpack.c.b16 %v486, %v482
        %v547 = vpack.c.b16 %v487, %v483
        %v548 = vpack.c.b16 %v492, %v488
        %v549 = vpack.c.b16 %v493, %v489
        %v550 = vpack.c.b16 %v494, %v490
        %v551 = vpack.c.b16 %v495, %v491
        %v552 = vpack.c.b16 %v500, %v496
        %v553 = vpack.c.b16 %v501, %v497
        %v554 = vpack.c.b16 %v502, %v498
        %v555 = vpack.c.b16 %v503, %v499
        %v556 = vpack.c.b16 %v508, %v504
        %v557 = vpack.c.b16 %v509, %v505
        %v558 = vpack.c.b16 %v510, %v506
        %v559 = vpack.c.b16 %v511, %v507
        %v560 = vpack.c.b16 %v516, %v512
        %v561 = vpack.c.b16 %v517, %v513
        %v562 = vpack.c.b16 %v518, %v514
        %v563 = vpack.c.b16 %v519, %v515
        %v564 = vpack.c.b16 %v524, %v520
        %v565 = vpack.c.b16 %v525, %v521
        %v566 = vpack.c.b16 %v526, %v522
        %v567 = vpack.c.b16 %v527, %v523
        %v568 = vpack.c.b16 %v532, %v528
        %v569 = vpack.c.b16 %v533, %v529
        %v570 = vpack.c.b16 %v534, %v530
        %v571 = vpack.c.b16 %v535, %v531
        %v572 = vpack.c.b16 %v540, %v536
        %v573 = vpack.c.b16 %v541, %v537
        %v574 = vpack.c.b16 %v542, %v538
        %v575 = vpack.c.b16 %v543, %v539
        %608 = vmatpush.bf16.msra.mxu0 %v572
        %609 = vmatpush.bf16.msra.mxu0 %v568
        %610 = vmatpush.bf16.msra.mxu0 %v564
        %611 = vmatpush.bf16.msra.mxu0 %v560
        %612 = vmatpush.bf16.msra.mxu0 %v556
        %613 = vmatpush.bf16.msra.mxu0 %v552
        %614 = vmatpush.bf16.msra.mxu0 %v548
        %615 = vmatpush.bf16.msra.mxu0 %v544
        %616 = vmatmul.bf16.gmra.mxu0 %v436
        %v617 = vpop.f32.mrf.mxu0
        %v618 = vadd.f32 0.0, %v617
        %v619 = vpop.f32.mrf.mxu0
        %v620 = vadd.f32 0.0, %v619
        %621 = vmatmul.bf16.gmra.mxu0 %v437
        %v622 = vpop.f32.mrf.mxu0
        %v623 = vadd.f32 0.0, %v622
        %v624 = vpop.f32.mrf.mxu0
        %v625 = vadd.f32 0.0, %v624
        %626 = vmatmul.bf16.gmra.mxu0 %v438
        %v627 = vpop.f32.mrf.mxu0
        %v628 = vadd.f32 0.0, %v627
        %v629 = vpop.f32.mrf.mxu0
        %v630 = vadd.f32 0.0, %v629
        %631 = vmatmul.bf16.gmra.mxu0 %v439
        %v632 = vpop.f32.mrf.mxu0
        %v633 = vadd.f32 0.0, %v632
        %v634 = vpop.f32.mrf.mxu0
        %v635 = vadd.f32 0.0, %v634
        %636 = vmatmul.bf16.gmra.mxu0 %v440
        %v637 = vpop.f32.mrf.mxu0
        %v638 = vadd.f32 0.0, %v637
        %v639 = vpop.f32.mrf.mxu0
        %v640 = vadd.f32 0.0, %v639
        %641 = vmatmul.bf16.gmra.mxu0 %v441
        %v642 = vpop.f32.mrf.mxu0
        %v643 = vadd.f32 0.0, %v642
        %v644 = vpop.f32.mrf.mxu0
        %v645 = vadd.f32 0.0, %v644
        %646 = vdwg.mxu0
        %647 = vmatpush.bf16.msra.mxu0 %v573
        %648 = vmatpush.bf16.msra.mxu0 %v569
        %649 = vmatpush.bf16.msra.mxu0 %v565
        %650 = vmatpush.bf16.msra.mxu0 %v561
        %651 = vmatpush.bf16.msra.mxu0 %v557
        %652 = vmatpush.bf16.msra.mxu0 %v553
        %653 = vmatpush.bf16.msra.mxu0 %v549
        %654 = vmatpush.bf16.msra.mxu0 %v545
        %655 = vmatmul.bf16.gmra.mxu0 %v436
        %v656 = vpop.f32.mrf.mxu0
        %v657 = vadd.f32 0.0, %v656
        %v658 = vpop.f32.mrf.mxu0
        %v659 = vadd.f32 0.0, %v658
        %660 = vmatmul.bf16.gmra.mxu0 %v437
        %v661 = vpop.f32.mrf.mxu0
        %v662 = vadd.f32 0.0, %v661
        %v663 = vpop.f32.mrf.mxu0
        %v664 = vadd.f32 0.0, %v663
        %665 = vmatmul.bf16.gmra.mxu0 %v438
        %v666 = vpop.f32.mrf.mxu0
        %v667 = vadd.f32 0.0, %v666
        %v668 = vpop.f32.mrf.mxu0
        %v669 = vadd.f32 0.0, %v668
        %670 = vmatmul.bf16.gmra.mxu0 %v439
        %v671 = vpop.f32.mrf.mxu0
        %v672 = vadd.f32 0.0, %v671
        %v673 = vpop.f32.mrf.mxu0
        %v674 = vadd.f32 0.0, %v673
        %675 = vmatmul.bf16.gmra.mxu0 %v440
        %v676 = vpop.f32.mrf.mxu0
        %v677 = vadd.f32 0.0, %v676
        %v678 = vpop.f32.mrf.mxu0
        %v679 = vadd.f32 0.0, %v678
        %680 = vmatmul.bf16.gmra.mxu0 %v441
        %v681 = vpop.f32.mrf.mxu0
        %v682 = vadd.f32 0.0, %v681
        %v683 = vpop.f32.mrf.mxu0
        %v684 = vadd.f32 0.0, %v683
        %685 = vdwg.mxu0
        %686 = vmatpush.bf16.msra.mxu0 %v574
        %687 = vmatpush.bf16.msra.mxu0 %v570
        %688 = vmatpush.bf16.msra.mxu0 %v566
        %689 = vmatpush.bf16.msra.mxu0 %v562
        %690 = vmatpush.bf16.msra.mxu0 %v558
        %691 = vmatpush.bf16.msra.mxu0 %v554
        %692 = vmatpush.bf16.msra.mxu0 %v550
        %693 = vmatpush.bf16.msra.mxu0 %v546
        %694 = vmatmul.bf16.gmra.mxu0 %v436
        %v695 = vpop.f32.mrf.mxu0
        %v696 = vadd.f32 0.0, %v695
        %v697 = vpop.f32.mrf.mxu0
        %v698 = vadd.f32 0.0, %v697
        %699 = vmatmul.bf16.gmra.mxu0 %v437
        %v700 = vpop.f32.mrf.mxu0
        %v701 = vadd.f32 0.0, %v700
        %v702 = vpop.f32.mrf.mxu0
        %v703 = vadd.f32 0.0, %v702
        %704 = vmatmul.bf16.gmra.mxu0 %v438
        %v705 = vpop.f32.mrf.mxu0
        %v706 = vadd.f32 0.0, %v705
        %v707 = vpop.f32.mrf.mxu0
        %v708 = vadd.f32 0.0, %v707
        %709 = vmatmul.bf16.gmra.mxu0 %v439
        %v710 = vpop.f32.mrf.mxu0
        %v711 = vadd.f32 0.0, %v710
        %v712 = vpop.f32.mrf.mxu0
        %v713 = vadd.f32 0.0, %v712
        %714 = vmatmul.bf16.gmra.mxu0 %v440
        %v715 = vpop.f32.mrf.mxu0
        %v716 = vadd.f32 0.0, %v715
        %v717 = vpop.f32.mrf.mxu0
        %v718 = vadd.f32 0.0, %v717
        %719 = vmatmul.bf16.gmra.mxu0 %v441
        %v720 = vpop.f32.mrf.mxu0
        %v721 = vadd.f32 0.0, %v720
        %v722 = vpop.f32.mrf.mxu0
        %v723 = vadd.f32 0.0, %v722
        %724 = vdwg.mxu0
        %725 = vmatpush.bf16.msra.mxu0 %v575
        %726 = vmatpush.bf16.msra.mxu0 %v571
        %727 = vmatpush.bf16.msra.mxu0 %v567
        %728 = vmatpush.bf16.msra.mxu0 %v563
        %729 = vmatpush.bf16.msra.mxu0 %v559
        %730 = vmatpush.bf16.msra.mxu0 %v555
        %731 = vmatpush.bf16.msra.mxu0 %v551
        %732 = vmatpush.bf16.msra.mxu0 %v547
        %733 = vmatmul.bf16.gmra.mxu0 %v436
        %v734 = vpop.f32.mrf.mxu0
        %v735 = vadd.f32 0.0, %v734
        %v736 = vpop.f32.mrf.mxu0
        %v737 = vadd.f32 0.0, %v736
        %738 = vmatmul.bf16.gmra.mxu0 %v437
        %v739 = vpop.f32.mrf.mxu0
        %v740 = vadd.f32 0.0, %v739
        %v741 = vpop.f32.mrf.mxu0
        %v742 = vadd.f32 0.0, %v741
        %743 = vmatmul.bf16.gmra.mxu0 %v438
        %v744 = vpop.f32.mrf.mxu0
        %v745 = vadd.f32 0.0, %v744
        %v746 = vpop.f32.mrf.mxu0
        %v747 = vadd.f32 0.0, %v746
        %748 = vmatmul.bf16.gmra.mxu0 %v439
        %v749 = vpop.f32.mrf.mxu0
        %v750 = vadd.f32 0.0, %v749
        %v751 = vpop.f32.mrf.mxu0
        %v752 = vadd.f32 0.0, %v751
        %753 = vmatmul.bf16.gmra.mxu0 %v440
        %v754 = vpop.f32.mrf.mxu0
        %v755 = vadd.f32 0.0, %v754
        %v756 = vpop.f32.mrf.mxu0
        %v757 = vadd.f32 0.0, %v756
        %758 = vmatmul.bf16.gmra.mxu0 %v441
        %v759 = vpop.f32.mrf.mxu0
        %v760 = vadd.f32 0.0, %v759
        %v761 = vpop.f32.mrf.mxu0
        %v762 = vadd.f32 0.0, %v761
        %763 = vdwg.mxu0
        %v764 = vld [vmem:[%s363] sm:$0x7]
        %v765 = vld [vmem:[%s363 + $0x8] sm:$0x7]
        %v766 = vld [vmem:[%s363 + $0x10] sm:$0x7]
        %v767 = vld [vmem:[%s363 + $0x18] sm:$0x7]
        %v768 = vld [vmem:[%s3] sm:$0xff]
        %v769 = vld [vmem:[%s3 + $0x8] sm:$0xff]
        %v770 = vld [vmem:[%s3 + $0x10] sm:$0xff]
        %v771 = vld [vmem:[%s3 + $0x18] sm:$0xff]
        %773 = vset.pattern.permute.xlu0 0
        %774 = vperm.xlu0 %773, %v768
        %v775 = vpop.permute.xlu0 %774
        %778 = vset.pattern.permute.xlu0 0
        %779 = vperm.xlu0 %778, %v769
        %v780 = vpop.permute.xlu0 %779
        %783 = vset.pattern.permute.xlu0 0
        %784 = vperm.xlu0 %783, %v770
        %v785 = vpop.permute.xlu0 %784
        %788 = vset.pattern.permute.xlu0 0
        %789 = vperm.xlu0 %788, %v771
        %v790 = vpop.permute.xlu0 %789
        %v792 = vperm.slane %v764, 0
        %v793 = vperm.slane %v765, 0
        %v794 = vperm.slane %v766, 0
        %v795 = vperm.slane %v767, 0
        %v796 = vmul.f32 %v775, %v792
        %v797 = vmul.f32 %v775, %v793
        %v798 = vmul.f32 %v775, %v794
        %v799 = vmul.f32 %v775, %v795
        %v800 = vmul.f32 %v780, %v792
        %v801 = vmul.f32 %v780, %v793
        %v802 = vmul.f32 %v780, %v794
        %v803 = vmul.f32 %v780, %v795
        %v804 = vmul.f32 %v785, %v792
        %v805 = vmul.f32 %v785, %v793
        %v806 = vmul.f32 %v785, %v794
        %v807 = vmul.f32 %v785, %v795
        %v808 = vmul.f32 %v790, %v792
        %v809 = vmul.f32 %v790, %v793
        %v810 = vmul.f32 %v790, %v794
        %v811 = vmul.f32 %v790, %v795
        %812 = vset.pattern.permute.xlu0 1
        %813 = vperm.xlu0 %812, %v768
        %v814 = vpop.permute.xlu0 %813
        %816 = vset.pattern.permute.xlu0 1
        %817 = vperm.xlu0 %816, %v769
        %v818 = vpop.permute.xlu0 %817
        %820 = vset.pattern.permute.xlu0 1
        %821 = vperm.xlu0 %820, %v770
        %v822 = vpop.permute.xlu0 %821
        %824 = vset.pattern.permute.xlu0 1
        %825 = vperm.xlu0 %824, %v771
        %v826 = vpop.permute.xlu0 %825
        %v828 = vperm.slane %v764, 1
        %v829 = vperm.slane %v765, 1
        %v830 = vperm.slane %v766, 1
        %v831 = vperm.slane %v767, 1
        %v832 = vmul.f32 %v814, %v828
        %v833 = vmul.f32 %v814, %v829
        %v834 = vmul.f32 %v814, %v830
        %v835 = vmul.f32 %v814, %v831
        %v836 = vmul.f32 %v818, %v828
        %v837 = vmul.f32 %v818, %v829
        %v838 = vmul.f32 %v818, %v830
        %v839 = vmul.f32 %v818, %v831
        %v840 = vmul.f32 %v822, %v828
        %v841 = vmul.f32 %v822, %v829
        %v842 = vmul.f32 %v822, %v830
        %v843 = vmul.f32 %v822, %v831
        %v844 = vmul.f32 %v826, %v828
        %v845 = vmul.f32 %v826, %v829
        %v846 = vmul.f32 %v826, %v830
        %v847 = vmul.f32 %v826, %v831
        %v848 = vadd.f32 %v796, %v832
        %v849 = vadd.f32 %v797, %v833
        %v850 = vadd.f32 %v798, %v834
        %v851 = vadd.f32 %v799, %v835
        %v852 = vadd.f32 %v800, %v836
        %v853 = vadd.f32 %v801, %v837
        %v854 = vadd.f32 %v802, %v838
        %v855 = vadd.f32 %v803, %v839
        %v856 = vadd.f32 %v804, %v840
        %v857 = vadd.f32 %v805, %v841
        %v858 = vadd.f32 %v806, %v842
        %v859 = vadd.f32 %v807, %v843
        %v860 = vadd.f32 %v808, %v844
        %v861 = vadd.f32 %v809, %v845
        %v862 = vadd.f32 %v810, %v846
        %v863 = vadd.f32 %v811, %v847
        %864 = vset.pattern.permute.xlu0 2
        %865 = vperm.xlu0 %864, %v768
        %v866 = vpop.permute.xlu0 %865
        %868 = vset.pattern.permute.xlu0 2
        %869 = vperm.xlu0 %868, %v769
        %v870 = vpop.permute.xlu0 %869
        %872 = vset.pattern.permute.xlu0 2
        %873 = vperm.xlu0 %872, %v770
        %v874 = vpop.permute.xlu0 %873
        %876 = vset.pattern.permute.xlu0 2
        %877 = vperm.xlu0 %876, %v771
        %v878 = vpop.permute.xlu0 %877
        %v880 = vperm.slane %v764, 2
        %v881 = vperm.slane %v765, 2
        %v882 = vperm.slane %v766, 2
        %v883 = vperm.slane %v767, 2
        %v884 = vmul.f32 %v866, %v880
        %v885 = vmul.f32 %v866, %v881
        %v886 = vmul.f32 %v866, %v882
        %v887 = vmul.f32 %v866, %v883
        %v888 = vmul.f32 %v870, %v880
        %v889 = vmul.f32 %v870, %v881
        %v890 = vmul.f32 %v870, %v882
        %v891 = vmul.f32 %v870, %v883
        %v892 = vmul.f32 %v874, %v880
        %v893 = vmul.f32 %v874, %v881
        %v894 = vmul.f32 %v874, %v882
        %v895 = vmul.f32 %v874, %v883
        %v896 = vmul.f32 %v878, %v880
        %v897 = vmul.f32 %v878, %v881
        %v898 = vmul.f32 %v878, %v882
        %v899 = vmul.f32 %v878, %v883
        %v900 = vadd.f32 %v848, %v884
        %v901 = vadd.f32 %v849, %v885
        %v902 = vadd.f32 %v850, %v886
        %v903 = vadd.f32 %v851, %v887
        %v904 = vadd.f32 %v852, %v888
        %v905 = vadd.f32 %v853, %v889
        %v906 = vadd.f32 %v854, %v890
        %v907 = vadd.f32 %v855, %v891
        %v908 = vadd.f32 %v856, %v892
        %v909 = vadd.f32 %v857, %v893
        %v910 = vadd.f32 %v858, %v894
        %v911 = vadd.f32 %v859, %v895
        %v912 = vadd.f32 %v860, %v896
        %v913 = vadd.f32 %v861, %v897
        %v914 = vadd.f32 %v862, %v898
        %v915 = vadd.f32 %v863, %v899
        %v916 = vadd.f32 %v618, %v900
        %v917 = vadd.f32 %v657, %v901
        %v918 = vadd.f32 %v696, %v902
        %v919 = vadd.f32 %v735, %v903
        %v920 = vadd.f32 %v620, %v904
        %v921 = vadd.f32 %v659, %v905
        %v922 = vadd.f32 %v698, %v906
        %v923 = vadd.f32 %v737, %v907
        %v924 = vadd.f32 %v623, %v908
        %v925 = vadd.f32 %v662, %v909
        %v926 = vadd.f32 %v701, %v910
        %v927 = vadd.f32 %v740, %v911
        %v928 = vadd.f32 %v625, %v912
        %v929 = vadd.f32 %v664, %v913
        %v930 = vadd.f32 %v703, %v914
        %v931 = vadd.f32 %v742, %v915
        %v932 = vmax.f32 %v916, 0.0
        %v933 = vmax.f32 %v917, 0.0
        %v934 = vmax.f32 %v918, 0.0
        %v935 = vmax.f32 %v919, 0.0
        %v936 = vmax.f32 %v920, 0.0
        %v937 = vmax.f32 %v921, 0.0
        %v938 = vmax.f32 %v922, 0.0
        %v939 = vmax.f32 %v923, 0.0
        %v940 = vmax.f32 %v924, 0.0
        %v941 = vmax.f32 %v925, 0.0
        %v942 = vmax.f32 %v926, 0.0
        %v943 = vmax.f32 %v927, 0.0
        %v944 = vmax.f32 %v928, 0.0
        %v945 = vmax.f32 %v929, 0.0
        %v946 = vmax.f32 %v930, 0.0
        %v947 = vmax.f32 %v931, 0.0
        %v948 = vld [vmem:[#allocation5] sm:$0xf]
        %v949 = vld [vmem:[#allocation5 + $0x4] sm:$0xf]
        %v950 = vld [vmem:[#allocation5 + $0x8] sm:$0xf]
        %v951 = vld [vmem:[#allocation5 + $0xc] sm:$0xf]
        %v952 = vpack.c.bf16 %v936, %v932
        %v953 = vpack.c.bf16 %v937, %v933
        %v954 = vpack.c.bf16 %v938, %v934
        %v955 = vpack.c.bf16 %v939, %v935
        %v956 = vpack.c.bf16 %v944, %v940
        %v957 = vpack.c.bf16 %v945, %v941
        %v958 = vpack.c.bf16 %v946, %v942
        %v959 = vpack.c.bf16 %v947, %v943
        %v960 = vld [vmem:[%s5] sm:$0xff]
        %v961 = vld [vmem:[%s5 + $0x8] sm:$0xff]
        %v962 = vld [vmem:[%s5 + $0x10] sm:$0xff]
        %v963 = vld [vmem:[%s5 + $0x18] sm:$0xff]
        %965 = vset.pattern.permute.xlu0 0
        %966 = vperm.xlu0 %965, %v960
        %v967 = vpop.permute.xlu0 %966
        %970 = vset.pattern.permute.xlu0 0
        %971 = vperm.xlu0 %970, %v961
        %v972 = vpop.permute.xlu0 %971
        %975 = vset.pattern.permute.xlu0 0
        %976 = vperm.xlu0 %975, %v962
        %v977 = vpop.permute.xlu0 %976
        %980 = vset.pattern.permute.xlu0 0
        %981 = vperm.xlu0 %980, %v963
        %v982 = vpop.permute.xlu0 %981
        %v988 = vunpack.c.l.b16 %v948
        %v989 = vunpack.c.l.b16 %v949
        %v990 = vunpack.c.l.b16 %v950
        %v991 = vunpack.c.l.b16 %v951
        %v992 = vpack.c.b16 %v989, %v988
        %v993 = vpack.c.b16 %v991, %v990
        %vm994 = vcmask 261120
        %v996 = vsel %vm994, %v992, 0
        %v999 = vsel %vm994, %v993, 0
        %1001 = vmatpush.bf16.msra.mxu0 0
        %1002 = vmatpush.bf16.msra.mxu0 0
        %1003 = vmatpush.bf16.msra.mxu0 0
        %1004 = vmatpush.bf16.msra.mxu0 0
        %1005 = vmatpush.bf16.msra.mxu0 0
        %1006 = vmatpush.bf16.msra.mxu0 0
        %1007 = vmatpush.bf16.msra.mxu0 %v956
        %1008 = vmatpush.bf16.msra.mxu0 %v952
        %1009 = vmatmul.bf16.gmra.mxu0 %v996
        %v1010 = vpop.f32.mrf.mxu0
        %v1011 = vadd.f32 %v967, %v1010
        %v1012 = vpop.f32.mrf.mxu0
        %v1013 = vadd.f32 %v972, %v1012
        %1014 = vmatmul.bf16.gmra.mxu0 %v999
        %v1015 = vpop.f32.mrf.mxu0
        %v1016 = vadd.f32 %v977, %v1015
        %v1017 = vpop.f32.mrf.mxu0
        %v1018 = vadd.f32 %v982, %v1017
        %1019 = vdwg.mxu0
        %1020 = vmatpush.bf16.msra.mxu0 0
        %1021 = vmatpush.bf16.msra.mxu0 0
        %1022 = vmatpush.bf16.msra.mxu0 0
        %1023 = vmatpush.bf16.msra.mxu0 0
        %1024 = vmatpush.bf16.msra.mxu0 0
        %1025 = vmatpush.bf16.msra.mxu0 0
        %1026 = vmatpush.bf16.msra.mxu0 %v957
        %1027 = vmatpush.bf16.msra.mxu0 %v953
        %1028 = vmatmul.bf16.gmra.mxu0 %v996
        %v1029 = vpop.f32.mrf.mxu0
        %v1030 = vadd.f32 %v967, %v1029
        %v1031 = vpop.f32.mrf.mxu0
        %v1032 = vadd.f32 %v972, %v1031
        %1033 = vmatmul.bf16.gmra.mxu0 %v999
        %v1034 = vpop.f32.mrf.mxu0
        %v1035 = vadd.f32 %v977, %v1034
        %v1036 = vpop.f32.mrf.mxu0
        %v1037 = vadd.f32 %v982, %v1036
        %1038 = vdwg.mxu0
        %1039 = vmatpush.bf16.msra.mxu0 0
        %1040 = vmatpush.bf16.msra.mxu0 0
        %1041 = vmatpush.bf16.msra.mxu0 0
        %1042 = vmatpush.bf16.msra.mxu0 0
        %1043 = vmatpush.bf16.msra.mxu0 0
        %1044 = vmatpush.bf16.msra.mxu0 0
        %1045 = vmatpush.bf16.msra.mxu0 %v958
        %1046 = vmatpush.bf16.msra.mxu0 %v954
        %1047 = vmatmul.bf16.gmra.mxu0 %v996
        %v1048 = vpop.f32.mrf.mxu0
        %v1049 = vadd.f32 %v967, %v1048
        %v1050 = vpop.f32.mrf.mxu0
        %v1051 = vadd.f32 %v972, %v1050
        %1052 = vmatmul.bf16.gmra.mxu0 %v999
        %v1053 = vpop.f32.mrf.mxu0
        %v1054 = vadd.f32 %v977, %v1053
        %v1055 = vpop.f32.mrf.mxu0
        %v1056 = vadd.f32 %v982, %v1055
        %1057 = vdwg.mxu0
        %1058 = vmatpush.bf16.msra.mxu0 0
        %1059 = vmatpush.bf16.msra.mxu0 0
        %1060 = vmatpush.bf16.msra.mxu0 0
        %1061 = vmatpush.bf16.msra.mxu0 0
        %1062 = vmatpush.bf16.msra.mxu0 0
        %1063 = vmatpush.bf16.msra.mxu0 0
        %1064 = vmatpush.bf16.msra.mxu0 %v959
        %1065 = vmatpush.bf16.msra.mxu0 %v955
        %1066 = vmatmul.bf16.gmra.mxu0 %v996
        %v1067 = vpop.f32.mrf.mxu0
        %v1068 = vadd.f32 %v967, %v1067
        %v1069 = vpop.f32.mrf.mxu0
        %v1070 = vadd.f32 %v972, %v1069
        %1071 = vmatmul.bf16.gmra.mxu0 %v999
        %v1072 = vpop.f32.mrf.mxu0
        %v1073 = vadd.f32 %v977, %v1072
        %v1074 = vpop.f32.mrf.mxu0
        %v1075 = vadd.f32 %v982, %v1074
        %1076 = vdwg.mxu0
        %v1077 = vmax.f32 %v1011, 0.0
        %v1078 = vmax.f32 %v1030, 0.0
        %v1079 = vmax.f32 %v1049, 0.0
        %v1080 = vmax.f32 %v1068, 0.0
        %v1081 = vmax.f32 %v1013, 0.0
        %v1082 = vmax.f32 %v1032, 0.0
        %v1083 = vmax.f32 %v1051, 0.0
        %v1084 = vmax.f32 %v1070, 0.0
        %v1085 = vmax.f32 %v1016, 0.0
        %v1086 = vmax.f32 %v1035, 0.0
        %v1087 = vmax.f32 %v1054, 0.0
        %v1088 = vmax.f32 %v1073, 0.0
        %v1089 = vmax.f32 %v1018, 0.0
        %v1090 = vmax.f32 %v1037, 0.0
        %v1091 = vmax.f32 %v1056, 0.0
        %v1092 = vmax.f32 %v1075, 0.0
        %v1093 = vld [vmem:[%s6] sm:$0x3]
        %v1094 = vpack.c.bf16 %v1081, %v1077
        %v1095 = vpack.c.bf16 %v1082, %v1078
        %v1096 = vpack.c.bf16 %v1083, %v1079
        %v1097 = vpack.c.bf16 %v1084, %v1080
        %v1098 = vpack.c.bf16 %v1089, %v1085
        %v1099 = vpack.c.bf16 %v1090, %v1086
        %v1100 = vpack.c.bf16 %v1091, %v1087
        %v1101 = vpack.c.bf16 %v1092, %v1088
        %v1102 = vld [vmem:[%s7] sm:$0x7]
        %1104 = vset.pattern.permute.xlu0 0
        %1105 = vperm.xlu0 %1104, %v1102
        %v1106 = vpop.permute.xlu0 %1105
        %v1109 = vsel %vm994, %v1093, 0
        %1111 = vmatpush.bf16.msra.mxu0 0
        %1112 = vmatpush.bf16.msra.mxu0 0
        %1113 = vmatpush.bf16.msra.mxu0 0
        %1114 = vmatpush.bf16.msra.mxu0 0
        %1115 = vmatpush.bf16.msra.mxu0 0
        %1116 = vmatpush.bf16.msra.mxu0 0
        %1117 = vmatpush.bf16.msra.mxu0 %v1098
        %1118 = vmatpush.bf16.msra.mxu0 %v1094
        %1119 = vmatmul.bf16.gmra.mxu0 %v1109
        %v1120 = vpop.f32.mrf.mxu0
        %v1121 = vadd.f32 %v1106, %v1120
        %v1122 = vpop.f32.mrf.mxu0
        %1123 = vdwg.mxu0
        %1124 = vmatpush.bf16.msra.mxu0 0
        %1125 = vmatpush.bf16.msra.mxu0 0
        %1126 = vmatpush.bf16.msra.mxu0 0
        %1127 = vmatpush.bf16.msra.mxu0 0
        %1128 = vmatpush.bf16.msra.mxu0 0
        %1129 = vmatpush.bf16.msra.mxu0 0
        %1130 = vmatpush.bf16.msra.mxu0 %v1099
        %1131 = vmatpush.bf16.msra.mxu0 %v1095
        %1132 = vmatmul.bf16.gmra.mxu0 %v1109
        %v1133 = vpop.f32.mrf.mxu0
        %v1134 = vadd.f32 %v1106, %v1133
        %v1135 = vpop.f32.mrf.mxu0
        %1136 = vdwg.mxu0
        %1137 = vmatpush.bf16.msra.mxu0 0
        %1138 = vmatpush.bf16.msra.mxu0 0
        %1139 = vmatpush.bf16.msra.mxu0 0
        %1140 = vmatpush.bf16.msra.mxu0 0
        %1141 = vmatpush.bf16.msra.mxu0 0
        %1142 = vmatpush.bf16.msra.mxu0 0
        %1143 = vmatpush.bf16.msra.mxu0 %v1100
        %1144 = vmatpush.bf16.msra.mxu0 %v1096
        %1145 = vmatmul.bf16.gmra.mxu0 %v1109
        %v1146 = vpop.f32.mrf.mxu0
        %v1147 = vadd.f32 %v1106, %v1146
        %v1148 = vpop.f32.mrf.mxu0
        %1149 = vdwg.mxu0
        %1150 = vmatpush.bf16.msra.mxu0 0
        %1151 = vmatpush.bf16.msra.mxu0 0
        %1152 = vmatpush.bf16.msra.mxu0 0
        %1153 = vmatpush.bf16.msra.mxu0 0
        %1154 = vmatpush.bf16.msra.mxu0 0
        %1155 = vmatpush.bf16.msra.mxu0 0
        %1156 = vmatpush.bf16.msra.mxu0 %v1101
        %1157 = vmatpush.bf16.msra.mxu0 %v1097
        %1158 = vmatmul.bf16.gmra.mxu0 %v1109
        %v1159 = vpop.f32.mrf.mxu0
        %v1160 = vadd.f32 %v1106, %v1159
        %v1161 = vpop.f32.mrf.mxu0
        %1162 = vdwg.mxu0
        %v1163 = vadd.f32 %v1121, %v764
        %v1164 = vadd.f32 %v1134, %v765
        %v1165 = vadd.f32 %v1147, %v766
        %v1166 = vadd.f32 %v1160, %v767
        %s1167 = scalar_lea.vmem %s3, 32
        %v1168 = vld [vmem:[%s1167] sm:$0xff]
        %v1169 = vld [vmem:[%s1167 + $0x8] sm:$0xff]
        %v1170 = vld [vmem:[%s1167 + $0x10] sm:$0xff]
        %v1171 = vld [vmem:[%s1167 + $0x18] sm:$0xff]
        %1173 = vset.pattern.permute.xlu0 0
        %1174 = vperm.xlu0 %1173, %v1168
        %v1175 = vpop.permute.xlu0 %1174
        %1178 = vset.pattern.permute.xlu0 0
        %1179 = vperm.xlu0 %1178, %v1169
        %v1180 = vpop.permute.xlu0 %1179
        %1183 = vset.pattern.permute.xlu0 0
        %1184 = vperm.xlu0 %1183, %v1170
        %v1185 = vpop.permute.xlu0 %1184
        %1188 = vset.pattern.permute.xlu0 0
        %1189 = vperm.xlu0 %1188, %v1171
        %v1190 = vpop.permute.xlu0 %1189
        %v1192 = vperm.slane %v1163, 0
        %v1193 = vperm.slane %v1164, 0
        %v1194 = vperm.slane %v1165, 0
        %v1195 = vperm.slane %v1166, 0
        %v1196 = vmul.f32 %v1175, %v1192
        %v1197 = vmul.f32 %v1175, %v1193
        %v1198 = vmul.f32 %v1175, %v1194
        %v1199 = vmul.f32 %v1175, %v1195
        %v1200 = vmul.f32 %v1180, %v1192
        %v1201 = vmul.f32 %v1180, %v1193
        %v1202 = vmul.f32 %v1180, %v1194
        %v1203 = vmul.f32 %v1180, %v1195
        %v1204 = vmul.f32 %v1185, %v1192
        %v1205 = vmul.f32 %v1185, %v1193
        %v1206 = vmul.f32 %v1185, %v1194
        %v1207 = vmul.f32 %v1185, %v1195
        %v1208 = vmul.f32 %v1190, %v1192
        %v1209 = vmul.f32 %v1190, %v1193
        %v1210 = vmul.f32 %v1190, %v1194
        %v1211 = vmul.f32 %v1190, %v1195
        %1212 = vset.pattern.permute.xlu0 1
        %1213 = vperm.xlu0 %1212, %v1168
        %v1214 = vpop.permute.xlu0 %1213
        %1216 = vset.pattern.permute.xlu0 1
        %1217 = vperm.xlu0 %1216, %v1169
        %v1218 = vpop.permute.xlu0 %1217
        %1220 = vset.pattern.permute.xlu0 1
        %1221 = vperm.xlu0 %1220, %v1170
        %v1222 = vpop.permute.xlu0 %1221
        %1224 = vset.pattern.permute.xlu0 1
        %1225 = vperm.xlu0 %1224, %v1171
        %v1226 = vpop.permute.xlu0 %1225
        %v1228 = vperm.slane %v1163, 1
        %v1229 = vperm.slane %v1164, 1
        %v1230 = vperm.slane %v1165, 1
        %v1231 = vperm.slane %v1166, 1
        %v1232 = vmul.f32 %v1214, %v1228
        %v1233 = vmul.f32 %v1214, %v1229
        %v1234 = vmul.f32 %v1214, %v1230
        %v1235 = vmul.f32 %v1214, %v1231
        %v1236 = vmul.f32 %v1218, %v1228
        %v1237 = vmul.f32 %v1218, %v1229
        %v1238 = vmul.f32 %v1218, %v1230
        %v1239 = vmul.f32 %v1218, %v1231
        %v1240 = vmul.f32 %v1222, %v1228
        %v1241 = vmul.f32 %v1222, %v1229
        %v1242 = vmul.f32 %v1222, %v1230
        %v1243 = vmul.f32 %v1222, %v1231
        %v1244 = vmul.f32 %v1226, %v1228
        %v1245 = vmul.f32 %v1226, %v1229
        %v1246 = vmul.f32 %v1226, %v1230
        %v1247 = vmul.f32 %v1226, %v1231
        %v1248 = vadd.f32 %v1196, %v1232
        %v1249 = vadd.f32 %v1197, %v1233
        %v1250 = vadd.f32 %v1198, %v1234
        %v1251 = vadd.f32 %v1199, %v1235
        %v1252 = vadd.f32 %v1200, %v1236
        %v1253 = vadd.f32 %v1201, %v1237
        %v1254 = vadd.f32 %v1202, %v1238
        %v1255 = vadd.f32 %v1203, %v1239
        %v1256 = vadd.f32 %v1204, %v1240
        %v1257 = vadd.f32 %v1205, %v1241
        %v1258 = vadd.f32 %v1206, %v1242
        %v1259 = vadd.f32 %v1207, %v1243
        %v1260 = vadd.f32 %v1208, %v1244
        %v1261 = vadd.f32 %v1209, %v1245
        %v1262 = vadd.f32 %v1210, %v1246
        %v1263 = vadd.f32 %v1211, %v1247
        %1264 = vset.pattern.permute.xlu0 2
        %1265 = vperm.xlu0 %1264, %v1168
        %v1266 = vpop.permute.xlu0 %1265
        %1268 = vset.pattern.permute.xlu0 2
        %1269 = vperm.xlu0 %1268, %v1169
        %v1270 = vpop.permute.xlu0 %1269
        %1272 = vset.pattern.permute.xlu0 2
        %1273 = vperm.xlu0 %1272, %v1170
        %v1274 = vpop.permute.xlu0 %1273
        %1276 = vset.pattern.permute.xlu0 2
        %1277 = vperm.xlu0 %1276, %v1171
        %v1278 = vpop.permute.xlu0 %1277
        %v1280 = vperm.slane %v1163, 2
        %v1281 = vperm.slane %v1164, 2
        %v1282 = vperm.slane %v1165, 2
        %v1283 = vperm.slane %v1166, 2
        %v1284 = vmul.f32 %v1266, %v1280
        %v1285 = vmul.f32 %v1266, %v1281
        %v1286 = vmul.f32 %v1266, %v1282
        %v1287 = vmul.f32 %v1266, %v1283
        %v1288 = vmul.f32 %v1270, %v1280
        %v1289 = vmul.f32 %v1270, %v1281
        %v1290 = vmul.f32 %v1270, %v1282
        %v1291 = vmul.f32 %v1270, %v1283
        %v1292 = vmul.f32 %v1274, %v1280
        %v1293 = vmul.f32 %v1274, %v1281
        %v1294 = vmul.f32 %v1274, %v1282
        %v1295 = vmul.f32 %v1274, %v1283
        %v1296 = vmul.f32 %v1278, %v1280
        %v1297 = vmul.f32 %v1278, %v1281
        %v1298 = vmul.f32 %v1278, %v1282
        %v1299 = vmul.f32 %v1278, %v1283
        %v1300 = vadd.f32 %v1248, %v1284
        %v1301 = vadd.f32 %v1249, %v1285
        %v1302 = vadd.f32 %v1250, %v1286
        %v1303 = vadd.f32 %v1251, %v1287
        %v1304 = vadd.f32 %v1252, %v1288
        %v1305 = vadd.f32 %v1253, %v1289
        %v1306 = vadd.f32 %v1254, %v1290
        %v1307 = vadd.f32 %v1255, %v1291
        %v1308 = vadd.f32 %v1256, %v1292
        %v1309 = vadd.f32 %v1257, %v1293
        %v1310 = vadd.f32 %v1258, %v1294
        %v1311 = vadd.f32 %v1259, %v1295
        %v1312 = vadd.f32 %v1260, %v1296
        %v1313 = vadd.f32 %v1261, %v1297
        %v1314 = vadd.f32 %v1262, %v1298
        %v1315 = vadd.f32 %v1263, %v1299
        %v1316 = vadd.f32 %v628, %v1300
        %v1317 = vadd.f32 %v667, %v1301
        %v1318 = vadd.f32 %v706, %v1302
        %v1319 = vadd.f32 %v745, %v1303
        %v1320 = vadd.f32 %v630, %v1304
        %v1321 = vadd.f32 %v669, %v1305
        %v1322 = vadd.f32 %v708, %v1306
        %v1323 = vadd.f32 %v747, %v1307
        %v1324 = vadd.f32 %v633, %v1308
        %v1325 = vadd.f32 %v672, %v1309
        %v1326 = vadd.f32 %v711, %v1310
        %v1327 = vadd.f32 %v750, %v1311
        %v1328 = vadd.f32 %v635, %v1312
        %v1329 = vadd.f32 %v674, %v1313
        %v1330 = vadd.f32 %v713, %v1314
        %v1331 = vadd.f32 %v752, %v1315
        %v1332 = vmax.f32 %v1316, 0.0
        %v1333 = vmax.f32 %v1317, 0.0
        %v1334 = vmax.f32 %v1318, 0.0
        %v1335 = vmax.f32 %v1319, 0.0
        %v1336 = vmax.f32 %v1320, 0.0
        %v1337 = vmax.f32 %v1321, 0.0
        %v1338 = vmax.f32 %v1322, 0.0
        %v1339 = vmax.f32 %v1323, 0.0
        %v1340 = vmax.f32 %v1324, 0.0
        %v1341 = vmax.f32 %v1325, 0.0
        %v1342 = vmax.f32 %v1326, 0.0
        %v1343 = vmax.f32 %v1327, 0.0
        %v1344 = vmax.f32 %v1328, 0.0
        %v1345 = vmax.f32 %v1329, 0.0
        %v1346 = vmax.f32 %v1330, 0.0
        %v1347 = vmax.f32 %v1331, 0.0
        %s1348 = scalar_lea.vmem [#allocation5], 16
        %v1349 = vld [vmem:[%s1348] sm:$0xf]
        %v1350 = vld [vmem:[%s1348 + $0x4] sm:$0xf]
        %v1351 = vld [vmem:[%s1348 + $0x8] sm:$0xf]
        %v1352 = vld [vmem:[%s1348 + $0xc] sm:$0xf]
        %v1353 = vpack.c.bf16 %v1336, %v1332
        %v1354 = vpack.c.bf16 %v1337, %v1333
        %v1355 = vpack.c.bf16 %v1338, %v1334
        %v1356 = vpack.c.bf16 %v1339, %v1335
        %v1357 = vpack.c.bf16 %v1344, %v1340
        %v1358 = vpack.c.bf16 %v1345, %v1341
        %v1359 = vpack.c.bf16 %v1346, %v1342
        %v1360 = vpack.c.bf16 %v1347, %v1343
        %s1361 = scalar_lea.vmem %s5, 32
        %v1362 = vld [vmem:[%s1361] sm:$0xff]
        %v1363 = vld [vmem:[%s1361 + $0x8] sm:$0xff]
        %v1364 = vld [vmem:[%s1361 + $0x10] sm:$0xff]
        %v1365 = vld [vmem:[%s1361 + $0x18] sm:$0xff]
        %1367 = vset.pattern.permute.xlu0 0
        %1368 = vperm.xlu0 %1367, %v1362
        %v1369 = vpop.permute.xlu0 %1368
        %1372 = vset.pattern.permute.xlu0 0
        %1373 = vperm.xlu0 %1372, %v1363
        %v1374 = vpop.permute.xlu0 %1373
        %1377 = vset.pattern.permute.xlu0 0
        %1378 = vperm.xlu0 %1377, %v1364
        %v1379 = vpop.permute.xlu0 %1378
        %1382 = vset.pattern.permute.xlu0 0
        %1383 = vperm.xlu0 %1382, %v1365
        %v1384 = vpop.permute.xlu0 %1383
        %v1390 = vunpack.c.l.b16 %v1349
        %v1391 = vunpack.c.l.b16 %v1350
        %v1392 = vunpack.c.l.b16 %v1351
        %v1393 = vunpack.c.l.b16 %v1352
        %v1394 = vpack.c.b16 %v1391, %v1390
        %v1395 = vpack.c.b16 %v1393, %v1392
        %v1397 = vsel %vm994, %v1394, 0
        %v1400 = vsel %vm994, %v1395, 0
        %1402 = vmatpush.bf16.msra.mxu0 0
        %1403 = vmatpush.bf16.msra.mxu0 0
        %1404 = vmatpush.bf16.msra.mxu0 0
        %1405 = vmatpush.bf16.msra.mxu0 0
        %1406 = vmatpush.bf16.msra.mxu0 0
        %1407 = vmatpush.bf16.msra.mxu0 0
        %1408 = vmatpush.bf16.msra.mxu0 %v1357
        %1409 = vmatpush.bf16.msra.mxu0 %v1353
        %1410 = vmatmul.bf16.gmra.mxu0 %v1397
        %v1411 = vpop.f32.mrf.mxu0
        %v1412 = vadd.f32 %v1369, %v1411
        %v1413 = vpop.f32.mrf.mxu0
        %v1414 = vadd.f32 %v1374, %v1413
        %1415 = vmatmul.bf16.gmra.mxu0 %v1400
        %v1416 = vpop.f32.mrf.mxu0
        %v1417 = vadd.f32 %v1379, %v1416
        %v1418 = vpop.f32.mrf.mxu0
        %v1419 = vadd.f32 %v1384, %v1418
        %1420 = vdwg.mxu0
        %1421 = vmatpush.bf16.msra.mxu0 0
        %1422 = vmatpush.bf16.msra.mxu0 0
        %1423 = vmatpush.bf16.msra.mxu0 0
        %1424 = vmatpush.bf16.msra.mxu0 0
        %1425 = vmatpush.bf16.msra.mxu0 0
        %1426 = vmatpush.bf16.msra.mxu0 0
        %1427 = vmatpush.bf16.msra.mxu0 %v1358
        %1428 = vmatpush.bf16.msra.mxu0 %v1354
        %1429 = vmatmul.bf16.gmra.mxu0 %v1397
        %v1430 = vpop.f32.mrf.mxu0
        %v1431 = vadd.f32 %v1369, %v1430
        %v1432 = vpop.f32.mrf.mxu0
        %v1433 = vadd.f32 %v1374, %v1432
        %1434 = vmatmul.bf16.gmra.mxu0 %v1400
        %v1435 = vpop.f32.mrf.mxu0
        %v1436 = vadd.f32 %v1379, %v1435
        %v1437 = vpop.f32.mrf.mxu0
        %v1438 = vadd.f32 %v1384, %v1437
        %1439 = vdwg.mxu0
        %1440 = vmatpush.bf16.msra.mxu0 0
        %1441 = vmatpush.bf16.msra.mxu0 0
        %1442 = vmatpush.bf16.msra.mxu0 0
        %1443 = vmatpush.bf16.msra.mxu0 0
        %1444 = vmatpush.bf16.msra.mxu0 0
        %1445 = vmatpush.bf16.msra.mxu0 0
        %1446 = vmatpush.bf16.msra.mxu0 %v1359
        %1447 = vmatpush.bf16.msra.mxu0 %v1355
        %1448 = vmatmul.bf16.gmra.mxu0 %v1397
        %v1449 = vpop.f32.mrf.mxu0
        %v1450 = vadd.f32 %v1369, %v1449
        %v1451 = vpop.f32.mrf.mxu0
        %v1452 = vadd.f32 %v1374, %v1451
        %1453 = vmatmul.bf16.gmra.mxu0 %v1400
        %v1454 = vpop.f32.mrf.mxu0
        %v1455 = vadd.f32 %v1379, %v1454
        %v1456 = vpop.f32.mrf.mxu0
        %v1457 = vadd.f32 %v1384, %v1456
        %1458 = vdwg.mxu0
        %1459 = vmatpush.bf16.msra.mxu0 0
        %1460 = vmatpush.bf16.msra.mxu0 0
        %1461 = vmatpush.bf16.msra.mxu0 0
        %1462 = vmatpush.bf16.msra.mxu0 0
        %1463 = vmatpush.bf16.msra.mxu0 0
        %1464 = vmatpush.bf16.msra.mxu0 0
        %1465 = vmatpush.bf16.msra.mxu0 %v1360
        %1466 = vmatpush.bf16.msra.mxu0 %v1356
        %1467 = vmatmul.bf16.gmra.mxu0 %v1397
        %v1468 = vpop.f32.mrf.mxu0
        %v1469 = vadd.f32 %v1369, %v1468
        %v1470 = vpop.f32.mrf.mxu0
        %v1471 = vadd.f32 %v1374, %v1470
        %1472 = vmatmul.bf16.gmra.mxu0 %v1400
        %v1473 = vpop.f32.mrf.mxu0
        %v1474 = vadd.f32 %v1379, %v1473
        %v1475 = vpop.f32.mrf.mxu0
        %v1476 = vadd.f32 %v1384, %v1475
        %1477 = vdwg.mxu0
        %v1478 = vmax.f32 %v1412, 0.0
        %v1479 = vmax.f32 %v1431, 0.0
        %v1480 = vmax.f32 %v1450, 0.0
        %v1481 = vmax.f32 %v1469, 0.0
        %v1482 = vmax.f32 %v1414, 0.0
        %v1483 = vmax.f32 %v1433, 0.0
        %v1484 = vmax.f32 %v1452, 0.0
        %v1485 = vmax.f32 %v1471, 0.0
        %v1486 = vmax.f32 %v1417, 0.0
        %v1487 = vmax.f32 %v1436, 0.0
        %v1488 = vmax.f32 %v1455, 0.0
        %v1489 = vmax.f32 %v1474, 0.0
        %v1490 = vmax.f32 %v1419, 0.0
        %v1491 = vmax.f32 %v1438, 0.0
        %v1492 = vmax.f32 %v1457, 0.0
        %v1493 = vmax.f32 %v1476, 0.0
        %s1494 = scalar_lea.vmem %s6, 2
        %v1495 = vld [vmem:[%s1494] sm:$0x3]
        %v1496 = vpack.c.bf16 %v1482, %v1478
        %v1497 = vpack.c.bf16 %v1483, %v1479
        %v1498 = vpack.c.bf16 %v1484, %v1480
        %v1499 = vpack.c.bf16 %v1485, %v1481
        %v1500 = vpack.c.bf16 %v1490, %v1486
        %v1501 = vpack.c.bf16 %v1491, %v1487
        %v1502 = vpack.c.bf16 %v1492, %v1488
        %v1503 = vpack.c.bf16 %v1493, %v1489
        %s1504 = scalar_lea.vmem %s7, 4
        %v1505 = vld [vmem:[%s1504] sm:$0x7]
        %1507 = vset.pattern.permute.xlu0 0
        %1508 = vperm.xlu0 %1507, %v1505
        %v1509 = vpop.permute.xlu0 %1508
        %v1512 = vsel %vm994, %v1495, 0
        %1514 = vmatpush.bf16.msra.mxu0 0
        %1515 = vmatpush.bf16.msra.mxu0 0
        %1516 = vmatpush.bf16.msra.mxu0 0
        %1517 = vmatpush.bf16.msra.mxu0 0
        %1518 = vmatpush.bf16.msra.mxu0 0
        %1519 = vmatpush.bf16.msra.mxu0 0
        %1520 = vmatpush.bf16.msra.mxu0 %v1500
        %1521 = vmatpush.bf16.msra.mxu0 %v1496
        %1522 = vmatmul.bf16.gmra.mxu0 %v1512
        %v1523 = vpop.f32.mrf.mxu0
        %v1524 = vadd.f32 %v1509, %v1523
        %v1525 = vpop.f32.mrf.mxu0
        %1526 = vdwg.mxu0
        %1527 = vmatpush.bf16.msra.mxu0 0
        %1528 = vmatpush.bf16.msra.mxu0 0
        %1529 = vmatpush.bf16.msra.mxu0 0
        %1530 = vmatpush.bf16.msra.mxu0 0
        %1531 = vmatpush.bf16.msra.mxu0 0
        %1532 = vmatpush.bf16.msra.mxu0 0
        %1533 = vmatpush.bf16.msra.mxu0 %v1501
        %1534 = vmatpush.bf16.msra.mxu0 %v1497
        %1535 = vmatmul.bf16.gmra.mxu0 %v1512
        %v1536 = vpop.f32.mrf.mxu0
        %v1537 = vadd.f32 %v1509, %v1536
        %v1538 = vpop.f32.mrf.mxu0
        %1539 = vdwg.mxu0
        %1540 = vmatpush.bf16.msra.mxu0 0
        %1541 = vmatpush.bf16.msra.mxu0 0
        %1542 = vmatpush.bf16.msra.mxu0 0
        %1543 = vmatpush.bf16.msra.mxu0 0
        %1544 = vmatpush.bf16.msra.mxu0 0
        %1545 = vmatpush.bf16.msra.mxu0 0
        %1546 = vmatpush.bf16.msra.mxu0 %v1502
        %1547 = vmatpush.bf16.msra.mxu0 %v1498
        %1548 = vmatmul.bf16.gmra.mxu0 %v1512
        %v1549 = vpop.f32.mrf.mxu0
        %v1550 = vadd.f32 %v1509, %v1549
        %v1551 = vpop.f32.mrf.mxu0
        %1552 = vdwg.mxu0
        %1553 = vmatpush.bf16.msra.mxu0 0
        %1554 = vmatpush.bf16.msra.mxu0 0
        %1555 = vmatpush.bf16.msra.mxu0 0
        %1556 = vmatpush.bf16.msra.mxu0 0
        %1557 = vmatpush.bf16.msra.mxu0 0
        %1558 = vmatpush.bf16.msra.mxu0 0
        %1559 = vmatpush.bf16.msra.mxu0 %v1503
        %1560 = vmatpush.bf16.msra.mxu0 %v1499
        %1561 = vmatmul.bf16.gmra.mxu0 %v1512
        %v1562 = vpop.f32.mrf.mxu0
        %v1563 = vadd.f32 %v1509, %v1562
        %v1564 = vpop.f32.mrf.mxu0
        %1565 = vdwg.mxu0
        %v1566 = vadd.f32 %v1524, %v1163
        %v1567 = vadd.f32 %v1537, %v1164
        %v1568 = vadd.f32 %v1550, %v1165
        %v1569 = vadd.f32 %v1563, %v1166
        %s1570 = scalar_lea.vmem %s3, 64
        %v1571 = vld [vmem:[%s1570] sm:$0xff]
        %v1572 = vld [vmem:[%s1570 + $0x8] sm:$0xff]
        %v1573 = vld [vmem:[%s1570 + $0x10] sm:$0xff]
        %v1574 = vld [vmem:[%s1570 + $0x18] sm:$0xff]
        %1576 = vset.pattern.permute.xlu0 0
        %1577 = vperm.xlu0 %1576, %v1571
        %v1578 = vpop.permute.xlu0 %1577
        %1581 = vset.pattern.permute.xlu0 0
        %1582 = vperm.xlu0 %1581, %v1572
        %v1583 = vpop.permute.xlu0 %1582
        %1586 = vset.pattern.permute.xlu0 0
        %1587 = vperm.xlu0 %1586, %v1573
        %v1588 = vpop.permute.xlu0 %1587
        %1591 = vset.pattern.permute.xlu0 0
        %1592 = vperm.xlu0 %1591, %v1574
        %v1593 = vpop.permute.xlu0 %1592
        %v1595 = vperm.slane %v1566, 0
        %v1596 = vperm.slane %v1567, 0
        %v1597 = vperm.slane %v1568, 0
        %v1598 = vperm.slane %v1569, 0
        %v1599 = vmul.f32 %v1578, %v1595
        %v1600 = vmul.f32 %v1578, %v1596
        %v1601 = vmul.f32 %v1578, %v1597
        %v1602 = vmul.f32 %v1578, %v1598
        %v1603 = vmul.f32 %v1583, %v1595
        %v1604 = vmul.f32 %v1583, %v1596
        %v1605 = vmul.f32 %v1583, %v1597
        %v1606 = vmul.f32 %v1583, %v1598
        %v1607 = vmul.f32 %v1588, %v1595
        %v1608 = vmul.f32 %v1588, %v1596
        %v1609 = vmul.f32 %v1588, %v1597
        %v1610 = vmul.f32 %v1588, %v1598
        %v1611 = vmul.f32 %v1593, %v1595
        %v1612 = vmul.f32 %v1593, %v1596
        %v1613 = vmul.f32 %v1593, %v1597
        %v1614 = vmul.f32 %v1593, %v1598
        %1615 = vset.pattern.permute.xlu0 1
        %1616 = vperm.xlu0 %1615, %v1571
        %v1617 = vpop.permute.xlu0 %1616
        %1619 = vset.pattern.permute.xlu0 1
        %1620 = vperm.xlu0 %1619, %v1572
        %v1621 = vpop.permute.xlu0 %1620
        %1623 = vset.pattern.permute.xlu0 1
        %1624 = vperm.xlu0 %1623, %v1573
        %v1625 = vpop.permute.xlu0 %1624
        %1627 = vset.pattern.permute.xlu0 1
        %1628 = vperm.xlu0 %1627, %v1574
        %v1629 = vpop.permute.xlu0 %1628
        %v1631 = vperm.slane %v1566, 1
        %v1632 = vperm.slane %v1567, 1
        %v1633 = vperm.slane %v1568, 1
        %v1634 = vperm.slane %v1569, 1
        %v1635 = vmul.f32 %v1617, %v1631
        %v1636 = vmul.f32 %v1617, %v1632
        %v1637 = vmul.f32 %v1617, %v1633
        %v1638 = vmul.f32 %v1617, %v1634
        %v1639 = vmul.f32 %v1621, %v1631
        %v1640 = vmul.f32 %v1621, %v1632
        %v1641 = vmul.f32 %v1621, %v1633
        %v1642 = vmul.f32 %v1621, %v1634
        %v1643 = vmul.f32 %v1625, %v1631
        %v1644 = vmul.f32 %v1625, %v1632
        %v1645 = vmul.f32 %v1625, %v1633
        %v1646 = vmul.f32 %v1625, %v1634
        %v1647 = vmul.f32 %v1629, %v1631
        %v1648 = vmul.f32 %v1629, %v1632
        %v1649 = vmul.f32 %v1629, %v1633
        %v1650 = vmul.f32 %v1629, %v1634
        %v1651 = vadd.f32 %v1599, %v1635
        %v1652 = vadd.f32 %v1600, %v1636
        %v1653 = vadd.f32 %v1601, %v1637
        %v1654 = vadd.f32 %v1602, %v1638
        %v1655 = vadd.f32 %v1603, %v1639
        %v1656 = vadd.f32 %v1604, %v1640
        %v1657 = vadd.f32 %v1605, %v1641
        %v1658 = vadd.f32 %v1606, %v1642
        %v1659 = vadd.f32 %v1607, %v1643
        %v1660 = vadd.f32 %v1608, %v1644
        %v1661 = vadd.f32 %v1609, %v1645
        %v1662 = vadd.f32 %v1610, %v1646
        %v1663 = vadd.f32 %v1611, %v1647
        %v1664 = vadd.f32 %v1612, %v1648
        %v1665 = vadd.f32 %v1613, %v1649
        %v1666 = vadd.f32 %v1614, %v1650
        %1667 = vset.pattern.permute.xlu0 2
        %1668 = vperm.xlu0 %1667, %v1571
        %v1669 = vpop.permute.xlu0 %1668
        %1671 = vset.pattern.permute.xlu0 2
        %1672 = vperm.xlu0 %1671, %v1572
        %v1673 = vpop.permute.xlu0 %1672
        %1675 = vset.pattern.permute.xlu0 2
        %1676 = vperm.xlu0 %1675, %v1573
        %v1677 = vpop.permute.xlu0 %1676
        %1679 = vset.pattern.permute.xlu0 2
        %1680 = vperm.xlu0 %1679, %v1574
        %v1681 = vpop.permute.xlu0 %1680
        %v1683 = vperm.slane %v1566, 2
        %v1684 = vperm.slane %v1567, 2
        %v1685 = vperm.slane %v1568, 2
        %v1686 = vperm.slane %v1569, 2
        %v1687 = vmul.f32 %v1669, %v1683
        %v1688 = vmul.f32 %v1669, %v1684
        %v1689 = vmul.f32 %v1669, %v1685
        %v1690 = vmul.f32 %v1669, %v1686
        %v1691 = vmul.f32 %v1673, %v1683
        %v1692 = vmul.f32 %v1673, %v1684
        %v1693 = vmul.f32 %v1673, %v1685
        %v1694 = vmul.f32 %v1673, %v1686
        %v1695 = vmul.f32 %v1677, %v1683
        %v1696 = vmul.f32 %v1677, %v1684
        %v1697 = vmul.f32 %v1677, %v1685
        %v1698 = vmul.f32 %v1677, %v1686
        %v1699 = vmul.f32 %v1681, %v1683
        %v1700 = vmul.f32 %v1681, %v1684
        %v1701 = vmul.f32 %v1681, %v1685
        %v1702 = vmul.f32 %v1681, %v1686
        %v1703 = vadd.f32 %v1651, %v1687
        %v1704 = vadd.f32 %v1652, %v1688
        %v1705 = vadd.f32 %v1653, %v1689
        %v1706 = vadd.f32 %v1654, %v1690
        %v1707 = vadd.f32 %v1655, %v1691
        %v1708 = vadd.f32 %v1656, %v1692
        %v1709 = vadd.f32 %v1657, %v1693
        %v1710 = vadd.f32 %v1658, %v1694
        %v1711 = vadd.f32 %v1659, %v1695
        %v1712 = vadd.f32 %v1660, %v1696
        %v1713 = vadd.f32 %v1661, %v1697
        %v1714 = vadd.f32 %v1662, %v1698
        %v1715 = vadd.f32 %v1663, %v1699
        %v1716 = vadd.f32 %v1664, %v1700
        %v1717 = vadd.f32 %v1665, %v1701
        %v1718 = vadd.f32 %v1666, %v1702
        %v1719 = vadd.f32 %v638, %v1703
        %v1720 = vadd.f32 %v677, %v1704
        %v1721 = vadd.f32 %v716, %v1705
        %v1722 = vadd.f32 %v755, %v1706
        %v1723 = vadd.f32 %v640, %v1707
        %v1724 = vadd.f32 %v679, %v1708
        %v1725 = vadd.f32 %v718, %v1709
        %v1726 = vadd.f32 %v757, %v1710
        %v1727 = vadd.f32 %v643, %v1711
        %v1728 = vadd.f32 %v682, %v1712
        %v1729 = vadd.f32 %v721, %v1713
        %v1730 = vadd.f32 %v760, %v1714
        %v1731 = vadd.f32 %v645, %v1715
        %v1732 = vadd.f32 %v684, %v1716
        %v1733 = vadd.f32 %v723, %v1717
        %v1734 = vadd.f32 %v762, %v1718
        %v1735 = vmax.f32 %v1719, 0.0
        %v1736 = vmax.f32 %v1720, 0.0
        %v1737 = vmax.f32 %v1721, 0.0
        %v1738 = vmax.f32 %v1722, 0.0
        %v1739 = vmax.f32 %v1723, 0.0
        %v1740 = vmax.f32 %v1724, 0.0
        %v1741 = vmax.f32 %v1725, 0.0
        %v1742 = vmax.f32 %v1726, 0.0
        %v1743 = vmax.f32 %v1727, 0.0
        %v1744 = vmax.f32 %v1728, 0.0
        %v1745 = vmax.f32 %v1729, 0.0
        %v1746 = vmax.f32 %v1730, 0.0
        %v1747 = vmax.f32 %v1731, 0.0
        %v1748 = vmax.f32 %v1732, 0.0
        %v1749 = vmax.f32 %v1733, 0.0
        %v1750 = vmax.f32 %v1734, 0.0
        %s1751 = scalar_lea.vmem [#allocation5], 32
        %v1752 = vld [vmem:[%s1751] sm:$0xf]
        %v1753 = vld [vmem:[%s1751 + $0x4] sm:$0xf]
        %v1754 = vld [vmem:[%s1751 + $0x8] sm:$0xf]
        %v1755 = vld [vmem:[%s1751 + $0xc] sm:$0xf]
        %v1756 = vpack.c.bf16 %v1739, %v1735
        %v1757 = vpack.c.bf16 %v1740, %v1736
        %v1758 = vpack.c.bf16 %v1741, %v1737
        %v1759 = vpack.c.bf16 %v1742, %v1738
        %v1760 = vpack.c.bf16 %v1747, %v1743
        %v1761 = vpack.c.bf16 %v1748, %v1744
        %v1762 = vpack.c.bf16 %v1749, %v1745
        %v1763 = vpack.c.bf16 %v1750, %v1746
        %s1764 = scalar_lea.vmem %s5, 64
        %v1765 = vld [vmem:[%s1764] sm:$0xff]
        %v1766 = vld [vmem:[%s1764 + $0x8] sm:$0xff]
        %v1767 = vld [vmem:[%s1764 + $0x10] sm:$0xff]
        %v1768 = vld [vmem:[%s1764 + $0x18] sm:$0xff]
        %1770 = vset.pattern.permute.xlu0 0
        %1771 = vperm.xlu0 %1770, %v1765
        %v1772 = vpop.permute.xlu0 %1771
        %1775 = vset.pattern.permute.xlu0 0
        %1776 = vperm.xlu0 %1775, %v1766
        %v1777 = vpop.permute.xlu0 %1776
        %1780 = vset.pattern.permute.xlu0 0
        %1781 = vperm.xlu0 %1780, %v1767
        %v1782 = vpop.permute.xlu0 %1781
        %1785 = vset.pattern.permute.xlu0 0
        %1786 = vperm.xlu0 %1785, %v1768
        %v1787 = vpop.permute.xlu0 %1786
        %v1793 = vunpack.c.l.b16 %v1752
        %v1794 = vunpack.c.l.b16 %v1753
        %v1795 = vunpack.c.l.b16 %v1754
        %v1796 = vunpack.c.l.b16 %v1755
        %v1797 = vpack.c.b16 %v1794, %v1793
        %v1798 = vpack.c.b16 %v1796, %v1795
        %v1800 = vsel %vm994, %v1797, 0
        %v1803 = vsel %vm994, %v1798, 0
        %1805 = vmatpush.bf16.msra.mxu0 0
        %1806 = vmatpush.bf16.msra.mxu0 0
        %1807 = vmatpush.bf16.msra.mxu0 0
        %1808 = vmatpush.bf16.msra.mxu0 0
        %1809 = vmatpush.bf16.msra.mxu0 0
        %1810 = vmatpush.bf16.msra.mxu0 0
        %1811 = vmatpush.bf16.msra.mxu0 %v1760
        %1812 = vmatpush.bf16.msra.mxu0 %v1756
        %1813 = vmatmul.bf16.gmra.mxu0 %v1800
        %v1814 = vpop.f32.mrf.mxu0
        %v1815 = vadd.f32 %v1772, %v1814
        %v1816 = vpop.f32.mrf.mxu0
        %v1817 = vadd.f32 %v1777, %v1816
        %1818 = vmatmul.bf16.gmra.mxu0 %v1803
        %v1819 = vpop.f32.mrf.mxu0
        %v1820 = vadd.f32 %v1782, %v1819
        %v1821 = vpop.f32.mrf.mxu0
        %v1822 = vadd.f32 %v1787, %v1821
        %1823 = vdwg.mxu0
        %1824 = vmatpush.bf16.msra.mxu0 0
        %1825 = vmatpush.bf16.msra.mxu0 0
        %1826 = vmatpush.bf16.msra.mxu0 0
        %1827 = vmatpush.bf16.msra.mxu0 0
        %1828 = vmatpush.bf16.msra.mxu0 0
        %1829 = vmatpush.bf16.msra.mxu0 0
        %1830 = vmatpush.bf16.msra.mxu0 %v1761
        %1831 = vmatpush.bf16.msra.mxu0 %v1757
        %1832 = vmatmul.bf16.gmra.mxu0 %v1800
        %v1833 = vpop.f32.mrf.mxu0
        %v1834 = vadd.f32 %v1772, %v1833
        %v1835 = vpop.f32.mrf.mxu0
        %v1836 = vadd.f32 %v1777, %v1835
        %1837 = vmatmul.bf16.gmra.mxu0 %v1803
        %v1838 = vpop.f32.mrf.mxu0
        %v1839 = vadd.f32 %v1782, %v1838
        %v1840 = vpop.f32.mrf.mxu0
        %v1841 = vadd.f32 %v1787, %v1840
        %1842 = vdwg.mxu0
        %1843 = vmatpush.bf16.msra.mxu0 0
        %1844 = vmatpush.bf16.msra.mxu0 0
        %1845 = vmatpush.bf16.msra.mxu0 0
        %1846 = vmatpush.bf16.msra.mxu0 0
        %1847 = vmatpush.bf16.msra.mxu0 0
        %1848 = vmatpush.bf16.msra.mxu0 0
        %1849 = vmatpush.bf16.msra.mxu0 %v1762
        %1850 = vmatpush.bf16.msra.mxu0 %v1758
        %1851 = vmatmul.bf16.gmra.mxu0 %v1800
        %v1852 = vpop.f32.mrf.mxu0
        %v1853 = vadd.f32 %v1772, %v1852
        %v1854 = vpop.f32.mrf.mxu0
        %v1855 = vadd.f32 %v1777, %v1854
        %1856 = vmatmul.bf16.gmra.mxu0 %v1803
        %v1857 = vpop.f32.mrf.mxu0
        %v1858 = vadd.f32 %v1782, %v1857
        %v1859 = vpop.f32.mrf.mxu0
        %v1860 = vadd.f32 %v1787, %v1859
        %1861 = vdwg.mxu0
        %1862 = vmatpush.bf16.msra.mxu0 0
        %1863 = vmatpush.bf16.msra.mxu0 0
        %1864 = vmatpush.bf16.msra.mxu0 0
        %1865 = vmatpush.bf16.msra.mxu0 0
        %1866 = vmatpush.bf16.msra.mxu0 0
        %1867 = vmatpush.bf16.msra.mxu0 0
        %1868 = vmatpush.bf16.msra.mxu0 %v1763
        %1869 = vmatpush.bf16.msra.mxu0 %v1759
        %1870 = vmatmul.bf16.gmra.mxu0 %v1800
        %v1871 = vpop.f32.mrf.mxu0
        %v1872 = vadd.f32 %v1772, %v1871
        %v1873 = vpop.f32.mrf.mxu0
        %v1874 = vadd.f32 %v1777, %v1873
        %1875 = vmatmul.bf16.gmra.mxu0 %v1803
        %v1876 = vpop.f32.mrf.mxu0
        %v1877 = vadd.f32 %v1782, %v1876
        %v1878 = vpop.f32.mrf.mxu0
        %v1879 = vadd.f32 %v1787, %v1878
        %1880 = vdwg.mxu0
        %v1881 = vmax.f32 %v1815, 0.0
        %v1882 = vmax.f32 %v1834, 0.0
        %v1883 = vmax.f32 %v1853, 0.0
        %v1884 = vmax.f32 %v1872, 0.0
        %v1885 = vmax.f32 %v1817, 0.0
        %v1886 = vmax.f32 %v1836, 0.0
        %v1887 = vmax.f32 %v1855, 0.0
        %v1888 = vmax.f32 %v1874, 0.0
        %v1889 = vmax.f32 %v1820, 0.0
        %v1890 = vmax.f32 %v1839, 0.0
        %v1891 = vmax.f32 %v1858, 0.0
        %v1892 = vmax.f32 %v1877, 0.0
        %v1893 = vmax.f32 %v1822, 0.0
        %v1894 = vmax.f32 %v1841, 0.0
        %v1895 = vmax.f32 %v1860, 0.0
        %v1896 = vmax.f32 %v1879, 0.0
        %s1897 = scalar_lea.vmem %s6, 4
        %v1898 = vld [vmem:[%s1897] sm:$0x3]
        %v1899 = vpack.c.bf16 %v1885, %v1881
        %v1900 = vpack.c.bf16 %v1886, %v1882
        %v1901 = vpack.c.bf16 %v1887, %v1883
        %v1902 = vpack.c.bf16 %v1888, %v1884
        %v1903 = vpack.c.bf16 %v1893, %v1889
        %v1904 = vpack.c.bf16 %v1894, %v1890
        %v1905 = vpack.c.bf16 %v1895, %v1891
        %v1906 = vpack.c.bf16 %v1896, %v1892
        %s1907 = scalar_lea.vmem %s7, 8
        %v1908 = vld [vmem:[%s1907] sm:$0x7]
        %1910 = vset.pattern.permute.xlu0 0
        %1911 = vperm.xlu0 %1910, %v1908
        %v1912 = vpop.permute.xlu0 %1911
        %v1915 = vsel %vm994, %v1898, 0
        %1917 = vmatpush.bf16.msra.mxu0 0
        %1918 = vmatpush.bf16.msra.mxu0 0
        %1919 = vmatpush.bf16.msra.mxu0 0
        %1920 = vmatpush.bf16.msra.mxu0 0
        %1921 = vmatpush.bf16.msra.mxu0 0
        %1922 = vmatpush.bf16.msra.mxu0 0
        %1923 = vmatpush.bf16.msra.mxu0 %v1903
        %1924 = vmatpush.bf16.msra.mxu0 %v1899
        %1925 = vmatmul.bf16.gmra.mxu0 %v1915
        %v1926 = vpop.f32.mrf.mxu0
        %v1927 = vadd.f32 %v1912, %v1926
        %v1928 = vpop.f32.mrf.mxu0
        %1929 = vdwg.mxu0
        %1930 = vmatpush.bf16.msra.mxu0 0
        %1931 = vmatpush.bf16.msra.mxu0 0
        %1932 = vmatpush.bf16.msra.mxu0 0
        %1933 = vmatpush.bf16.msra.mxu0 0
        %1934 = vmatpush.bf16.msra.mxu0 0
        %1935 = vmatpush.bf16.msra.mxu0 0
        %1936 = vmatpush.bf16.msra.mxu0 %v1904
        %1937 = vmatpush.bf16.msra.mxu0 %v1900
        %1938 = vmatmul.bf16.gmra.mxu0 %v1915
        %v1939 = vpop.f32.mrf.mxu0
        %v1940 = vadd.f32 %v1912, %v1939
        %v1941 = vpop.f32.mrf.mxu0
        %1942 = vdwg.mxu0
        %1943 = vmatpush.bf16.msra.mxu0 0
        %1944 = vmatpush.bf16.msra.mxu0 0
        %1945 = vmatpush.bf16.msra.mxu0 0
        %1946 = vmatpush.bf16.msra.mxu0 0
        %1947 = vmatpush.bf16.msra.mxu0 0
        %1948 = vmatpush.bf16.msra.mxu0 0
        %1949 = vmatpush.bf16.msra.mxu0 %v1905
        %1950 = vmatpush.bf16.msra.mxu0 %v1901
        %1951 = vmatmul.bf16.gmra.mxu0 %v1915
        %v1952 = vpop.f32.mrf.mxu0
        %v1953 = vadd.f32 %v1912, %v1952
        %v1954 = vpop.f32.mrf.mxu0
        %1955 = vdwg.mxu0
        %1956 = vmatpush.bf16.msra.mxu0 0
        %1957 = vmatpush.bf16.msra.mxu0 0
        %1958 = vmatpush.bf16.msra.mxu0 0
        %1959 = vmatpush.bf16.msra.mxu0 0
        %1960 = vmatpush.bf16.msra.mxu0 0
        %1961 = vmatpush.bf16.msra.mxu0 0
        %1962 = vmatpush.bf16.msra.mxu0 %v1906
        %1963 = vmatpush.bf16.msra.mxu0 %v1902
        %1964 = vmatmul.bf16.gmra.mxu0 %v1915
        %v1965 = vpop.f32.mrf.mxu0
        %v1966 = vadd.f32 %v1912, %v1965
        %v1967 = vpop.f32.mrf.mxu0
        %1968 = vdwg.mxu0
        %v1969 = vmul.f32 %v1927, 200.0
        %v1970 = vmul.f32 %v1940, 200.0
        %v1971 = vmul.f32 %v1953, 200.0
        %v1972 = vmul.f32 %v1966, 200.0
        %v1977 = vrot.slane %v1970, 4
        %v1978 = vrot.slane %v1972, 4
        %vm1979 = vcmask 1043456
        %v1980 = vsel %vm1979, %v1969, %v1977
        %v1981 = vsel %vm1979, %v1971, %v1978
        %1984 = vst [vmem:[%s358] sm:$0x77] %v1980
        %1985 = vst [vmem:[%s358 + $0x8] sm:$0x77] %v1981
        %s1986 = sand.u32 %s212, 1
        %s1987 = scalar_lea.sflag [#allocation4], %s1986
        %s1988 = sand.u32 %s212, 1
        %s1989 = smul.addr %s1988, 16
        %s1990 = scalar_lea.vmem [#allocation7], %s1989
        // Predicated region
        $region61: #{tpu_custom_call.1} parent=51 // pred_check
          %p1991 = pneg %p222
        $region62: #{tpu_custom_call.1} parent=51 // pred_check_branch
          %1993 = sbr.rel (%p1991) target = $region64
        $region63: #{tpu_custom_call.1} parent=51 // pred_region
          %s1994 = smul.u32 4, %s26
          %1996 = vsyncadd %s1987, 0
          %s1997 = smul.addr %s1994, 4
          %s1998 = scalar_lea.hbm %s8, %s1997
          %s2000 = sshll.u32 %s1990, 4
          %s2001 = int_to_ptr.vmem [resolvable:$true] %s2000
          %s2002 = sshll.u32 %s1998, 4
          %s2003 = int_to_ptr.hbm [resolvable:$true] %s2002
          %2005 = dma.vmem_to_hbm [thread:$0]  %s2001, 256, %s2003, %s1987
        $region64: #{tpu_custom_call.1} parent=51 // pred_fallthru
          _
      $region52: #{tpu_custom_call.1} parent=5 // pred_fallthru
        _
      %p2006 = scmp.le.s32.totalorder 2, %s21
      // Predicated region
      $region65: #{tpu_custom_call.1} parent=5 // pred_check
        %p2007 = pneg %p2006
      $region66: #{tpu_custom_call.1} parent=5 // pred_check_branch
        %2009 = sbr.rel (%p2007) target = $region68
      $region67: #{tpu_custom_call.1} parent=5 // pred_region
        %s2010 = ssub.s32 %s21, 2
        // Predicated region
        $region69: #{tpu_custom_call.1} parent=67 // pred_check
          %p2011 = pneg %p228
        $region70: #{tpu_custom_call.1} parent=67 // pred_check_branch
          %2013 = sbr.rel (%p2011) target = $region72
        $region71: #{tpu_custom_call.1} parent=67 // pred_region
          %s2014 = sand.u32 %s213, 1
          %s2015 = scalar_lea.sflag [#allocation4], %s2014
          %s2016 = sand.u32 %s213, 1
          %s2017 = smul.addr %s2016, 16
          %s2018 = scalar_lea.vmem [#allocation7], %s2017
          %2020 = dma.done %s2015, 256
        $region72: #{tpu_custom_call.1} parent=67 // pred_fallthru
          _
      $region68: #{tpu_custom_call.1} parent=5 // pred_fallthru
        _
    $region6: #{tpu_custom_call.1} parent=1 // loop_footer
      %s25 = sadd.s32 1, %s21
    $region7: #{tpu_custom_call.1} parent=1 // loop_footer_branch
      %20 = sbr.rel target = $region3
    $region8: #{tpu_custom_call.1} parent=1 // loop_exit
      _
    %2021 = vsyncpa [#allocation3], 1
    %s2022 = scalar_lea.sflag [#allocation3], 1
    %2023 = vsyncpa %s2022, 1
    %2024 = vsyncpa [#allocation6], 1
    %2025 = vsyncpa [#allocation4], 1
    %s2026 = scalar_lea.sflag [#allocation4], 1
    %2027 = vsyncpa %s2026, 1

</llo_original>
